<compile_context>
chip_gen: v6e
topology: v6e:2x2x1
jax: 0.10.0
libtpu: 0.0.40
codegen_flags: <defaults>
</compile_context>

<pallas_src>
import functools
import math

import jax
import jax.numpy as jnp
from jax.experimental import pallas as pl
from jax.experimental.pallas import tpu as pltpu  # noqa: F401  (TPU backend assumed)


# ----------------------------------------------------------------------------
# Fused Pallas kernel: 3 wavefronted LSTM layers + regression head
# ----------------------------------------------------------------------------
def _fused_lstm_kernel(
    x_ref,        # (T, B, H)    bf16, time-major, input_size zero-padded to H
    w_ref,        # (3, 2H, 4H)  bf16, per layer [W_ih ; W_hh] (layer-0 W_ih padded)
    b_ref,        # (3, 1, 4H)   f32,  per layer b_ih + b_hh
    rw1_ref,      # (H, H//2)    bf16
    rb1_ref,      # (1, H//2)    f32
    rw2_ref,      # (H//2, O)    bf16
    rb2_ref,      # (1, O)       f32
    out_ref,      # (B, O)       f32
    *, seq_len, batch,
):
    H = w_ref.shape[1] // 2
    f32 = jnp.float32
    bf16 = jnp.bfloat16

    # Hoisted lane mask for the blended tanh/sigmoid pass over the [g | o] vreg.
    go_is_g = jax.lax.broadcasted_iota(jnp.int32, (batch, 2 * H), 1) < H

    def cell(layer, x_in, h, c):
        """One LSTM cell step.  x_in: (B, H) bf16, h/c: (B, H) f32."""
        # Fused input+recurrent projection: [x_t ; h_{t-1}] @ [W_ih ; W_hh], K = 2H.
        lhs = jnp.concatenate([x_in, h.astype(bf16)], axis=1)            # (B, 2H) bf16
        g = jnp.dot(lhs, w_ref[layer],
                    preferred_element_type=f32) + b_ref[layer]           # (B, 4H) f32
        # PyTorch gate order i|f|g|o.  Full-128-lane activation passes.
        a_if = jax.nn.sigmoid(g[:, :2 * H])                              # [i | f]
        v_go = g[:, 2 * H:]
        a_go = jnp.where(go_is_g, jnp.tanh(v_go), jax.nn.sigmoid(v_go))  # [g~ | o]
        c_new = a_if[:, H:] * c + a_if[:, :H] * a_go[:, :H]
        h_new = a_go[:, H:] * jnp.tanh(c_new)
        return h_new, c_new

    zeros = jnp.zeros((batch, H), f32)
    h0, c0 = zeros, zeros            # nn.LSTM default zero initial state
    h1, c1 = zeros, zeros
    h2, c2 = zeros, zeros
    h0_prev = None                   # layer-0 hidden from the previous super-step
    h1_prev = None                   # layer-1 hidden from the previous super-step

    # Wavefront: at super-step s run layer-0 step s, layer-1 step s-1,
    # layer-2 step s-2.  All bounds are static Python ints -> fully unrolled.
    for s in range(seq_len + 2):
        h0_new = None
        h1_new = None
        if s < seq_len:
            h0, c0 = cell(0, x_ref[s], h0, c0)
            h0_new = h0
        if 0 <= s - 1 < seq_len:
            h1, c1 = cell(1, h0_prev.astype(bf16), h1, c1)
            h1_new = h1
        if 0 <= s - 2 < seq_len:
            h2, c2 = cell(2, h1_prev.astype(bf16), h2, c2)
        h0_prev = h0_new
        h1_prev = h1_new

    # Regression head on h_n[-1]: Linear(H, H//2) -> Tanh -> Linear(H//2, O)
    z = jnp.tanh(jnp.dot(h2.astype(bf16), rw1_ref[...],
                         preferred_element_type=f32) + rb1_ref[...])
    out = jnp.dot(z.astype(bf16), rw2_ref[...],
                  preferred_element_type=f32) + rb2_ref[...]
    out_ref[...] = out.astype(out_ref.dtype)


# ----------------------------------------------------------------------------
# Wrapper
# ----------------------------------------------------------------------------
def lstm_model_future_forward(x_btd, params):
    """Full forward pass.  x_btd: (B, T, input_size), batch_first as in PyTorch."""
    B, T, D = x_btd.shape
    l0, l1, l2 = params["lstm"]
    reg = params["regression"]
    H = l0["w_hh"].shape[0]
    O = reg["w2"].shape[1]
    assert D <= H, "kernel assumes input_size <= hidden_size (pads input to H)"

    # Time-major (T, B, H) input, zero-padded from D to H lanes, bf16 LHS.
    x_tbd = jnp.transpose(x_btd, (1, 0, 2))
    x_pad = jnp.pad(x_tbd, ((0, 0), (0, 0), (0, H - D))).astype(jnp.bfloat16)

    # Coalesced fused weight stack: per layer [W_ih ; W_hh] with K = 2H = 128.
    def fused_w(layer, d_in):
        w_ih = layer["w_ih"]
        if d_in < H:
            w_ih = jnp.pad(w_ih, ((0, H - d_in), (0, 0)))
        return jnp.concatenate([w_ih, layer["w_hh"]], axis=0)           # (2H, 4H)

    w_stack = jnp.stack([fused_w(l0, D), fused_w(l1, H), fused_w(l2, H)]
                        ).astype(jnp.bfloat16)                           # (3, 2H, 4H)
    b_stack = jnp.stack([l0["bias"], l1["bias"], l2["bias"]])            # (3, 1, 4H) f32

    args = (
        x_pad, w_stack, b_stack,
        reg["w1"].astype(jnp.bfloat16), reg["b1"],
        reg["w2"].astype(jnp.bfloat16), reg["b2"],
    )

    def full_spec(shape):
        return pl.BlockSpec(shape, lambda: (0,) * len(shape))

    kernel = functools.partial(_fused_lstm_kernel, seq_len=T, batch=B)

    return pl.pallas_call(
        kernel,
        out_shape=jax.ShapeDtypeStruct((B, O), jnp.float32),
        in_specs=[full_spec(a.shape) for a in args],
        out_specs=full_spec((B, O)),
    )(*args)


# ----------------------------------------------------------------------------
# Deterministic parameter construction (PyTorch-style uniform(-k, k), k=1/sqrt(H))
# ----------------------------------------------------------------------------
def init_params(key, input_size, hidden_size, output_size, num_layers):
    k = 1.0 / math.sqrt(hidden_size)
    params = {"lstm": [], "regression": {}}
    for layer in range(num_layers):
        d_in = input_size if layer == 0 else hidden_size
        key, k1, k2, k3, k4 = jax.random.split(key, 5)
        w_ih = jax.random.uniform(k1, (d_in, 4 * hidden_size), jnp.float32, -k, k)
        w_hh = jax.random.uniform(k2, (hidden_size, 4 * hidden_size), jnp.float32, -k, k)
        b_ih = jax.random.uniform(k3, (4 * hidden_size,), jnp.float32, -k, k)
        b_hh = jax.random.uniform(k4, (4 * hidden_size,), jnp.float32, -k, k)
        params["lstm"].append(
            {"w_ih": w_ih, "w_hh": w_hh, "bias": (b_ih + b_hh)[None, :]}
        )
    h_half = hidden_size // 2
    k1v = 1.0 / math.sqrt(hidden_size)
    k2v = 1.0 / math.sqrt(h_half)
    key, k5, k6, k7, k8 = jax.random.split(key, 5)
    params["regression"] = {
        "w1": jax.random.uniform(k5, (hidden_size, h_half), jnp.float32, -k1v, k1v),
        "b1": jax.random.uniform(k6, (1, h_half), jnp.float32, -k1v, k1v),
        "w2": jax.random.uniform(k7, (h_half, output_size), jnp.float32, -k2v, k2v),
        "b2": jax.random.uniform(k8, (1, output_size), jnp.float32, -k2v, k2v),
    }
    return params


# ----------------------------------------------------------------------------
# Pure-JAX reference (lax.scan) with the same bf16-matmul / f32-accumulate policy
# ----------------------------------------------------------------------------
def _reference_forward(x_btd, params):
    bf16 = jnp.bfloat16

    def one_layer(x_tbd, layer):
        H = layer["w_hh"].shape[0]
        w_ih = layer["w_ih"].astype(bf16)
        w_hh = layer["w_hh"].astype(bf16)

        def step(carry, x_t):
            h, c = carry
            gates = (jnp.dot(x_t.astype(bf16), w_ih, preferred_element_type=jnp.float32)
                     + jnp.dot(h.astype(bf16), w_hh, preferred_element_type=jnp.float32)
                     + layer["bias"])
            i = jax.nn.sigmoid(gates[:, 0 * H:1 * H])
            f = jax.nn.sigmoid(gates[:, 1 * H:2 * H])
            g = jnp.tanh(gates[:, 2 * H:3 * H])
            o = jax.nn.sigmoid(gates[:, 3 * H:4 * H])
            c = f * c + i * g
            h = o * jnp.tanh(c)
            return (h, c), h

        B = x_tbd.shape[1]
        init = (jnp.zeros((B, H), jnp.float32), jnp.zeros((B, H), jnp.float32))
        _, hs = jax.lax.scan(step, init, x_tbd)
        return hs

    x = jnp.transpose(x_btd, (1, 0, 2))
    for layer in params["lstm"]:
        x = one_layer(x, layer)
    h_last = x[-1]
    reg = params["regression"]
    z = jnp.tanh(jnp.dot(h_last.astype(bf16), reg["w1"].astype(bf16),
                         preferred_element_type=jnp.float32) + reg["b1"])
    return jnp.dot(z.astype(bf16), reg["w2"].astype(bf16),
                   preferred_element_type=jnp.float32) + reg["b2"]


if __name__ == "__main__":
    # Small shapes consistent with the module's forward:
    #   x: (batch=4, seq=8, input_size=15); hidden=64, output_size=1, num_layers=3
    BATCH, SEQ, INPUT, HIDDEN, OUT, LAYERS = 4, 8, 15, 64, 1, 3

    root = jax.random.PRNGKey(0)
    pkey, xkey = jax.random.split(root)
    params = init_params(pkey, INPUT, HIDDEN, OUT, LAYERS)
    x = jax.random.normal(xkey, (BATCH, SEQ, INPUT), jnp.float32)

    fwd = jax.jit(functools.partial(lstm_model_future_forward, params=params))
    out = fwd(x)
    jax.block_until_ready(out)

    ref = _reference_forward(x, params)
    assert out.shape == (BATCH, OUT), out.shape
    assert jnp.allclose(out, ref, atol=5e-3, rtol=5e-3), (out, ref)

    print("KERNEL_OK")
</pallas_src>

<mosaic_0001>
module attributes {stable_mosaic.version = 11 : i64} {
  func.func @_fused_lstm_kernel(%arg0: memref<8x4x64xbf16, #tpu.memory_space<vmem>>, %arg1: memref<3x128x256xbf16, #tpu.memory_space<vmem>>, %arg2: memref<3x1x256xf32, #tpu.memory_space<vmem>>, %arg3: memref<64x32xbf16, #tpu.memory_space<vmem>>, %arg4: memref<1x32xf32, #tpu.memory_space<vmem>>, %arg5: memref<32x1xbf16, #tpu.memory_space<vmem>>, %arg6: memref<1x1xf32, #tpu.memory_space<vmem>>, %arg7: memref<4x1xf32, #tpu.memory_space<vmem>>) attributes {dimension_semantics = [], scalar_prefetch = 0 : i64, scratch_operands = 0 : i64, tpu.core_type = #tpu.core_type<tc>} {
    %0 = tpu.iota {dimensions = array<i32: 1>} : vector<4x128xi32>
    %c64_i32 = arith.constant 64 : i32
    %1 = vector.broadcast %c64_i32 : i32 to vector<4x128xi32>
    %2 = arith.cmpi slt, %0, %1 : vector<4x128xi32>
    %cst = arith.constant 0.000000e+00 : f32
    %3 = vector.broadcast %cst : f32 to vector<4x64xf32>
    %c0 = arith.constant 0 : index
    %c0_0 = arith.constant 0 : index
    %c0_1 = arith.constant 0 : index
    %4 = vector.load %arg0[%c0, %c0_0, %c0_1] : memref<8x4x64xbf16, #tpu.memory_space<vmem>>, vector<1x4x64xbf16>
    %5 = vector.shape_cast %4 : vector<1x4x64xbf16> to vector<4x64xbf16>
    %6 = arith.truncf %3 : vector<4x64xf32> to vector<4x64xbf16>
    %7 = tpu.concatenate %5, %6 in 1 : vector<4x64xbf16>, vector<4x64xbf16> -> vector<4x128xbf16>
    %c0_2 = arith.constant 0 : index
    %c0_3 = arith.constant 0 : index
    %c0_4 = arith.constant 0 : index
    %8 = vector.load %arg1[%c0_2, %c0_3, %c0_4] : memref<3x128x256xbf16, #tpu.memory_space<vmem>>, vector<1x128x256xbf16>
    %9 = vector.shape_cast %8 : vector<1x128x256xbf16> to vector<128x256xbf16>
    %cst_5 = arith.constant dense<0.000000e+00> : vector<4x256xf32>
    %10 = tpu.matmul %7, %9, %cst_5 {dimension_numbers = #tpu.dot_dimension_numbers<[1], [0], [0], [1], [0, 0, 1, 1], [], []>} : vector<4x128xbf16>, vector<128x256xbf16>, vector<4x256xf32> -> vector<4x256xf32>
    %c0_6 = arith.constant 0 : index
    %c0_7 = arith.constant 0 : index
    %c0_8 = arith.constant 0 : index
    %11 = vector.load %arg2[%c0_6, %c0_7, %c0_8] : memref<3x1x256xf32, #tpu.memory_space<vmem>>, vector<1x1x256xf32>
    %12 = vector.shape_cast %11 : vector<1x1x256xf32> to vector<1x256xf32>
    %13 = vector.broadcast %12 : vector<1x256xf32> to vector<4x256xf32>
    %14 = arith.addf %10, %13 : vector<4x256xf32>
    %15 = vector.extract_strided_slice %14 {offsets = [0, 0], sizes = [4, 128], strides = [1, 1]} : vector<4x256xf32> to vector<4x128xf32>
    %16 = arith.negf %15 : vector<4x128xf32>
    %17 = math.exp %16 : vector<4x128xf32>
    %cst_9 = arith.constant 1.000000e+00 : f32
    %18 = vector.broadcast %cst_9 : f32 to vector<4x128xf32>
    %19 = arith.addf %18, %17 : vector<4x128xf32>
    %20 = arith.divf %18, %19 : vector<4x128xf32>
    %21 = vector.extract_strided_slice %14 {offsets = [0, 128], sizes = [4, 128], strides = [1, 1]} : vector<4x256xf32> to vector<4x128xf32>
    %22 = math.tanh %21 : vector<4x128xf32>
    %23 = arith.negf %21 : vector<4x128xf32>
    %24 = math.exp %23 : vector<4x128xf32>
    %cst_10 = arith.constant 1.000000e+00 : f32
    %25 = vector.broadcast %cst_10 : f32 to vector<4x128xf32>
    %26 = arith.addf %25, %24 : vector<4x128xf32>
    %27 = arith.divf %25, %26 : vector<4x128xf32>
    %28 = arith.select %2, %22, %27 : vector<4x128xi1>, vector<4x128xf32>
    %29 = vector.extract_strided_slice %20 {offsets = [0, 64], sizes = [4, 64], strides = [1, 1]} : vector<4x128xf32> to vector<4x64xf32>
    %30 = arith.mulf %29, %3 : vector<4x64xf32>
    %31 = vector.extract_strided_slice %20 {offsets = [0, 0], sizes = [4, 64], strides = [1, 1]} : vector<4x128xf32> to vector<4x64xf32>
    %32 = vector.extract_strided_slice %28 {offsets = [0, 0], sizes = [4, 64], strides = [1, 1]} : vector<4x128xf32> to vector<4x64xf32>
    %33 = arith.mulf %31, %32 : vector<4x64xf32>
    %34 = arith.addf %30, %33 : vector<4x64xf32>
    %35 = vector.extract_strided_slice %28 {offsets = [0, 64], sizes = [4, 64], strides = [1, 1]} : vector<4x128xf32> to vector<4x64xf32>
    %36 = math.tanh %34 : vector<4x64xf32>
    %37 = arith.mulf %35, %36 : vector<4x64xf32>
    %c1 = arith.constant 1 : index
    %c0_11 = arith.constant 0 : index
    %c0_12 = arith.constant 0 : index
    %38 = vector.load %arg0[%c1, %c0_11, %c0_12] : memref<8x4x64xbf16, #tpu.memory_space<vmem>>, vector<1x4x64xbf16>
    %39 = vector.shape_cast %38 : vector<1x4x64xbf16> to vector<4x64xbf16>
    %40 = arith.truncf %37 : vector<4x64xf32> to vector<4x64xbf16>
    %41 = tpu.concatenate %39, %40 in 1 : vector<4x64xbf16>, vector<4x64xbf16> -> vector<4x128xbf16>
    %c0_13 = arith.constant 0 : index
    %c0_14 = arith.constant 0 : index
    %c0_15 = arith.constant 0 : index
    %42 = vector.load %arg1[%c0_13, %c0_14, %c0_15] : memref<3x128x256xbf16, #tpu.memory_space<vmem>>, vector<1x128x256xbf16>
    %43 = vector.shape_cast %42 : vector<1x128x256xbf16> to vector<128x256xbf16>
    %cst_16 = arith.constant dense<0.000000e+00> : vector<4x256xf32>
    %44 = tpu.matmul %41, %43, %cst_16 {dimension_numbers = #tpu.dot_dimension_numbers<[1], [0], [0], [1], [0, 0, 1, 1], [], []>} : vector<4x128xbf16>, vector<128x256xbf16>, vector<4x256xf32> -> vector<4x256xf32>
    %c0_17 = arith.constant 0 : index
    %c0_18 = arith.constant 0 : index
    %c0_19 = arith.constant 0 : index
    %45 = vector.load %arg2[%c0_17, %c0_18, %c0_19] : memref<3x1x256xf32, #tpu.memory_space<vmem>>, vector<1x1x256xf32>
    %46 = vector.shape_cast %45 : vector<1x1x256xf32> to vector<1x256xf32>
    %47 = vector.broadcast %46 : vector<1x256xf32> to vector<4x256xf32>
    %48 = arith.addf %44, %47 : vector<4x256xf32>
    %49 = vector.extract_strided_slice %48 {offsets = [0, 0], sizes = [4, 128], strides = [1, 1]} : vector<4x256xf32> to vector<4x128xf32>
    %50 = arith.negf %49 : vector<4x128xf32>
    %51 = math.exp %50 : vector<4x128xf32>
    %cst_20 = arith.constant 1.000000e+00 : f32
    %52 = vector.broadcast %cst_20 : f32 to vector<4x128xf32>
    %53 = arith.addf %52, %51 : vector<4x128xf32>
    %54 = arith.divf %52, %53 : vector<4x128xf32>
    %55 = vector.extract_strided_slice %48 {offsets = [0, 128], sizes = [4, 128], strides = [1, 1]} : vector<4x256xf32> to vector<4x128xf32>
    %56 = math.tanh %55 : vector<4x128xf32>
    %57 = arith.negf %55 : vector<4x128xf32>
    %58 = math.exp %57 : vector<4x128xf32>
    %cst_21 = arith.constant 1.000000e+00 : f32
    %59 = vector.broadcast %cst_21 : f32 to vector<4x128xf32>
    %60 = arith.addf %59, %58 : vector<4x128xf32>
    %61 = arith.divf %59, %60 : vector<4x128xf32>
    %62 = arith.select %2, %56, %61 : vector<4x128xi1>, vector<4x128xf32>
    %63 = vector.extract_strided_slice %54 {offsets = [0, 64], sizes = [4, 64], strides = [1, 1]} : vector<4x128xf32> to vector<4x64xf32>
    %64 = arith.mulf %63, %34 : vector<4x64xf32>
    %65 = vector.extract_strided_slice %54 {offsets = [0, 0], sizes = [4, 64], strides = [1, 1]} : vector<4x128xf32> to vector<4x64xf32>
    %66 = vector.extract_strided_slice %62 {offsets = [0, 0], sizes = [4, 64], strides = [1, 1]} : vector<4x128xf32> to vector<4x64xf32>
    %67 = arith.mulf %65, %66 : vector<4x64xf32>
    %68 = arith.addf %64, %67 : vector<4x64xf32>
    %69 = vector.extract_strided_slice %62 {offsets = [0, 64], sizes = [4, 64], strides = [1, 1]} : vector<4x128xf32> to vector<4x64xf32>
    %70 = math.tanh %68 : vector<4x64xf32>
    %71 = arith.mulf %69, %70 : vector<4x64xf32>
    %72 = arith.truncf %37 : vector<4x64xf32> to vector<4x64xbf16>
    %73 = arith.truncf %3 : vector<4x64xf32> to vector<4x64xbf16>
    %74 = tpu.concatenate %72, %73 in 1 : vector<4x64xbf16>, vector<4x64xbf16> -> vector<4x128xbf16>
    %c1_22 = arith.constant 1 : index
    %c0_23 = arith.constant 0 : index
    %c0_24 = arith.constant 0 : index
    %75 = vector.load %arg1[%c1_22, %c0_23, %c0_24] : memref<3x128x256xbf16, #tpu.memory_space<vmem>>, vector<1x128x256xbf16>
    %76 = vector.shape_cast %75 : vector<1x128x256xbf16> to vector<128x256xbf16>
    %cst_25 = arith.constant dense<0.000000e+00> : vector<4x256xf32>
    %77 = tpu.matmul %74, %76, %cst_25 {dimension_numbers = #tpu.dot_dimension_numbers<[1], [0], [0], [1], [0, 0, 1, 1], [], []>} : vector<4x128xbf16>, vector<128x256xbf16>, vector<4x256xf32> -> vector<4x256xf32>
    %c1_26 = arith.constant 1 : index
    %c0_27 = arith.constant 0 : index
    %c0_28 = arith.constant 0 : index
    %78 = vector.load %arg2[%c1_26, %c0_27, %c0_28] : memref<3x1x256xf32, #tpu.memory_space<vmem>>, vector<1x1x256xf32>
    %79 = vector.shape_cast %78 : vector<1x1x256xf32> to vector<1x256xf32>
    %80 = vector.broadcast %79 : vector<1x256xf32> to vector<4x256xf32>
    %81 = arith.addf %77, %80 : vector<4x256xf32>
    %82 = vector.extract_strided_slice %81 {offsets = [0, 0], sizes = [4, 128], strides = [1, 1]} : vector<4x256xf32> to vector<4x128xf32>
    %83 = arith.negf %82 : vector<4x128xf32>
    %84 = math.exp %83 : vector<4x128xf32>
    %cst_29 = arith.constant 1.000000e+00 : f32
    %85 = vector.broadcast %cst_29 : f32 to vector<4x128xf32>
    %86 = arith.addf %85, %84 : vector<4x128xf32>
    %87 = arith.divf %85, %86 : vector<4x128xf32>
    %88 = vector.extract_strided_slice %81 {offsets = [0, 128], sizes = [4, 128], strides = [1, 1]} : vector<4x256xf32> to vector<4x128xf32>
    %89 = math.tanh %88 : vector<4x128xf32>
    %90 = arith.negf %88 : vector<4x128xf32>
    %91 = math.exp %90 : vector<4x128xf32>
    %cst_30 = arith.constant 1.000000e+00 : f32
    %92 = vector.broadcast %cst_30 : f32 to vector<4x128xf32>
    %93 = arith.addf %92, %91 : vector<4x128xf32>
    %94 = arith.divf %92, %93 : vector<4x128xf32>
    %95 = arith.select %2, %89, %94 : vector<4x128xi1>, vector<4x128xf32>
    %96 = vector.extract_strided_slice %87 {offsets = [0, 64], sizes = [4, 64], strides = [1, 1]} : vector<4x128xf32> to vector<4x64xf32>
    %97 = arith.mulf %96, %3 : vector<4x64xf32>
    %98 = vector.extract_strided_slice %87 {offsets = [0, 0], sizes = [4, 64], strides = [1, 1]} : vector<4x128xf32> to vector<4x64xf32>
    %99 = vector.extract_strided_slice %95 {offsets = [0, 0], sizes = [4, 64], strides = [1, 1]} : vector<4x128xf32> to vector<4x64xf32>
    %100 = arith.mulf %98, %99 : vector<4x64xf32>
    %101 = arith.addf %97, %100 : vector<4x64xf32>
    %102 = vector.extract_strided_slice %95 {offsets = [0, 64], sizes = [4, 64], strides = [1, 1]} : vector<4x128xf32> to vector<4x64xf32>
    %103 = math.tanh %101 : vector<4x64xf32>
    %104 = arith.mulf %102, %103 : vector<4x64xf32>
    %c2 = arith.constant 2 : index
    %c0_31 = arith.constant 0 : index
    %c0_32 = arith.constant 0 : index
    %105 = vector.load %arg0[%c2, %c0_31, %c0_32] : memref<8x4x64xbf16, #tpu.memory_space<vmem>>, vector<1x4x64xbf16>
    %106 = vector.shape_cast %105 : vector<1x4x64xbf16> to vector<4x64xbf16>
    %107 = arith.truncf %71 : vector<4x64xf32> to vector<4x64xbf16>
    %108 = tpu.concatenate %106, %107 in 1 : vector<4x64xbf16>, vector<4x64xbf16> -> vector<4x128xbf16>
    %c0_33 = arith.constant 0 : index
    %c0_34 = arith.constant 0 : index
    %c0_35 = arith.constant 0 : index
    %109 = vector.load %arg1[%c0_33, %c0_34, %c0_35] : memref<3x128x256xbf16, #tpu.memory_space<vmem>>, vector<1x128x256xbf16>
    %110 = vector.shape_cast %109 : vector<1x128x256xbf16> to vector<128x256xbf16>
    %cst_36 = arith.constant dense<0.000000e+00> : vector<4x256xf32>
    %111 = tpu.matmul %108, %110, %cst_36 {dimension_numbers = #tpu.dot_dimension_numbers<[1], [0], [0], [1], [0, 0, 1, 1], [], []>} : vector<4x128xbf16>, vector<128x256xbf16>, vector<4x256xf32> -> vector<4x256xf32>
    %c0_37 = arith.constant 0 : index
    %c0_38 = arith.constant 0 : index
    %c0_39 = arith.constant 0 : index
    %112 = vector.load %arg2[%c0_37, %c0_38, %c0_39] : memref<3x1x256xf32, #tpu.memory_space<vmem>>, vector<1x1x256xf32>
    %113 = vector.shape_cast %112 : vector<1x1x256xf32> to vector<1x256xf32>
    %114 = vector.broadcast %113 : vector<1x256xf32> to vector<4x256xf32>
    %115 = arith.addf %111, %114 : vector<4x256xf32>
    %116 = vector.extract_strided_slice %115 {offsets = [0, 0], sizes = [4, 128], strides = [1, 1]} : vector<4x256xf32> to vector<4x128xf32>
    %117 = arith.negf %116 : vector<4x128xf32>
    %118 = math.exp %117 : vector<4x128xf32>
    %cst_40 = arith.constant 1.000000e+00 : f32
    %119 = vector.broadcast %cst_40 : f32 to vector<4x128xf32>
    %120 = arith.addf %119, %118 : vector<4x128xf32>
    %121 = arith.divf %119, %120 : vector<4x128xf32>
    %122 = vector.extract_strided_slice %115 {offsets = [0, 128], sizes = [4, 128], strides = [1, 1]} : vector<4x256xf32> to vector<4x128xf32>
    %123 = math.tanh %122 : vector<4x128xf32>
    %124 = arith.negf %122 : vector<4x128xf32>
    %125 = math.exp %124 : vector<4x128xf32>
    %cst_41 = arith.constant 1.000000e+00 : f32
    %126 = vector.broadcast %cst_41 : f32 to vector<4x128xf32>
    %127 = arith.addf %126, %125 : vector<4x128xf32>
    %128 = arith.divf %126, %127 : vector<4x128xf32>
    %129 = arith.select %2, %123, %128 : vector<4x128xi1>, vector<4x128xf32>
    %130 = vector.extract_strided_slice %121 {offsets = [0, 64], sizes = [4, 64], strides = [1, 1]} : vector<4x128xf32> to vector<4x64xf32>
    %131 = arith.mulf %130, %68 : vector<4x64xf32>
    %132 = vector.extract_strided_slice %121 {offsets = [0, 0], sizes = [4, 64], strides = [1, 1]} : vector<4x128xf32> to vector<4x64xf32>
    %133 = vector.extract_strided_slice %129 {offsets = [0, 0], sizes = [4, 64], strides = [1, 1]} : vector<4x128xf32> to vector<4x64xf32>
    %134 = arith.mulf %132, %133 : vector<4x64xf32>
    %135 = arith.addf %131, %134 : vector<4x64xf32>
    %136 = vector.extract_strided_slice %129 {offsets = [0, 64], sizes = [4, 64], strides = [1, 1]} : vector<4x128xf32> to vector<4x64xf32>
    %137 = math.tanh %135 : vector<4x64xf32>
    %138 = arith.mulf %136, %137 : vector<4x64xf32>
    %139 = arith.truncf %71 : vector<4x64xf32> to vector<4x64xbf16>
    %140 = arith.truncf %104 : vector<4x64xf32> to vector<4x64xbf16>
    %141 = tpu.concatenate %139, %140 in 1 : vector<4x64xbf16>, vector<4x64xbf16> -> vector<4x128xbf16>
    %c1_42 = arith.constant 1 : index
    %c0_43 = arith.constant 0 : index
    %c0_44 = arith.constant 0 : index
    %142 = vector.load %arg1[%c1_42, %c0_43, %c0_44] : memref<3x128x256xbf16, #tpu.memory_space<vmem>>, vector<1x128x256xbf16>
    %143 = vector.shape_cast %142 : vector<1x128x256xbf16> to vector<128x256xbf16>
    %cst_45 = arith.constant dense<0.000000e+00> : vector<4x256xf32>
    %144 = tpu.matmul %141, %143, %cst_45 {dimension_numbers = #tpu.dot_dimension_numbers<[1], [0], [0], [1], [0, 0, 1, 1], [], []>} : vector<4x128xbf16>, vector<128x256xbf16>, vector<4x256xf32> -> vector<4x256xf32>
    %c1_46 = arith.constant 1 : index
    %c0_47 = arith.constant 0 : index
    %c0_48 = arith.constant 0 : index
    %145 = vector.load %arg2[%c1_46, %c0_47, %c0_48] : memref<3x1x256xf32, #tpu.memory_space<vmem>>, vector<1x1x256xf32>
    %146 = vector.shape_cast %145 : vector<1x1x256xf32> to vector<1x256xf32>
    %147 = vector.broadcast %146 : vector<1x256xf32> to vector<4x256xf32>
    %148 = arith.addf %144, %147 : vector<4x256xf32>
    %149 = vector.extract_strided_slice %148 {offsets = [0, 0], sizes = [4, 128], strides = [1, 1]} : vector<4x256xf32> to vector<4x128xf32>
    %150 = arith.negf %149 : vector<4x128xf32>
    %151 = math.exp %150 : vector<4x128xf32>
    %cst_49 = arith.constant 1.000000e+00 : f32
    %152 = vector.broadcast %cst_49 : f32 to vector<4x128xf32>
    %153 = arith.addf %152, %151 : vector<4x128xf32>
    %154 = arith.divf %152, %153 : vector<4x128xf32>
    %155 = vector.extract_strided_slice %148 {offsets = [0, 128], sizes = [4, 128], strides = [1, 1]} : vector<4x256xf32> to vector<4x128xf32>
    %156 = math.tanh %155 : vector<4x128xf32>
    %157 = arith.negf %155 : vector<4x128xf32>
    %158 = math.exp %157 : vector<4x128xf32>
    %cst_50 = arith.constant 1.000000e+00 : f32
    %159 = vector.broadcast %cst_50 : f32 to vector<4x128xf32>
    %160 = arith.addf %159, %158 : vector<4x128xf32>
    %161 = arith.divf %159, %160 : vector<4x128xf32>
    %162 = arith.select %2, %156, %161 : vector<4x128xi1>, vector<4x128xf32>
    %163 = vector.extract_strided_slice %154 {offsets = [0, 64], sizes = [4, 64], strides = [1, 1]} : vector<4x128xf32> to vector<4x64xf32>
    %164 = arith.mulf %163, %101 : vector<4x64xf32>
    %165 = vector.extract_strided_slice %154 {offsets = [0, 0], sizes = [4, 64], strides = [1, 1]} : vector<4x128xf32> to vector<4x64xf32>
    %166 = vector.extract_strided_slice %162 {offsets = [0, 0], sizes = [4, 64], strides = [1, 1]} : vector<4x128xf32> to vector<4x64xf32>
    %167 = arith.mulf %165, %166 : vector<4x64xf32>
    %168 = arith.addf %164, %167 : vector<4x64xf32>
    %169 = vector.extract_strided_slice %162 {offsets = [0, 64], sizes = [4, 64], strides = [1, 1]} : vector<4x128xf32> to vector<4x64xf32>
    %170 = math.tanh %168 : vector<4x64xf32>
    %171 = arith.mulf %169, %170 : vector<4x64xf32>
    %172 = arith.truncf %104 : vector<4x64xf32> to vector<4x64xbf16>
    %173 = arith.truncf %3 : vector<4x64xf32> to vector<4x64xbf16>
    %174 = tpu.concatenate %172, %173 in 1 : vector<4x64xbf16>, vector<4x64xbf16> -> vector<4x128xbf16>
    %c2_51 = arith.constant 2 : index
    %c0_52 = arith.constant 0 : index
    %c0_53 = arith.constant 0 : index
    %175 = vector.load %arg1[%c2_51, %c0_52, %c0_53] : memref<3x128x256xbf16, #tpu.memory_space<vmem>>, vector<1x128x256xbf16>
    %176 = vector.shape_cast %175 : vector<1x128x256xbf16> to vector<128x256xbf16>
    %cst_54 = arith.constant dense<0.000000e+00> : vector<4x256xf32>
    %177 = tpu.matmul %174, %176, %cst_54 {dimension_numbers = #tpu.dot_dimension_numbers<[1], [0], [0], [1], [0, 0, 1, 1], [], []>} : vector<4x128xbf16>, vector<128x256xbf16>, vector<4x256xf32> -> vector<4x256xf32>
    %c2_55 = arith.constant 2 : index
    %c0_56 = arith.constant 0 : index
    %c0_57 = arith.constant 0 : index
    %178 = vector.load %arg2[%c2_55, %c0_56, %c0_57] : memref<3x1x256xf32, #tpu.memory_space<vmem>>, vector<1x1x256xf32>
    %179 = vector.shape_cast %178 : vector<1x1x256xf32> to vector<1x256xf32>
    %180 = vector.broadcast %179 : vector<1x256xf32> to vector<4x256xf32>
    %181 = arith.addf %177, %180 : vector<4x256xf32>
    %182 = vector.extract_strided_slice %181 {offsets = [0, 0], sizes = [4, 128], strides = [1, 1]} : vector<4x256xf32> to vector<4x128xf32>
    %183 = arith.negf %182 : vector<4x128xf32>
    %184 = math.exp %183 : vector<4x128xf32>
    %cst_58 = arith.constant 1.000000e+00 : f32
    %185 = vector.broadcast %cst_58 : f32 to vector<4x128xf32>
    %186 = arith.addf %185, %184 : vector<4x128xf32>
    %187 = arith.divf %185, %186 : vector<4x128xf32>
    %188 = vector.extract_strided_slice %181 {offsets = [0, 128], sizes = [4, 128], strides = [1, 1]} : vector<4x256xf32> to vector<4x128xf32>
    %189 = math.tanh %188 : vector<4x128xf32>
    %190 = arith.negf %188 : vector<4x128xf32>
    %191 = math.exp %190 : vector<4x128xf32>
    %cst_59 = arith.constant 1.000000e+00 : f32
    %192 = vector.broadcast %cst_59 : f32 to vector<4x128xf32>
    %193 = arith.addf %192, %191 : vector<4x128xf32>
    %194 = arith.divf %192, %193 : vector<4x128xf32>
    %195 = arith.select %2, %189, %194 : vector<4x128xi1>, vector<4x128xf32>
    %196 = vector.extract_strided_slice %187 {offsets = [0, 64], sizes = [4, 64], strides = [1, 1]} : vector<4x128xf32> to vector<4x64xf32>
    %197 = arith.mulf %196, %3 : vector<4x64xf32>
    %198 = vector.extract_strided_slice %187 {offsets = [0, 0], sizes = [4, 64], strides = [1, 1]} : vector<4x128xf32> to vector<4x64xf32>
    %199 = vector.extract_strided_slice %195 {offsets = [0, 0], sizes = [4, 64], strides = [1, 1]} : vector<4x128xf32> to vector<4x64xf32>
    %200 = arith.mulf %198, %199 : vector<4x64xf32>
    %201 = arith.addf %197, %200 : vector<4x64xf32>
    %202 = vector.extract_strided_slice %195 {offsets = [0, 64], sizes = [4, 64], strides = [1, 1]} : vector<4x128xf32> to vector<4x64xf32>
    %203 = math.tanh %201 : vector<4x64xf32>
    %204 = arith.mulf %202, %203 : vector<4x64xf32>
    %c3 = arith.constant 3 : index
    %c0_60 = arith.constant 0 : index
    %c0_61 = arith.constant 0 : index
    %205 = vector.load %arg0[%c3, %c0_60, %c0_61] : memref<8x4x64xbf16, #tpu.memory_space<vmem>>, vector<1x4x64xbf16>
    %206 = vector.shape_cast %205 : vector<1x4x64xbf16> to vector<4x64xbf16>
    %207 = arith.truncf %138 : vector<4x64xf32> to vector<4x64xbf16>
    %208 = tpu.concatenate %206, %207 in 1 : vector<4x64xbf16>, vector<4x64xbf16> -> vector<4x128xbf16>
    %c0_62 = arith.constant 0 : index
    %c0_63 = arith.constant 0 : index
    %c0_64 = arith.constant 0 : index
    %209 = vector.load %arg1[%c0_62, %c0_63, %c0_64] : memref<3x128x256xbf16, #tpu.memory_space<vmem>>, vector<1x128x256xbf16>
    %210 = vector.shape_cast %209 : vector<1x128x256xbf16> to vector<128x256xbf16>
    %cst_65 = arith.constant dense<0.000000e+00> : vector<4x256xf32>
    %211 = tpu.matmul %208, %210, %cst_65 {dimension_numbers = #tpu.dot_dimension_numbers<[1], [0], [0], [1], [0, 0, 1, 1], [], []>} : vector<4x128xbf16>, vector<128x256xbf16>, vector<4x256xf32> -> vector<4x256xf32>
    %c0_66 = arith.constant 0 : index
    %c0_67 = arith.constant 0 : index
    %c0_68 = arith.constant 0 : index
    %212 = vector.load %arg2[%c0_66, %c0_67, %c0_68] : memref<3x1x256xf32, #tpu.memory_space<vmem>>, vector<1x1x256xf32>
    %213 = vector.shape_cast %212 : vector<1x1x256xf32> to vector<1x256xf32>
    %214 = vector.broadcast %213 : vector<1x256xf32> to vector<4x256xf32>
    %215 = arith.addf %211, %214 : vector<4x256xf32>
    %216 = vector.extract_strided_slice %215 {offsets = [0, 0], sizes = [4, 128], strides = [1, 1]} : vector<4x256xf32> to vector<4x128xf32>
    %217 = arith.negf %216 : vector<4x128xf32>
    %218 = math.exp %217 : vector<4x128xf32>
    %cst_69 = arith.constant 1.000000e+00 : f32
    %219 = vector.broadcast %cst_69 : f32 to vector<4x128xf32>
    %220 = arith.addf %219, %218 : vector<4x128xf32>
    %221 = arith.divf %219, %220 : vector<4x128xf32>
    %222 = vector.extract_strided_slice %215 {offsets = [0, 128], sizes = [4, 128], strides = [1, 1]} : vector<4x256xf32> to vector<4x128xf32>
    %223 = math.tanh %222 : vector<4x128xf32>
    %224 = arith.negf %222 : vector<4x128xf32>
    %225 = math.exp %224 : vector<4x128xf32>
    %cst_70 = arith.constant 1.000000e+00 : f32
    %226 = vector.broadcast %cst_70 : f32 to vector<4x128xf32>
    %227 = arith.addf %226, %225 : vector<4x128xf32>
    %228 = arith.divf %226, %227 : vector<4x128xf32>
    %229 = arith.select %2, %223, %228 : vector<4x128xi1>, vector<4x128xf32>
    %230 = vector.extract_strided_slice %221 {offsets = [0, 64], sizes = [4, 64], strides = [1, 1]} : vector<4x128xf32> to vector<4x64xf32>
    %231 = arith.mulf %230, %135 : vector<4x64xf32>
    %232 = vector.extract_strided_slice %221 {offsets = [0, 0], sizes = [4, 64], strides = [1, 1]} : vector<4x128xf32> to vector<4x64xf32>
    %233 = vector.extract_strided_slice %229 {offsets = [0, 0], sizes = [4, 64], strides = [1, 1]} : vector<4x128xf32> to vector<4x64xf32>
    %234 = arith.mulf %232, %233 : vector<4x64xf32>
    %235 = arith.addf %231, %234 : vector<4x64xf32>
    %236 = vector.extract_strided_slice %229 {offsets = [0, 64], sizes = [4, 64], strides = [1, 1]} : vector<4x128xf32> to vector<4x64xf32>
    %237 = math.tanh %235 : vector<4x64xf32>
    %238 = arith.mulf %236, %237 : vector<4x64xf32>
    %239 = arith.truncf %138 : vector<4x64xf32> to vector<4x64xbf16>
    %240 = arith.truncf %171 : vector<4x64xf32> to vector<4x64xbf16>
    %241 = tpu.concatenate %239, %240 in 1 : vector<4x64xbf16>, vector<4x64xbf16> -> vector<4x128xbf16>
    %c1_71 = arith.constant 1 : index
    %c0_72 = arith.constant 0 : index
    %c0_73 = arith.constant 0 : index
    %242 = vector.load %arg1[%c1_71, %c0_72, %c0_73] : memref<3x128x256xbf16, #tpu.memory_space<vmem>>, vector<1x128x256xbf16>
    %243 = vector.shape_cast %242 : vector<1x128x256xbf16> to vector<128x256xbf16>
    %cst_74 = arith.constant dense<0.000000e+00> : vector<4x256xf32>
    %244 = tpu.matmul %241, %243, %cst_74 {dimension_numbers = #tpu.dot_dimension_numbers<[1], [0], [0], [1], [0, 0, 1, 1], [], []>} : vector<4x128xbf16>, vector<128x256xbf16>, vector<4x256xf32> -> vector<4x256xf32>
    %c1_75 = arith.constant 1 : index
    %c0_76 = arith.constant 0 : index
    %c0_77 = arith.constant 0 : index
    %245 = vector.load %arg2[%c1_75, %c0_76, %c0_77] : memref<3x1x256xf32, #tpu.memory_space<vmem>>, vector<1x1x256xf32>
    %246 = vector.shape_cast %245 : vector<1x1x256xf32> to vector<1x256xf32>
    %247 = vector.broadcast %246 : vector<1x256xf32> to vector<4x256xf32>
    %248 = arith.addf %244, %247 : vector<4x256xf32>
    %249 = vector.extract_strided_slice %248 {offsets = [0, 0], sizes = [4, 128], strides = [1, 1]} : vector<4x256xf32> to vector<4x128xf32>
    %250 = arith.negf %249 : vector<4x128xf32>
    %251 = math.exp %250 : vector<4x128xf32>
    %cst_78 = arith.constant 1.000000e+00 : f32
    %252 = vector.broadcast %cst_78 : f32 to vector<4x128xf32>
    %253 = arith.addf %252, %251 : vector<4x128xf32>
    %254 = arith.divf %252, %253 : vector<4x128xf32>
    %255 = vector.extract_strided_slice %248 {offsets = [0, 128], sizes = [4, 128], strides = [1, 1]} : vector<4x256xf32> to vector<4x128xf32>
    %256 = math.tanh %255 : vector<4x128xf32>
    %257 = arith.negf %255 : vector<4x128xf32>
    %258 = math.exp %257 : vector<4x128xf32>
    %cst_79 = arith.constant 1.000000e+00 : f32
    %259 = vector.broadcast %cst_79 : f32 to vector<4x128xf32>
    %260 = arith.addf %259, %258 : vector<4x128xf32>
    %261 = arith.divf %259, %260 : vector<4x128xf32>
    %262 = arith.select %2, %256, %261 : vector<4x128xi1>, vector<4x128xf32>
    %263 = vector.extract_strided_slice %254 {offsets = [0, 64], sizes = [4, 64], strides = [1, 1]} : vector<4x128xf32> to vector<4x64xf32>
    %264 = arith.mulf %263, %168 : vector<4x64xf32>
    %265 = vector.extract_strided_slice %254 {offsets = [0, 0], sizes = [4, 64], strides = [1, 1]} : vector<4x128xf32> to vector<4x64xf32>
    %266 = vector.extract_strided_slice %262 {offsets = [0, 0], sizes = [4, 64], strides = [1, 1]} : vector<4x128xf32> to vector<4x64xf32>
    %267 = arith.mulf %265, %266 : vector<4x64xf32>
    %268 = arith.addf %264, %267 : vector<4x64xf32>
    %269 = vector.extract_strided_slice %262 {offsets = [0, 64], sizes = [4, 64], strides = [1, 1]} : vector<4x128xf32> to vector<4x64xf32>
    %270 = math.tanh %268 : vector<4x64xf32>
    %271 = arith.mulf %269, %270 : vector<4x64xf32>
    %272 = arith.truncf %171 : vector<4x64xf32> to vector<4x64xbf16>
    %273 = arith.truncf %204 : vector<4x64xf32> to vector<4x64xbf16>
    %274 = tpu.concatenate %272, %273 in 1 : vector<4x64xbf16>, vector<4x64xbf16> -> vector<4x128xbf16>
    %c2_80 = arith.constant 2 : index
    %c0_81 = arith.constant 0 : index
    %c0_82 = arith.constant 0 : index
    %275 = vector.load %arg1[%c2_80, %c0_81, %c0_82] : memref<3x128x256xbf16, #tpu.memory_space<vmem>>, vector<1x128x256xbf16>
    %276 = vector.shape_cast %275 : vector<1x128x256xbf16> to vector<128x256xbf16>
    %cst_83 = arith.constant dense<0.000000e+00> : vector<4x256xf32>
    %277 = tpu.matmul %274, %276, %cst_83 {dimension_numbers = #tpu.dot_dimension_numbers<[1], [0], [0], [1], [0, 0, 1, 1], [], []>} : vector<4x128xbf16>, vector<128x256xbf16>, vector<4x256xf32> -> vector<4x256xf32>
    %c2_84 = arith.constant 2 : index
    %c0_85 = arith.constant 0 : index
    %c0_86 = arith.constant 0 : index
    %278 = vector.load %arg2[%c2_84, %c0_85, %c0_86] : memref<3x1x256xf32, #tpu.memory_space<vmem>>, vector<1x1x256xf32>
    %279 = vector.shape_cast %278 : vector<1x1x256xf32> to vector<1x256xf32>
    %280 = vector.broadcast %279 : vector<1x256xf32> to vector<4x256xf32>
    %281 = arith.addf %277, %280 : vector<4x256xf32>
    %282 = vector.extract_strided_slice %281 {offsets = [0, 0], sizes = [4, 128], strides = [1, 1]} : vector<4x256xf32> to vector<4x128xf32>
    %283 = arith.negf %282 : vector<4x128xf32>
    %284 = math.exp %283 : vector<4x128xf32>
    %cst_87 = arith.constant 1.000000e+00 : f32
    %285 = vector.broadcast %cst_87 : f32 to vector<4x128xf32>
    %286 = arith.addf %285, %284 : vector<4x128xf32>
    %287 = arith.divf %285, %286 : vector<4x128xf32>
    %288 = vector.extract_strided_slice %281 {offsets = [0, 128], sizes = [4, 128], strides = [1, 1]} : vector<4x256xf32> to vector<4x128xf32>
    %289 = math.tanh %288 : vector<4x128xf32>
    %290 = arith.negf %288 : vector<4x128xf32>
    %291 = math.exp %290 : vector<4x128xf32>
    %cst_88 = arith.constant 1.000000e+00 : f32
    %292 = vector.broadcast %cst_88 : f32 to vector<4x128xf32>
    %293 = arith.addf %292, %291 : vector<4x128xf32>
    %294 = arith.divf %292, %293 : vector<4x128xf32>
    %295 = arith.select %2, %289, %294 : vector<4x128xi1>, vector<4x128xf32>
    %296 = vector.extract_strided_slice %287 {offsets = [0, 64], sizes = [4, 64], strides = [1, 1]} : vector<4x128xf32> to vector<4x64xf32>
    %297 = arith.mulf %296, %201 : vector<4x64xf32>
    %298 = vector.extract_strided_slice %287 {offsets = [0, 0], sizes = [4, 64], strides = [1, 1]} : vector<4x128xf32> to vector<4x64xf32>
    %299 = vector.extract_strided_slice %295 {offsets = [0, 0], sizes = [4, 64], strides = [1, 1]} : vector<4x128xf32> to vector<4x64xf32>
    %300 = arith.mulf %298, %299 : vector<4x64xf32>
    %301 = arith.addf %297, %300 : vector<4x64xf32>
    %302 = vector.extract_strided_slice %295 {offsets = [0, 64], sizes = [4, 64], strides = [1, 1]} : vector<4x128xf32> to vector<4x64xf32>
    %303 = math.tanh %301 : vector<4x64xf32>
    %304 = arith.mulf %302, %303 : vector<4x64xf32>
    %c4 = arith.constant 4 : index
    %c0_89 = arith.constant 0 : index
    %c0_90 = arith.constant 0 : index
    %305 = vector.load %arg0[%c4, %c0_89, %c0_90] : memref<8x4x64xbf16, #tpu.memory_space<vmem>>, vector<1x4x64xbf16>
    %306 = vector.shape_cast %305 : vector<1x4x64xbf16> to vector<4x64xbf16>
    %307 = arith.truncf %238 : vector<4x64xf32> to vector<4x64xbf16>
    %308 = tpu.concatenate %306, %307 in 1 : vector<4x64xbf16>, vector<4x64xbf16> -> vector<4x128xbf16>
    %c0_91 = arith.constant 0 : index
    %c0_92 = arith.constant 0 : index
    %c0_93 = arith.constant 0 : index
    %309 = vector.load %arg1[%c0_91, %c0_92, %c0_93] : memref<3x128x256xbf16, #tpu.memory_space<vmem>>, vector<1x128x256xbf16>
    %310 = vector.shape_cast %309 : vector<1x128x256xbf16> to vector<128x256xbf16>
    %cst_94 = arith.constant dense<0.000000e+00> : vector<4x256xf32>
    %311 = tpu.matmul %308, %310, %cst_94 {dimension_numbers = #tpu.dot_dimension_numbers<[1], [0], [0], [1], [0, 0, 1, 1], [], []>} : vector<4x128xbf16>, vector<128x256xbf16>, vector<4x256xf32> -> vector<4x256xf32>
    %c0_95 = arith.constant 0 : index
    %c0_96 = arith.constant 0 : index
    %c0_97 = arith.constant 0 : index
    %312 = vector.load %arg2[%c0_95, %c0_96, %c0_97] : memref<3x1x256xf32, #tpu.memory_space<vmem>>, vector<1x1x256xf32>
    %313 = vector.shape_cast %312 : vector<1x1x256xf32> to vector<1x256xf32>
    %314 = vector.broadcast %313 : vector<1x256xf32> to vector<4x256xf32>
    %315 = arith.addf %311, %314 : vector<4x256xf32>
    %316 = vector.extract_strided_slice %315 {offsets = [0, 0], sizes = [4, 128], strides = [1, 1]} : vector<4x256xf32> to vector<4x128xf32>
    %317 = arith.negf %316 : vector<4x128xf32>
    %318 = math.exp %317 : vector<4x128xf32>
    %cst_98 = arith.constant 1.000000e+00 : f32
    %319 = vector.broadcast %cst_98 : f32 to vector<4x128xf32>
    %320 = arith.addf %319, %318 : vector<4x128xf32>
    %321 = arith.divf %319, %320 : vector<4x128xf32>
    %322 = vector.extract_strided_slice %315 {offsets = [0, 128], sizes = [4, 128], strides = [1, 1]} : vector<4x256xf32> to vector<4x128xf32>
    %323 = math.tanh %322 : vector<4x128xf32>
    %324 = arith.negf %322 : vector<4x128xf32>
    %325 = math.exp %324 : vector<4x128xf32>
    %cst_99 = arith.constant 1.000000e+00 : f32
    %326 = vector.broadcast %cst_99 : f32 to vector<4x128xf32>
    %327 = arith.addf %326, %325 : vector<4x128xf32>
    %328 = arith.divf %326, %327 : vector<4x128xf32>
    %329 = arith.select %2, %323, %328 : vector<4x128xi1>, vector<4x128xf32>
    %330 = vector.extract_strided_slice %321 {offsets = [0, 64], sizes = [4, 64], strides = [1, 1]} : vector<4x128xf32> to vector<4x64xf32>
    %331 = arith.mulf %330, %235 : vector<4x64xf32>
    %332 = vector.extract_strided_slice %321 {offsets = [0, 0], sizes = [4, 64], strides = [1, 1]} : vector<4x128xf32> to vector<4x64xf32>
    %333 = vector.extract_strided_slice %329 {offsets = [0, 0], sizes = [4, 64], strides = [1, 1]} : vector<4x128xf32> to vector<4x64xf32>
    %334 = arith.mulf %332, %333 : vector<4x64xf32>
    %335 = arith.addf %331, %334 : vector<4x64xf32>
    %336 = vector.extract_strided_slice %329 {offsets = [0, 64], sizes = [4, 64], strides = [1, 1]} : vector<4x128xf32> to vector<4x64xf32>
    %337 = math.tanh %335 : vector<4x64xf32>
    %338 = arith.mulf %336, %337 : vector<4x64xf32>
    %339 = arith.truncf %238 : vector<4x64xf32> to vector<4x64xbf16>
    %340 = arith.truncf %271 : vector<4x64xf32> to vector<4x64xbf16>
    %341 = tpu.concatenate %339, %340 in 1 : vector<4x64xbf16>, vector<4x64xbf16> -> vector<4x128xbf16>
    %c1_100 = arith.constant 1 : index
    %c0_101 = arith.constant 0 : index
    %c0_102 = arith.constant 0 : index
    %342 = vector.load %arg1[%c1_100, %c0_101, %c0_102] : memref<3x128x256xbf16, #tpu.memory_space<vmem>>, vector<1x128x256xbf16>
    %343 = vector.shape_cast %342 : vector<1x128x256xbf16> to vector<128x256xbf16>
    %cst_103 = arith.constant dense<0.000000e+00> : vector<4x256xf32>
    %344 = tpu.matmul %341, %343, %cst_103 {dimension_numbers = #tpu.dot_dimension_numbers<[1], [0], [0], [1], [0, 0, 1, 1], [], []>} : vector<4x128xbf16>, vector<128x256xbf16>, vector<4x256xf32> -> vector<4x256xf32>
    %c1_104 = arith.constant 1 : index
    %c0_105 = arith.constant 0 : index
    %c0_106 = arith.constant 0 : index
    %345 = vector.load %arg2[%c1_104, %c0_105, %c0_106] : memref<3x1x256xf32, #tpu.memory_space<vmem>>, vector<1x1x256xf32>
    %346 = vector.shape_cast %345 : vector<1x1x256xf32> to vector<1x256xf32>
    %347 = vector.broadcast %346 : vector<1x256xf32> to vector<4x256xf32>
    %348 = arith.addf %344, %347 : vector<4x256xf32>
    %349 = vector.extract_strided_slice %348 {offsets = [0, 0], sizes = [4, 128], strides = [1, 1]} : vector<4x256xf32> to vector<4x128xf32>
    %350 = arith.negf %349 : vector<4x128xf32>
    %351 = math.exp %350 : vector<4x128xf32>
    %cst_107 = arith.constant 1.000000e+00 : f32
    %352 = vector.broadcast %cst_107 : f32 to vector<4x128xf32>
    %353 = arith.addf %352, %351 : vector<4x128xf32>
    %354 = arith.divf %352, %353 : vector<4x128xf32>
    %355 = vector.extract_strided_slice %348 {offsets = [0, 128], sizes = [4, 128], strides = [1, 1]} : vector<4x256xf32> to vector<4x128xf32>
    %356 = math.tanh %355 : vector<4x128xf32>
    %357 = arith.negf %355 : vector<4x128xf32>
    %358 = math.exp %357 : vector<4x128xf32>
    %cst_108 = arith.constant 1.000000e+00 : f32
    %359 = vector.broadcast %cst_108 : f32 to vector<4x128xf32>
    %360 = arith.addf %359, %358 : vector<4x128xf32>
    %361 = arith.divf %359, %360 : vector<4x128xf32>
    %362 = arith.select %2, %356, %361 : vector<4x128xi1>, vector<4x128xf32>
    %363 = vector.extract_strided_slice %354 {offsets = [0, 64], sizes = [4, 64], strides = [1, 1]} : vector<4x128xf32> to vector<4x64xf32>
    %364 = arith.mulf %363, %268 : vector<4x64xf32>
    %365 = vector.extract_strided_slice %354 {offsets = [0, 0], sizes = [4, 64], strides = [1, 1]} : vector<4x128xf32> to vector<4x64xf32>
    %366 = vector.extract_strided_slice %362 {offsets = [0, 0], sizes = [4, 64], strides = [1, 1]} : vector<4x128xf32> to vector<4x64xf32>
    %367 = arith.mulf %365, %366 : vector<4x64xf32>
    %368 = arith.addf %364, %367 : vector<4x64xf32>
    %369 = vector.extract_strided_slice %362 {offsets = [0, 64], sizes = [4, 64], strides = [1, 1]} : vector<4x128xf32> to vector<4x64xf32>
    %370 = math.tanh %368 : vector<4x64xf32>
    %371 = arith.mulf %369, %370 : vector<4x64xf32>
    %372 = arith.truncf %271 : vector<4x64xf32> to vector<4x64xbf16>
    %373 = arith.truncf %304 : vector<4x64xf32> to vector<4x64xbf16>
    %374 = tpu.concatenate %372, %373 in 1 : vector<4x64xbf16>, vector<4x64xbf16> -> vector<4x128xbf16>
    %c2_109 = arith.constant 2 : index
    %c0_110 = arith.constant 0 : index
    %c0_111 = arith.constant 0 : index
    %375 = vector.load %arg1[%c2_109, %c0_110, %c0_111] : memref<3x128x256xbf16, #tpu.memory_space<vmem>>, vector<1x128x256xbf16>
    %376 = vector.shape_cast %375 : vector<1x128x256xbf16> to vector<128x256xbf16>
    %cst_112 = arith.constant dense<0.000000e+00> : vector<4x256xf32>
    %377 = tpu.matmul %374, %376, %cst_112 {dimension_numbers = #tpu.dot_dimension_numbers<[1], [0], [0], [1], [0, 0, 1, 1], [], []>} : vector<4x128xbf16>, vector<128x256xbf16>, vector<4x256xf32> -> vector<4x256xf32>
    %c2_113 = arith.constant 2 : index
    %c0_114 = arith.constant 0 : index
    %c0_115 = arith.constant 0 : index
    %378 = vector.load %arg2[%c2_113, %c0_114, %c0_115] : memref<3x1x256xf32, #tpu.memory_space<vmem>>, vector<1x1x256xf32>
    %379 = vector.shape_cast %378 : vector<1x1x256xf32> to vector<1x256xf32>
    %380 = vector.broadcast %379 : vector<1x256xf32> to vector<4x256xf32>
    %381 = arith.addf %377, %380 : vector<4x256xf32>
    %382 = vector.extract_strided_slice %381 {offsets = [0, 0], sizes = [4, 128], strides = [1, 1]} : vector<4x256xf32> to vector<4x128xf32>
    %383 = arith.negf %382 : vector<4x128xf32>
    %384 = math.exp %383 : vector<4x128xf32>
    %cst_116 = arith.constant 1.000000e+00 : f32
    %385 = vector.broadcast %cst_116 : f32 to vector<4x128xf32>
    %386 = arith.addf %385, %384 : vector<4x128xf32>
    %387 = arith.divf %385, %386 : vector<4x128xf32>
    %388 = vector.extract_strided_slice %381 {offsets = [0, 128], sizes = [4, 128], strides = [1, 1]} : vector<4x256xf32> to vector<4x128xf32>
    %389 = math.tanh %388 : vector<4x128xf32>
    %390 = arith.negf %388 : vector<4x128xf32>
    %391 = math.exp %390 : vector<4x128xf32>
    %cst_117 = arith.constant 1.000000e+00 : f32
    %392 = vector.broadcast %cst_117 : f32 to vector<4x128xf32>
    %393 = arith.addf %392, %391 : vector<4x128xf32>
    %394 = arith.divf %392, %393 : vector<4x128xf32>
    %395 = arith.select %2, %389, %394 : vector<4x128xi1>, vector<4x128xf32>
    %396 = vector.extract_strided_slice %387 {offsets = [0, 64], sizes = [4, 64], strides = [1, 1]} : vector<4x128xf32> to vector<4x64xf32>
    %397 = arith.mulf %396, %301 : vector<4x64xf32>
    %398 = vector.extract_strided_slice %387 {offsets = [0, 0], sizes = [4, 64], strides = [1, 1]} : vector<4x128xf32> to vector<4x64xf32>
    %399 = vector.extract_strided_slice %395 {offsets = [0, 0], sizes = [4, 64], strides = [1, 1]} : vector<4x128xf32> to vector<4x64xf32>
    %400 = arith.mulf %398, %399 : vector<4x64xf32>
    %401 = arith.addf %397, %400 : vector<4x64xf32>
    %402 = vector.extract_strided_slice %395 {offsets = [0, 64], sizes = [4, 64], strides = [1, 1]} : vector<4x128xf32> to vector<4x64xf32>
    %403 = math.tanh %401 : vector<4x64xf32>
    %404 = arith.mulf %402, %403 : vector<4x64xf32>
    %c5 = arith.constant 5 : index
    %c0_118 = arith.constant 0 : index
    %c0_119 = arith.constant 0 : index
    %405 = vector.load %arg0[%c5, %c0_118, %c0_119] : memref<8x4x64xbf16, #tpu.memory_space<vmem>>, vector<1x4x64xbf16>
    %406 = vector.shape_cast %405 : vector<1x4x64xbf16> to vector<4x64xbf16>
    %407 = arith.truncf %338 : vector<4x64xf32> to vector<4x64xbf16>
    %408 = tpu.concatenate %406, %407 in 1 : vector<4x64xbf16>, vector<4x64xbf16> -> vector<4x128xbf16>
    %c0_120 = arith.constant 0 : index
    %c0_121 = arith.constant 0 : index
    %c0_122 = arith.constant 0 : index
    %409 = vector.load %arg1[%c0_120, %c0_121, %c0_122] : memref<3x128x256xbf16, #tpu.memory_space<vmem>>, vector<1x128x256xbf16>
    %410 = vector.shape_cast %409 : vector<1x128x256xbf16> to vector<128x256xbf16>
    %cst_123 = arith.constant dense<0.000000e+00> : vector<4x256xf32>
    %411 = tpu.matmul %408, %410, %cst_123 {dimension_numbers = #tpu.dot_dimension_numbers<[1], [0], [0], [1], [0, 0, 1, 1], [], []>} : vector<4x128xbf16>, vector<128x256xbf16>, vector<4x256xf32> -> vector<4x256xf32>
    %c0_124 = arith.constant 0 : index
    %c0_125 = arith.constant 0 : index
    %c0_126 = arith.constant 0 : index
    %412 = vector.load %arg2[%c0_124, %c0_125, %c0_126] : memref<3x1x256xf32, #tpu.memory_space<vmem>>, vector<1x1x256xf32>
    %413 = vector.shape_cast %412 : vector<1x1x256xf32> to vector<1x256xf32>
    %414 = vector.broadcast %413 : vector<1x256xf32> to vector<4x256xf32>
    %415 = arith.addf %411, %414 : vector<4x256xf32>
    %416 = vector.extract_strided_slice %415 {offsets = [0, 0], sizes = [4, 128], strides = [1, 1]} : vector<4x256xf32> to vector<4x128xf32>
    %417 = arith.negf %416 : vector<4x128xf32>
    %418 = math.exp %417 : vector<4x128xf32>
    %cst_127 = arith.constant 1.000000e+00 : f32
    %419 = vector.broadcast %cst_127 : f32 to vector<4x128xf32>
    %420 = arith.addf %419, %418 : vector<4x128xf32>
    %421 = arith.divf %419, %420 : vector<4x128xf32>
    %422 = vector.extract_strided_slice %415 {offsets = [0, 128], sizes = [4, 128], strides = [1, 1]} : vector<4x256xf32> to vector<4x128xf32>
    %423 = math.tanh %422 : vector<4x128xf32>
    %424 = arith.negf %422 : vector<4x128xf32>
    %425 = math.exp %424 : vector<4x128xf32>
    %cst_128 = arith.constant 1.000000e+00 : f32
    %426 = vector.broadcast %cst_128 : f32 to vector<4x128xf32>
    %427 = arith.addf %426, %425 : vector<4x128xf32>
    %428 = arith.divf %426, %427 : vector<4x128xf32>
    %429 = arith.select %2, %423, %428 : vector<4x128xi1>, vector<4x128xf32>
    %430 = vector.extract_strided_slice %421 {offsets = [0, 64], sizes = [4, 64], strides = [1, 1]} : vector<4x128xf32> to vector<4x64xf32>
    %431 = arith.mulf %430, %335 : vector<4x64xf32>
    %432 = vector.extract_strided_slice %421 {offsets = [0, 0], sizes = [4, 64], strides = [1, 1]} : vector<4x128xf32> to vector<4x64xf32>
    %433 = vector.extract_strided_slice %429 {offsets = [0, 0], sizes = [4, 64], strides = [1, 1]} : vector<4x128xf32> to vector<4x64xf32>
    %434 = arith.mulf %432, %433 : vector<4x64xf32>
    %435 = arith.addf %431, %434 : vector<4x64xf32>
    %436 = vector.extract_strided_slice %429 {offsets = [0, 64], sizes = [4, 64], strides = [1, 1]} : vector<4x128xf32> to vector<4x64xf32>
    %437 = math.tanh %435 : vector<4x64xf32>
    %438 = arith.mulf %436, %437 : vector<4x64xf32>
    %439 = arith.truncf %338 : vector<4x64xf32> to vector<4x64xbf16>
    %440 = arith.truncf %371 : vector<4x64xf32> to vector<4x64xbf16>
    %441 = tpu.concatenate %439, %440 in 1 : vector<4x64xbf16>, vector<4x64xbf16> -> vector<4x128xbf16>
    %c1_129 = arith.constant 1 : index
    %c0_130 = arith.constant 0 : index
    %c0_131 = arith.constant 0 : index
    %442 = vector.load %arg1[%c1_129, %c0_130, %c0_131] : memref<3x128x256xbf16, #tpu.memory_space<vmem>>, vector<1x128x256xbf16>
    %443 = vector.shape_cast %442 : vector<1x128x256xbf16> to vector<128x256xbf16>
    %cst_132 = arith.constant dense<0.000000e+00> : vector<4x256xf32>
    %444 = tpu.matmul %441, %443, %cst_132 {dimension_numbers = #tpu.dot_dimension_numbers<[1], [0], [0], [1], [0, 0, 1, 1], [], []>} : vector<4x128xbf16>, vector<128x256xbf16>, vector<4x256xf32> -> vector<4x256xf32>
    %c1_133 = arith.constant 1 : index
    %c0_134 = arith.constant 0 : index
    %c0_135 = arith.constant 0 : index
    %445 = vector.load %arg2[%c1_133, %c0_134, %c0_135] : memref<3x1x256xf32, #tpu.memory_space<vmem>>, vector<1x1x256xf32>
    %446 = vector.shape_cast %445 : vector<1x1x256xf32> to vector<1x256xf32>
    %447 = vector.broadcast %446 : vector<1x256xf32> to vector<4x256xf32>
    %448 = arith.addf %444, %447 : vector<4x256xf32>
    %449 = vector.extract_strided_slice %448 {offsets = [0, 0], sizes = [4, 128], strides = [1, 1]} : vector<4x256xf32> to vector<4x128xf32>
    %450 = arith.negf %449 : vector<4x128xf32>
    %451 = math.exp %450 : vector<4x128xf32>
    %cst_136 = arith.constant 1.000000e+00 : f32
    %452 = vector.broadcast %cst_136 : f32 to vector<4x128xf32>
    %453 = arith.addf %452, %451 : vector<4x128xf32>
    %454 = arith.divf %452, %453 : vector<4x128xf32>
    %455 = vector.extract_strided_slice %448 {offsets = [0, 128], sizes = [4, 128], strides = [1, 1]} : vector<4x256xf32> to vector<4x128xf32>
    %456 = math.tanh %455 : vector<4x128xf32>
    %457 = arith.negf %455 : vector<4x128xf32>
    %458 = math.exp %457 : vector<4x128xf32>
    %cst_137 = arith.constant 1.000000e+00 : f32
    %459 = vector.broadcast %cst_137 : f32 to vector<4x128xf32>
    %460 = arith.addf %459, %458 : vector<4x128xf32>
    %461 = arith.divf %459, %460 : vector<4x128xf32>
    %462 = arith.select %2, %456, %461 : vector<4x128xi1>, vector<4x128xf32>
    %463 = vector.extract_strided_slice %454 {offsets = [0, 64], sizes = [4, 64], strides = [1, 1]} : vector<4x128xf32> to vector<4x64xf32>
    %464 = arith.mulf %463, %368 : vector<4x64xf32>
    %465 = vector.extract_strided_slice %454 {offsets = [0, 0], sizes = [4, 64], strides = [1, 1]} : vector<4x128xf32> to vector<4x64xf32>
    %466 = vector.extract_strided_slice %462 {offsets = [0, 0], sizes = [4, 64], strides = [1, 1]} : vector<4x128xf32> to vector<4x64xf32>
    %467 = arith.mulf %465, %466 : vector<4x64xf32>
    %468 = arith.addf %464, %467 : vector<4x64xf32>
    %469 = vector.extract_strided_slice %462 {offsets = [0, 64], sizes = [4, 64], strides = [1, 1]} : vector<4x128xf32> to vector<4x64xf32>
    %470 = math.tanh %468 : vector<4x64xf32>
    %471 = arith.mulf %469, %470 : vector<4x64xf32>
    %472 = arith.truncf %371 : vector<4x64xf32> to vector<4x64xbf16>
    %473 = arith.truncf %404 : vector<4x64xf32> to vector<4x64xbf16>
    %474 = tpu.concatenate %472, %473 in 1 : vector<4x64xbf16>, vector<4x64xbf16> -> vector<4x128xbf16>
    %c2_138 = arith.constant 2 : index
    %c0_139 = arith.constant 0 : index
    %c0_140 = arith.constant 0 : index
    %475 = vector.load %arg1[%c2_138, %c0_139, %c0_140] : memref<3x128x256xbf16, #tpu.memory_space<vmem>>, vector<1x128x256xbf16>
    %476 = vector.shape_cast %475 : vector<1x128x256xbf16> to vector<128x256xbf16>
    %cst_141 = arith.constant dense<0.000000e+00> : vector<4x256xf32>
    %477 = tpu.matmul %474, %476, %cst_141 {dimension_numbers = #tpu.dot_dimension_numbers<[1], [0], [0], [1], [0, 0, 1, 1], [], []>} : vector<4x128xbf16>, vector<128x256xbf16>, vector<4x256xf32> -> vector<4x256xf32>
    %c2_142 = arith.constant 2 : index
    %c0_143 = arith.constant 0 : index
    %c0_144 = arith.constant 0 : index
    %478 = vector.load %arg2[%c2_142, %c0_143, %c0_144] : memref<3x1x256xf32, #tpu.memory_space<vmem>>, vector<1x1x256xf32>
    %479 = vector.shape_cast %478 : vector<1x1x256xf32> to vector<1x256xf32>
    %480 = vector.broadcast %479 : vector<1x256xf32> to vector<4x256xf32>
    %481 = arith.addf %477, %480 : vector<4x256xf32>
    %482 = vector.extract_strided_slice %481 {offsets = [0, 0], sizes = [4, 128], strides = [1, 1]} : vector<4x256xf32> to vector<4x128xf32>
    %483 = arith.negf %482 : vector<4x128xf32>
    %484 = math.exp %483 : vector<4x128xf32>
    %cst_145 = arith.constant 1.000000e+00 : f32
    %485 = vector.broadcast %cst_145 : f32 to vector<4x128xf32>
    %486 = arith.addf %485, %484 : vector<4x128xf32>
    %487 = arith.divf %485, %486 : vector<4x128xf32>
    %488 = vector.extract_strided_slice %481 {offsets = [0, 128], sizes = [4, 128], strides = [1, 1]} : vector<4x256xf32> to vector<4x128xf32>
    %489 = math.tanh %488 : vector<4x128xf32>
    %490 = arith.negf %488 : vector<4x128xf32>
    %491 = math.exp %490 : vector<4x128xf32>
    %cst_146 = arith.constant 1.000000e+00 : f32
    %492 = vector.broadcast %cst_146 : f32 to vector<4x128xf32>
    %493 = arith.addf %492, %491 : vector<4x128xf32>
    %494 = arith.divf %492, %493 : vector<4x128xf32>
    %495 = arith.select %2, %489, %494 : vector<4x128xi1>, vector<4x128xf32>
    %496 = vector.extract_strided_slice %487 {offsets = [0, 64], sizes = [4, 64], strides = [1, 1]} : vector<4x128xf32> to vector<4x64xf32>
    %497 = arith.mulf %496, %401 : vector<4x64xf32>
    %498 = vector.extract_strided_slice %487 {offsets = [0, 0], sizes = [4, 64], strides = [1, 1]} : vector<4x128xf32> to vector<4x64xf32>
    %499 = vector.extract_strided_slice %495 {offsets = [0, 0], sizes = [4, 64], strides = [1, 1]} : vector<4x128xf32> to vector<4x64xf32>
    %500 = arith.mulf %498, %499 : vector<4x64xf32>
    %501 = arith.addf %497, %500 : vector<4x64xf32>
    %502 = vector.extract_strided_slice %495 {offsets = [0, 64], sizes = [4, 64], strides = [1, 1]} : vector<4x128xf32> to vector<4x64xf32>
    %503 = math.tanh %501 : vector<4x64xf32>
    %504 = arith.mulf %502, %503 : vector<4x64xf32>
    %c6 = arith.constant 6 : index
    %c0_147 = arith.constant 0 : index
    %c0_148 = arith.constant 0 : index
    %505 = vector.load %arg0[%c6, %c0_147, %c0_148] : memref<8x4x64xbf16, #tpu.memory_space<vmem>>, vector<1x4x64xbf16>
    %506 = vector.shape_cast %505 : vector<1x4x64xbf16> to vector<4x64xbf16>
    %507 = arith.truncf %438 : vector<4x64xf32> to vector<4x64xbf16>
    %508 = tpu.concatenate %506, %507 in 1 : vector<4x64xbf16>, vector<4x64xbf16> -> vector<4x128xbf16>
    %c0_149 = arith.constant 0 : index
    %c0_150 = arith.constant 0 : index
    %c0_151 = arith.constant 0 : index
    %509 = vector.load %arg1[%c0_149, %c0_150, %c0_151] : memref<3x128x256xbf16, #tpu.memory_space<vmem>>, vector<1x128x256xbf16>
    %510 = vector.shape_cast %509 : vector<1x128x256xbf16> to vector<128x256xbf16>
    %cst_152 = arith.constant dense<0.000000e+00> : vector<4x256xf32>
    %511 = tpu.matmul %508, %510, %cst_152 {dimension_numbers = #tpu.dot_dimension_numbers<[1], [0], [0], [1], [0, 0, 1, 1], [], []>} : vector<4x128xbf16>, vector<128x256xbf16>, vector<4x256xf32> -> vector<4x256xf32>
    %c0_153 = arith.constant 0 : index
    %c0_154 = arith.constant 0 : index
    %c0_155 = arith.constant 0 : index
    %512 = vector.load %arg2[%c0_153, %c0_154, %c0_155] : memref<3x1x256xf32, #tpu.memory_space<vmem>>, vector<1x1x256xf32>
    %513 = vector.shape_cast %512 : vector<1x1x256xf32> to vector<1x256xf32>
    %514 = vector.broadcast %513 : vector<1x256xf32> to vector<4x256xf32>
    %515 = arith.addf %511, %514 : vector<4x256xf32>
    %516 = vector.extract_strided_slice %515 {offsets = [0, 0], sizes = [4, 128], strides = [1, 1]} : vector<4x256xf32> to vector<4x128xf32>
    %517 = arith.negf %516 : vector<4x128xf32>
    %518 = math.exp %517 : vector<4x128xf32>
    %cst_156 = arith.constant 1.000000e+00 : f32
    %519 = vector.broadcast %cst_156 : f32 to vector<4x128xf32>
    %520 = arith.addf %519, %518 : vector<4x128xf32>
    %521 = arith.divf %519, %520 : vector<4x128xf32>
    %522 = vector.extract_strided_slice %515 {offsets = [0, 128], sizes = [4, 128], strides = [1, 1]} : vector<4x256xf32> to vector<4x128xf32>
    %523 = math.tanh %522 : vector<4x128xf32>
    %524 = arith.negf %522 : vector<4x128xf32>
    %525 = math.exp %524 : vector<4x128xf32>
    %cst_157 = arith.constant 1.000000e+00 : f32
    %526 = vector.broadcast %cst_157 : f32 to vector<4x128xf32>
    %527 = arith.addf %526, %525 : vector<4x128xf32>
    %528 = arith.divf %526, %527 : vector<4x128xf32>
    %529 = arith.select %2, %523, %528 : vector<4x128xi1>, vector<4x128xf32>
    %530 = vector.extract_strided_slice %521 {offsets = [0, 64], sizes = [4, 64], strides = [1, 1]} : vector<4x128xf32> to vector<4x64xf32>
    %531 = arith.mulf %530, %435 : vector<4x64xf32>
    %532 = vector.extract_strided_slice %521 {offsets = [0, 0], sizes = [4, 64], strides = [1, 1]} : vector<4x128xf32> to vector<4x64xf32>
    %533 = vector.extract_strided_slice %529 {offsets = [0, 0], sizes = [4, 64], strides = [1, 1]} : vector<4x128xf32> to vector<4x64xf32>
    %534 = arith.mulf %532, %533 : vector<4x64xf32>
    %535 = arith.addf %531, %534 : vector<4x64xf32>
    %536 = vector.extract_strided_slice %529 {offsets = [0, 64], sizes = [4, 64], strides = [1, 1]} : vector<4x128xf32> to vector<4x64xf32>
    %537 = math.tanh %535 : vector<4x64xf32>
    %538 = arith.mulf %536, %537 : vector<4x64xf32>
    %539 = arith.truncf %438 : vector<4x64xf32> to vector<4x64xbf16>
    %540 = arith.truncf %471 : vector<4x64xf32> to vector<4x64xbf16>
    %541 = tpu.concatenate %539, %540 in 1 : vector<4x64xbf16>, vector<4x64xbf16> -> vector<4x128xbf16>
    %c1_158 = arith.constant 1 : index
    %c0_159 = arith.constant 0 : index
    %c0_160 = arith.constant 0 : index
    %542 = vector.load %arg1[%c1_158, %c0_159, %c0_160] : memref<3x128x256xbf16, #tpu.memory_space<vmem>>, vector<1x128x256xbf16>
    %543 = vector.shape_cast %542 : vector<1x128x256xbf16> to vector<128x256xbf16>
    %cst_161 = arith.constant dense<0.000000e+00> : vector<4x256xf32>
    %544 = tpu.matmul %541, %543, %cst_161 {dimension_numbers = #tpu.dot_dimension_numbers<[1], [0], [0], [1], [0, 0, 1, 1], [], []>} : vector<4x128xbf16>, vector<128x256xbf16>, vector<4x256xf32> -> vector<4x256xf32>
    %c1_162 = arith.constant 1 : index
    %c0_163 = arith.constant 0 : index
    %c0_164 = arith.constant 0 : index
    %545 = vector.load %arg2[%c1_162, %c0_163, %c0_164] : memref<3x1x256xf32, #tpu.memory_space<vmem>>, vector<1x1x256xf32>
    %546 = vector.shape_cast %545 : vector<1x1x256xf32> to vector<1x256xf32>
    %547 = vector.broadcast %546 : vector<1x256xf32> to vector<4x256xf32>
    %548 = arith.addf %544, %547 : vector<4x256xf32>
    %549 = vector.extract_strided_slice %548 {offsets = [0, 0], sizes = [4, 128], strides = [1, 1]} : vector<4x256xf32> to vector<4x128xf32>
    %550 = arith.negf %549 : vector<4x128xf32>
    %551 = math.exp %550 : vector<4x128xf32>
    %cst_165 = arith.constant 1.000000e+00 : f32
    %552 = vector.broadcast %cst_165 : f32 to vector<4x128xf32>
    %553 = arith.addf %552, %551 : vector<4x128xf32>
    %554 = arith.divf %552, %553 : vector<4x128xf32>
    %555 = vector.extract_strided_slice %548 {offsets = [0, 128], sizes = [4, 128], strides = [1, 1]} : vector<4x256xf32> to vector<4x128xf32>
    %556 = math.tanh %555 : vector<4x128xf32>
    %557 = arith.negf %555 : vector<4x128xf32>
    %558 = math.exp %557 : vector<4x128xf32>
    %cst_166 = arith.constant 1.000000e+00 : f32
    %559 = vector.broadcast %cst_166 : f32 to vector<4x128xf32>
    %560 = arith.addf %559, %558 : vector<4x128xf32>
    %561 = arith.divf %559, %560 : vector<4x128xf32>
    %562 = arith.select %2, %556, %561 : vector<4x128xi1>, vector<4x128xf32>
    %563 = vector.extract_strided_slice %554 {offsets = [0, 64], sizes = [4, 64], strides = [1, 1]} : vector<4x128xf32> to vector<4x64xf32>
    %564 = arith.mulf %563, %468 : vector<4x64xf32>
    %565 = vector.extract_strided_slice %554 {offsets = [0, 0], sizes = [4, 64], strides = [1, 1]} : vector<4x128xf32> to vector<4x64xf32>
    %566 = vector.extract_strided_slice %562 {offsets = [0, 0], sizes = [4, 64], strides = [1, 1]} : vector<4x128xf32> to vector<4x64xf32>
    %567 = arith.mulf %565, %566 : vector<4x64xf32>
    %568 = arith.addf %564, %567 : vector<4x64xf32>
    %569 = vector.extract_strided_slice %562 {offsets = [0, 64], sizes = [4, 64], strides = [1, 1]} : vector<4x128xf32> to vector<4x64xf32>
    %570 = math.tanh %568 : vector<4x64xf32>
    %571 = arith.mulf %569, %570 : vector<4x64xf32>
    %572 = arith.truncf %471 : vector<4x64xf32> to vector<4x64xbf16>
    %573 = arith.truncf %504 : vector<4x64xf32> to vector<4x64xbf16>
    %574 = tpu.concatenate %572, %573 in 1 : vector<4x64xbf16>, vector<4x64xbf16> -> vector<4x128xbf16>
    %c2_167 = arith.constant 2 : index
    %c0_168 = arith.constant 0 : index
    %c0_169 = arith.constant 0 : index
    %575 = vector.load %arg1[%c2_167, %c0_168, %c0_169] : memref<3x128x256xbf16, #tpu.memory_space<vmem>>, vector<1x128x256xbf16>
    %576 = vector.shape_cast %575 : vector<1x128x256xbf16> to vector<128x256xbf16>
    %cst_170 = arith.constant dense<0.000000e+00> : vector<4x256xf32>
    %577 = tpu.matmul %574, %576, %cst_170 {dimension_numbers = #tpu.dot_dimension_numbers<[1], [0], [0], [1], [0, 0, 1, 1], [], []>} : vector<4x128xbf16>, vector<128x256xbf16>, vector<4x256xf32> -> vector<4x256xf32>
    %c2_171 = arith.constant 2 : index
    %c0_172 = arith.constant 0 : index
    %c0_173 = arith.constant 0 : index
    %578 = vector.load %arg2[%c2_171, %c0_172, %c0_173] : memref<3x1x256xf32, #tpu.memory_space<vmem>>, vector<1x1x256xf32>
    %579 = vector.shape_cast %578 : vector<1x1x256xf32> to vector<1x256xf32>
    %580 = vector.broadcast %579 : vector<1x256xf32> to vector<4x256xf32>
    %581 = arith.addf %577, %580 : vector<4x256xf32>
    %582 = vector.extract_strided_slice %581 {offsets = [0, 0], sizes = [4, 128], strides = [1, 1]} : vector<4x256xf32> to vector<4x128xf32>
    %583 = arith.negf %582 : vector<4x128xf32>
    %584 = math.exp %583 : vector<4x128xf32>
    %cst_174 = arith.constant 1.000000e+00 : f32
    %585 = vector.broadcast %cst_174 : f32 to vector<4x128xf32>
    %586 = arith.addf %585, %584 : vector<4x128xf32>
    %587 = arith.divf %585, %586 : vector<4x128xf32>
    %588 = vector.extract_strided_slice %581 {offsets = [0, 128], sizes = [4, 128], strides = [1, 1]} : vector<4x256xf32> to vector<4x128xf32>
    %589 = math.tanh %588 : vector<4x128xf32>
    %590 = arith.negf %588 : vector<4x128xf32>
    %591 = math.exp %590 : vector<4x128xf32>
    %cst_175 = arith.constant 1.000000e+00 : f32
    %592 = vector.broadcast %cst_175 : f32 to vector<4x128xf32>
    %593 = arith.addf %592, %591 : vector<4x128xf32>
    %594 = arith.divf %592, %593 : vector<4x128xf32>
    %595 = arith.select %2, %589, %594 : vector<4x128xi1>, vector<4x128xf32>
    %596 = vector.extract_strided_slice %587 {offsets = [0, 64], sizes = [4, 64], strides = [1, 1]} : vector<4x128xf32> to vector<4x64xf32>
    %597 = arith.mulf %596, %501 : vector<4x64xf32>
    %598 = vector.extract_strided_slice %587 {offsets = [0, 0], sizes = [4, 64], strides = [1, 1]} : vector<4x128xf32> to vector<4x64xf32>
    %599 = vector.extract_strided_slice %595 {offsets = [0, 0], sizes = [4, 64], strides = [1, 1]} : vector<4x128xf32> to vector<4x64xf32>
    %600 = arith.mulf %598, %599 : vector<4x64xf32>
    %601 = arith.addf %597, %600 : vector<4x64xf32>
    %602 = vector.extract_strided_slice %595 {offsets = [0, 64], sizes = [4, 64], strides = [1, 1]} : vector<4x128xf32> to vector<4x64xf32>
    %603 = math.tanh %601 : vector<4x64xf32>
    %604 = arith.mulf %602, %603 : vector<4x64xf32>
    %c7 = arith.constant 7 : index
    %c0_176 = arith.constant 0 : index
    %c0_177 = arith.constant 0 : index
    %605 = vector.load %arg0[%c7, %c0_176, %c0_177] : memref<8x4x64xbf16, #tpu.memory_space<vmem>>, vector<1x4x64xbf16>
    %606 = vector.shape_cast %605 : vector<1x4x64xbf16> to vector<4x64xbf16>
    %607 = arith.truncf %538 : vector<4x64xf32> to vector<4x64xbf16>
    %608 = tpu.concatenate %606, %607 in 1 : vector<4x64xbf16>, vector<4x64xbf16> -> vector<4x128xbf16>
    %c0_178 = arith.constant 0 : index
    %c0_179 = arith.constant 0 : index
    %c0_180 = arith.constant 0 : index
    %609 = vector.load %arg1[%c0_178, %c0_179, %c0_180] : memref<3x128x256xbf16, #tpu.memory_space<vmem>>, vector<1x128x256xbf16>
    %610 = vector.shape_cast %609 : vector<1x128x256xbf16> to vector<128x256xbf16>
    %cst_181 = arith.constant dense<0.000000e+00> : vector<4x256xf32>
    %611 = tpu.matmul %608, %610, %cst_181 {dimension_numbers = #tpu.dot_dimension_numbers<[1], [0], [0], [1], [0, 0, 1, 1], [], []>} : vector<4x128xbf16>, vector<128x256xbf16>, vector<4x256xf32> -> vector<4x256xf32>
    %c0_182 = arith.constant 0 : index
    %c0_183 = arith.constant 0 : index
    %c0_184 = arith.constant 0 : index
    %612 = vector.load %arg2[%c0_182, %c0_183, %c0_184] : memref<3x1x256xf32, #tpu.memory_space<vmem>>, vector<1x1x256xf32>
    %613 = vector.shape_cast %612 : vector<1x1x256xf32> to vector<1x256xf32>
    %614 = vector.broadcast %613 : vector<1x256xf32> to vector<4x256xf32>
    %615 = arith.addf %611, %614 : vector<4x256xf32>
    %616 = vector.extract_strided_slice %615 {offsets = [0, 0], sizes = [4, 128], strides = [1, 1]} : vector<4x256xf32> to vector<4x128xf32>
    %617 = arith.negf %616 : vector<4x128xf32>
    %618 = math.exp %617 : vector<4x128xf32>
    %cst_185 = arith.constant 1.000000e+00 : f32
    %619 = vector.broadcast %cst_185 : f32 to vector<4x128xf32>
    %620 = arith.addf %619, %618 : vector<4x128xf32>
    %621 = arith.divf %619, %620 : vector<4x128xf32>
    %622 = vector.extract_strided_slice %615 {offsets = [0, 128], sizes = [4, 128], strides = [1, 1]} : vector<4x256xf32> to vector<4x128xf32>
    %623 = math.tanh %622 : vector<4x128xf32>
    %624 = arith.negf %622 : vector<4x128xf32>
    %625 = math.exp %624 : vector<4x128xf32>
    %cst_186 = arith.constant 1.000000e+00 : f32
    %626 = vector.broadcast %cst_186 : f32 to vector<4x128xf32>
    %627 = arith.addf %626, %625 : vector<4x128xf32>
    %628 = arith.divf %626, %627 : vector<4x128xf32>
    %629 = arith.select %2, %623, %628 : vector<4x128xi1>, vector<4x128xf32>
    %630 = vector.extract_strided_slice %621 {offsets = [0, 64], sizes = [4, 64], strides = [1, 1]} : vector<4x128xf32> to vector<4x64xf32>
    %631 = arith.mulf %630, %535 : vector<4x64xf32>
    %632 = vector.extract_strided_slice %621 {offsets = [0, 0], sizes = [4, 64], strides = [1, 1]} : vector<4x128xf32> to vector<4x64xf32>
    %633 = vector.extract_strided_slice %629 {offsets = [0, 0], sizes = [4, 64], strides = [1, 1]} : vector<4x128xf32> to vector<4x64xf32>
    %634 = arith.mulf %632, %633 : vector<4x64xf32>
    %635 = arith.addf %631, %634 : vector<4x64xf32>
    %636 = vector.extract_strided_slice %629 {offsets = [0, 64], sizes = [4, 64], strides = [1, 1]} : vector<4x128xf32> to vector<4x64xf32>
    %637 = math.tanh %635 : vector<4x64xf32>
    %638 = arith.mulf %636, %637 : vector<4x64xf32>
    %639 = arith.truncf %538 : vector<4x64xf32> to vector<4x64xbf16>
    %640 = arith.truncf %571 : vector<4x64xf32> to vector<4x64xbf16>
    %641 = tpu.concatenate %639, %640 in 1 : vector<4x64xbf16>, vector<4x64xbf16> -> vector<4x128xbf16>
    %c1_187 = arith.constant 1 : index
    %c0_188 = arith.constant 0 : index
    %c0_189 = arith.constant 0 : index
    %642 = vector.load %arg1[%c1_187, %c0_188, %c0_189] : memref<3x128x256xbf16, #tpu.memory_space<vmem>>, vector<1x128x256xbf16>
    %643 = vector.shape_cast %642 : vector<1x128x256xbf16> to vector<128x256xbf16>
    %cst_190 = arith.constant dense<0.000000e+00> : vector<4x256xf32>
    %644 = tpu.matmul %641, %643, %cst_190 {dimension_numbers = #tpu.dot_dimension_numbers<[1], [0], [0], [1], [0, 0, 1, 1], [], []>} : vector<4x128xbf16>, vector<128x256xbf16>, vector<4x256xf32> -> vector<4x256xf32>
    %c1_191 = arith.constant 1 : index
    %c0_192 = arith.constant 0 : index
    %c0_193 = arith.constant 0 : index
    %645 = vector.load %arg2[%c1_191, %c0_192, %c0_193] : memref<3x1x256xf32, #tpu.memory_space<vmem>>, vector<1x1x256xf32>
    %646 = vector.shape_cast %645 : vector<1x1x256xf32> to vector<1x256xf32>
    %647 = vector.broadcast %646 : vector<1x256xf32> to vector<4x256xf32>
    %648 = arith.addf %644, %647 : vector<4x256xf32>
    %649 = vector.extract_strided_slice %648 {offsets = [0, 0], sizes = [4, 128], strides = [1, 1]} : vector<4x256xf32> to vector<4x128xf32>
    %650 = arith.negf %649 : vector<4x128xf32>
    %651 = math.exp %650 : vector<4x128xf32>
    %cst_194 = arith.constant 1.000000e+00 : f32
    %652 = vector.broadcast %cst_194 : f32 to vector<4x128xf32>
    %653 = arith.addf %652, %651 : vector<4x128xf32>
    %654 = arith.divf %652, %653 : vector<4x128xf32>
    %655 = vector.extract_strided_slice %648 {offsets = [0, 128], sizes = [4, 128], strides = [1, 1]} : vector<4x256xf32> to vector<4x128xf32>
    %656 = math.tanh %655 : vector<4x128xf32>
    %657 = arith.negf %655 : vector<4x128xf32>
    %658 = math.exp %657 : vector<4x128xf32>
    %cst_195 = arith.constant 1.000000e+00 : f32
    %659 = vector.broadcast %cst_195 : f32 to vector<4x128xf32>
    %660 = arith.addf %659, %658 : vector<4x128xf32>
    %661 = arith.divf %659, %660 : vector<4x128xf32>
    %662 = arith.select %2, %656, %661 : vector<4x128xi1>, vector<4x128xf32>
    %663 = vector.extract_strided_slice %654 {offsets = [0, 64], sizes = [4, 64], strides = [1, 1]} : vector<4x128xf32> to vector<4x64xf32>
    %664 = arith.mulf %663, %568 : vector<4x64xf32>
    %665 = vector.extract_strided_slice %654 {offsets = [0, 0], sizes = [4, 64], strides = [1, 1]} : vector<4x128xf32> to vector<4x64xf32>
    %666 = vector.extract_strided_slice %662 {offsets = [0, 0], sizes = [4, 64], strides = [1, 1]} : vector<4x128xf32> to vector<4x64xf32>
    %667 = arith.mulf %665, %666 : vector<4x64xf32>
    %668 = arith.addf %664, %667 : vector<4x64xf32>
    %669 = vector.extract_strided_slice %662 {offsets = [0, 64], sizes = [4, 64], strides = [1, 1]} : vector<4x128xf32> to vector<4x64xf32>
    %670 = math.tanh %668 : vector<4x64xf32>
    %671 = arith.mulf %669, %670 : vector<4x64xf32>
    %672 = arith.truncf %571 : vector<4x64xf32> to vector<4x64xbf16>
    %673 = arith.truncf %604 : vector<4x64xf32> to vector<4x64xbf16>
    %674 = tpu.concatenate %672, %673 in 1 : vector<4x64xbf16>, vector<4x64xbf16> -> vector<4x128xbf16>
    %c2_196 = arith.constant 2 : index
    %c0_197 = arith.constant 0 : index
    %c0_198 = arith.constant 0 : index
    %675 = vector.load %arg1[%c2_196, %c0_197, %c0_198] : memref<3x128x256xbf16, #tpu.memory_space<vmem>>, vector<1x128x256xbf16>
    %676 = vector.shape_cast %675 : vector<1x128x256xbf16> to vector<128x256xbf16>
    %cst_199 = arith.constant dense<0.000000e+00> : vector<4x256xf32>
    %677 = tpu.matmul %674, %676, %cst_199 {dimension_numbers = #tpu.dot_dimension_numbers<[1], [0], [0], [1], [0, 0, 1, 1], [], []>} : vector<4x128xbf16>, vector<128x256xbf16>, vector<4x256xf32> -> vector<4x256xf32>
    %c2_200 = arith.constant 2 : index
    %c0_201 = arith.constant 0 : index
    %c0_202 = arith.constant 0 : index
    %678 = vector.load %arg2[%c2_200, %c0_201, %c0_202] : memref<3x1x256xf32, #tpu.memory_space<vmem>>, vector<1x1x256xf32>
    %679 = vector.shape_cast %678 : vector<1x1x256xf32> to vector<1x256xf32>
    %680 = vector.broadcast %679 : vector<1x256xf32> to vector<4x256xf32>
    %681 = arith.addf %677, %680 : vector<4x256xf32>
    %682 = vector.extract_strided_slice %681 {offsets = [0, 0], sizes = [4, 128], strides = [1, 1]} : vector<4x256xf32> to vector<4x128xf32>
    %683 = arith.negf %682 : vector<4x128xf32>
    %684 = math.exp %683 : vector<4x128xf32>
    %cst_203 = arith.constant 1.000000e+00 : f32
    %685 = vector.broadcast %cst_203 : f32 to vector<4x128xf32>
    %686 = arith.addf %685, %684 : vector<4x128xf32>
    %687 = arith.divf %685, %686 : vector<4x128xf32>
    %688 = vector.extract_strided_slice %681 {offsets = [0, 128], sizes = [4, 128], strides = [1, 1]} : vector<4x256xf32> to vector<4x128xf32>
    %689 = math.tanh %688 : vector<4x128xf32>
    %690 = arith.negf %688 : vector<4x128xf32>
    %691 = math.exp %690 : vector<4x128xf32>
    %cst_204 = arith.constant 1.000000e+00 : f32
    %692 = vector.broadcast %cst_204 : f32 to vector<4x128xf32>
    %693 = arith.addf %692, %691 : vector<4x128xf32>
    %694 = arith.divf %692, %693 : vector<4x128xf32>
    %695 = arith.select %2, %689, %694 : vector<4x128xi1>, vector<4x128xf32>
    %696 = vector.extract_strided_slice %687 {offsets = [0, 64], sizes = [4, 64], strides = [1, 1]} : vector<4x128xf32> to vector<4x64xf32>
    %697 = arith.mulf %696, %601 : vector<4x64xf32>
    %698 = vector.extract_strided_slice %687 {offsets = [0, 0], sizes = [4, 64], strides = [1, 1]} : vector<4x128xf32> to vector<4x64xf32>
    %699 = vector.extract_strided_slice %695 {offsets = [0, 0], sizes = [4, 64], strides = [1, 1]} : vector<4x128xf32> to vector<4x64xf32>
    %700 = arith.mulf %698, %699 : vector<4x64xf32>
    %701 = arith.addf %697, %700 : vector<4x64xf32>
    %702 = vector.extract_strided_slice %695 {offsets = [0, 64], sizes = [4, 64], strides = [1, 1]} : vector<4x128xf32> to vector<4x64xf32>
    %703 = math.tanh %701 : vector<4x64xf32>
    %704 = arith.mulf %702, %703 : vector<4x64xf32>
    %705 = arith.truncf %638 : vector<4x64xf32> to vector<4x64xbf16>
    %706 = arith.truncf %671 : vector<4x64xf32> to vector<4x64xbf16>
    %707 = tpu.concatenate %705, %706 in 1 : vector<4x64xbf16>, vector<4x64xbf16> -> vector<4x128xbf16>
    %c1_205 = arith.constant 1 : index
    %c0_206 = arith.constant 0 : index
    %c0_207 = arith.constant 0 : index
    %708 = vector.load %arg1[%c1_205, %c0_206, %c0_207] : memref<3x128x256xbf16, #tpu.memory_space<vmem>>, vector<1x128x256xbf16>
    %709 = vector.shape_cast %708 : vector<1x128x256xbf16> to vector<128x256xbf16>
    %cst_208 = arith.constant dense<0.000000e+00> : vector<4x256xf32>
    %710 = tpu.matmul %707, %709, %cst_208 {dimension_numbers = #tpu.dot_dimension_numbers<[1], [0], [0], [1], [0, 0, 1, 1], [], []>} : vector<4x128xbf16>, vector<128x256xbf16>, vector<4x256xf32> -> vector<4x256xf32>
    %c1_209 = arith.constant 1 : index
    %c0_210 = arith.constant 0 : index
    %c0_211 = arith.constant 0 : index
    %711 = vector.load %arg2[%c1_209, %c0_210, %c0_211] : memref<3x1x256xf32, #tpu.memory_space<vmem>>, vector<1x1x256xf32>
    %712 = vector.shape_cast %711 : vector<1x1x256xf32> to vector<1x256xf32>
    %713 = vector.broadcast %712 : vector<1x256xf32> to vector<4x256xf32>
    %714 = arith.addf %710, %713 : vector<4x256xf32>
    %715 = vector.extract_strided_slice %714 {offsets = [0, 0], sizes = [4, 128], strides = [1, 1]} : vector<4x256xf32> to vector<4x128xf32>
    %716 = arith.negf %715 : vector<4x128xf32>
    %717 = math.exp %716 : vector<4x128xf32>
    %cst_212 = arith.constant 1.000000e+00 : f32
    %718 = vector.broadcast %cst_212 : f32 to vector<4x128xf32>
    %719 = arith.addf %718, %717 : vector<4x128xf32>
    %720 = arith.divf %718, %719 : vector<4x128xf32>
    %721 = vector.extract_strided_slice %714 {offsets = [0, 128], sizes = [4, 128], strides = [1, 1]} : vector<4x256xf32> to vector<4x128xf32>
    %722 = math.tanh %721 : vector<4x128xf32>
    %723 = arith.negf %721 : vector<4x128xf32>
    %724 = math.exp %723 : vector<4x128xf32>
    %cst_213 = arith.constant 1.000000e+00 : f32
    %725 = vector.broadcast %cst_213 : f32 to vector<4x128xf32>
    %726 = arith.addf %725, %724 : vector<4x128xf32>
    %727 = arith.divf %725, %726 : vector<4x128xf32>
    %728 = arith.select %2, %722, %727 : vector<4x128xi1>, vector<4x128xf32>
    %729 = vector.extract_strided_slice %720 {offsets = [0, 64], sizes = [4, 64], strides = [1, 1]} : vector<4x128xf32> to vector<4x64xf32>
    %730 = arith.mulf %729, %668 : vector<4x64xf32>
    %731 = vector.extract_strided_slice %720 {offsets = [0, 0], sizes = [4, 64], strides = [1, 1]} : vector<4x128xf32> to vector<4x64xf32>
    %732 = vector.extract_strided_slice %728 {offsets = [0, 0], sizes = [4, 64], strides = [1, 1]} : vector<4x128xf32> to vector<4x64xf32>
    %733 = arith.mulf %731, %732 : vector<4x64xf32>
    %734 = arith.addf %730, %733 : vector<4x64xf32>
    %735 = vector.extract_strided_slice %728 {offsets = [0, 64], sizes = [4, 64], strides = [1, 1]} : vector<4x128xf32> to vector<4x64xf32>
    %736 = math.tanh %734 : vector<4x64xf32>
    %737 = arith.mulf %735, %736 : vector<4x64xf32>
    %738 = arith.truncf %671 : vector<4x64xf32> to vector<4x64xbf16>
    %739 = arith.truncf %704 : vector<4x64xf32> to vector<4x64xbf16>
    %740 = tpu.concatenate %738, %739 in 1 : vector<4x64xbf16>, vector<4x64xbf16> -> vector<4x128xbf16>
    %c2_214 = arith.constant 2 : index
    %c0_215 = arith.constant 0 : index
    %c0_216 = arith.constant 0 : index
    %741 = vector.load %arg1[%c2_214, %c0_215, %c0_216] : memref<3x128x256xbf16, #tpu.memory_space<vmem>>, vector<1x128x256xbf16>
    %742 = vector.shape_cast %741 : vector<1x128x256xbf16> to vector<128x256xbf16>
    %cst_217 = arith.constant dense<0.000000e+00> : vector<4x256xf32>
    %743 = tpu.matmul %740, %742, %cst_217 {dimension_numbers = #tpu.dot_dimension_numbers<[1], [0], [0], [1], [0, 0, 1, 1], [], []>} : vector<4x128xbf16>, vector<128x256xbf16>, vector<4x256xf32> -> vector<4x256xf32>
    %c2_218 = arith.constant 2 : index
    %c0_219 = arith.constant 0 : index
    %c0_220 = arith.constant 0 : index
    %744 = vector.load %arg2[%c2_218, %c0_219, %c0_220] : memref<3x1x256xf32, #tpu.memory_space<vmem>>, vector<1x1x256xf32>
    %745 = vector.shape_cast %744 : vector<1x1x256xf32> to vector<1x256xf32>
    %746 = vector.broadcast %745 : vector<1x256xf32> to vector<4x256xf32>
    %747 = arith.addf %743, %746 : vector<4x256xf32>
    %748 = vector.extract_strided_slice %747 {offsets = [0, 0], sizes = [4, 128], strides = [1, 1]} : vector<4x256xf32> to vector<4x128xf32>
    %749 = arith.negf %748 : vector<4x128xf32>
    %750 = math.exp %749 : vector<4x128xf32>
    %cst_221 = arith.constant 1.000000e+00 : f32
    %751 = vector.broadcast %cst_221 : f32 to vector<4x128xf32>
    %752 = arith.addf %751, %750 : vector<4x128xf32>
    %753 = arith.divf %751, %752 : vector<4x128xf32>
    %754 = vector.extract_strided_slice %747 {offsets = [0, 128], sizes = [4, 128], strides = [1, 1]} : vector<4x256xf32> to vector<4x128xf32>
    %755 = math.tanh %754 : vector<4x128xf32>
    %756 = arith.negf %754 : vector<4x128xf32>
    %757 = math.exp %756 : vector<4x128xf32>
    %cst_222 = arith.constant 1.000000e+00 : f32
    %758 = vector.broadcast %cst_222 : f32 to vector<4x128xf32>
    %759 = arith.addf %758, %757 : vector<4x128xf32>
    %760 = arith.divf %758, %759 : vector<4x128xf32>
    %761 = arith.select %2, %755, %760 : vector<4x128xi1>, vector<4x128xf32>
    %762 = vector.extract_strided_slice %753 {offsets = [0, 64], sizes = [4, 64], strides = [1, 1]} : vector<4x128xf32> to vector<4x64xf32>
    %763 = arith.mulf %762, %701 : vector<4x64xf32>
    %764 = vector.extract_strided_slice %753 {offsets = [0, 0], sizes = [4, 64], strides = [1, 1]} : vector<4x128xf32> to vector<4x64xf32>
    %765 = vector.extract_strided_slice %761 {offsets = [0, 0], sizes = [4, 64], strides = [1, 1]} : vector<4x128xf32> to vector<4x64xf32>
    %766 = arith.mulf %764, %765 : vector<4x64xf32>
    %767 = arith.addf %763, %766 : vector<4x64xf32>
    %768 = vector.extract_strided_slice %761 {offsets = [0, 64], sizes = [4, 64], strides = [1, 1]} : vector<4x128xf32> to vector<4x64xf32>
    %769 = math.tanh %767 : vector<4x64xf32>
    %770 = arith.mulf %768, %769 : vector<4x64xf32>
    %771 = arith.truncf %737 : vector<4x64xf32> to vector<4x64xbf16>
    %772 = arith.truncf %770 : vector<4x64xf32> to vector<4x64xbf16>
    %773 = tpu.concatenate %771, %772 in 1 : vector<4x64xbf16>, vector<4x64xbf16> -> vector<4x128xbf16>
    %c2_223 = arith.constant 2 : index
    %c0_224 = arith.constant 0 : index
    %c0_225 = arith.constant 0 : index
    %774 = vector.load %arg1[%c2_223, %c0_224, %c0_225] : memref<3x128x256xbf16, #tpu.memory_space<vmem>>, vector<1x128x256xbf16>
    %775 = vector.shape_cast %774 : vector<1x128x256xbf16> to vector<128x256xbf16>
    %cst_226 = arith.constant dense<0.000000e+00> : vector<4x256xf32>
    %776 = tpu.matmul %773, %775, %cst_226 {dimension_numbers = #tpu.dot_dimension_numbers<[1], [0], [0], [1], [0, 0, 1, 1], [], []>} : vector<4x128xbf16>, vector<128x256xbf16>, vector<4x256xf32> -> vector<4x256xf32>
    %c2_227 = arith.constant 2 : index
    %c0_228 = arith.constant 0 : index
    %c0_229 = arith.constant 0 : index
    %777 = vector.load %arg2[%c2_227, %c0_228, %c0_229] : memref<3x1x256xf32, #tpu.memory_space<vmem>>, vector<1x1x256xf32>
    %778 = vector.shape_cast %777 : vector<1x1x256xf32> to vector<1x256xf32>
    %779 = vector.broadcast %778 : vector<1x256xf32> to vector<4x256xf32>
    %780 = arith.addf %776, %779 : vector<4x256xf32>
    %781 = vector.extract_strided_slice %780 {offsets = [0, 0], sizes = [4, 128], strides = [1, 1]} : vector<4x256xf32> to vector<4x128xf32>
    %782 = arith.negf %781 : vector<4x128xf32>
    %783 = math.exp %782 : vector<4x128xf32>
    %cst_230 = arith.constant 1.000000e+00 : f32
    %784 = vector.broadcast %cst_230 : f32 to vector<4x128xf32>
    %785 = arith.addf %784, %783 : vector<4x128xf32>
    %786 = arith.divf %784, %785 : vector<4x128xf32>
    %787 = vector.extract_strided_slice %780 {offsets = [0, 128], sizes = [4, 128], strides = [1, 1]} : vector<4x256xf32> to vector<4x128xf32>
    %788 = math.tanh %787 : vector<4x128xf32>
    %789 = arith.negf %787 : vector<4x128xf32>
    %790 = math.exp %789 : vector<4x128xf32>
    %cst_231 = arith.constant 1.000000e+00 : f32
    %791 = vector.broadcast %cst_231 : f32 to vector<4x128xf32>
    %792 = arith.addf %791, %790 : vector<4x128xf32>
    %793 = arith.divf %791, %792 : vector<4x128xf32>
    %794 = arith.select %2, %788, %793 : vector<4x128xi1>, vector<4x128xf32>
    %795 = vector.extract_strided_slice %786 {offsets = [0, 64], sizes = [4, 64], strides = [1, 1]} : vector<4x128xf32> to vector<4x64xf32>
    %796 = arith.mulf %795, %767 : vector<4x64xf32>
    %797 = vector.extract_strided_slice %786 {offsets = [0, 0], sizes = [4, 64], strides = [1, 1]} : vector<4x128xf32> to vector<4x64xf32>
    %798 = vector.extract_strided_slice %794 {offsets = [0, 0], sizes = [4, 64], strides = [1, 1]} : vector<4x128xf32> to vector<4x64xf32>
    %799 = arith.mulf %797, %798 : vector<4x64xf32>
    %800 = arith.addf %796, %799 : vector<4x64xf32>
    %801 = vector.extract_strided_slice %794 {offsets = [0, 64], sizes = [4, 64], strides = [1, 1]} : vector<4x128xf32> to vector<4x64xf32>
    %802 = math.tanh %800 : vector<4x64xf32>
    %803 = arith.mulf %801, %802 : vector<4x64xf32>
    %804 = arith.truncf %803 : vector<4x64xf32> to vector<4x64xbf16>
    %c0_232 = arith.constant 0 : index
    %c0_233 = arith.constant 0 : index
    %805 = vector.load %arg3[%c0_232, %c0_233] : memref<64x32xbf16, #tpu.memory_space<vmem>>, vector<64x32xbf16>
    %cst_234 = arith.constant dense<0.000000e+00> : vector<4x32xf32>
    %806 = tpu.matmul %804, %805, %cst_234 {dimension_numbers = #tpu.dot_dimension_numbers<[1], [0], [0], [1], [0, 0, 1, 1], [], []>} : vector<4x64xbf16>, vector<64x32xbf16>, vector<4x32xf32> -> vector<4x32xf32>
    %c0_235 = arith.constant 0 : index
    %c0_236 = arith.constant 0 : index
    %807 = vector.load %arg4[%c0_235, %c0_236] : memref<1x32xf32, #tpu.memory_space<vmem>>, vector<1x32xf32>
    %808 = vector.broadcast %807 : vector<1x32xf32> to vector<4x32xf32>
    %809 = arith.addf %806, %808 : vector<4x32xf32>
    %810 = math.tanh %809 : vector<4x32xf32>
    %811 = arith.truncf %810 : vector<4x32xf32> to vector<4x32xbf16>
    %c0_237 = arith.constant 0 : index
    %c0_238 = arith.constant 0 : index
    %812 = vector.load %arg5[%c0_237, %c0_238] : memref<32x1xbf16, #tpu.memory_space<vmem>>, vector<32x1xbf16>
    %cst_239 = arith.constant dense<0.000000e+00> : vector<4x1xf32>
    %813 = tpu.matmul %811, %812, %cst_239 {dimension_numbers = #tpu.dot_dimension_numbers<[1], [0], [0], [1], [0, 0, 1, 1], [], []>} : vector<4x32xbf16>, vector<32x1xbf16>, vector<4x1xf32> -> vector<4x1xf32>
    %c0_240 = arith.constant 0 : index
    %c0_241 = arith.constant 0 : index
    %814 = vector.load %arg6[%c0_240, %c0_241] : memref<1x1xf32, #tpu.memory_space<vmem>>, vector<1x1xf32>
    %815 = vector.broadcast %814 : vector<1x1xf32> to vector<4x1xf32>
    %816 = arith.addf %813, %815 : vector<4x1xf32>
    %c0_242 = arith.constant 0 : index
    %c0_243 = arith.constant 0 : index
    %817 = vector.load %arg7[%c0_242, %c0_243] : memref<4x1xf32, #tpu.memory_space<vmem>>, vector<4x1xf32>
    tpu.vector_store %arg7[%c0_242, %c0_243], %816 {strides = array<i32>} : memref<4x1xf32, #tpu.memory_space<vmem>>, vector<4x1xf32>,
    return
  }
}

</mosaic_0001>

<llo_original>
// kernel: lstm_model_future_forward.1
$region0: #{lstm_model_future_forward.1}
  #allocation0 [shape = 'u32[]', space=smem, size = 0x4, offset = 0x4, fixed_abs, tag = 'smem constant byte address 0x4 - core index']
  #allocation1 [shape = 'u32[144,128]{1,0:T(1,128)}', space=vmem, size = 0x12000, scoped, tag = 'internal scratch']
  #allocation2 [shape = 'f32[1,1]{1,0:T(1,128)S(1)}', space=vmem, size = 0x200, scoped, tag = 'scoped memory for lstm_model_future_forward.1']
  %s0 = inlined_call_operand.vmem [shape: bf16[8,4,64], index: 0, kind: input, shape index: {}]
  %s1 = inlined_call_operand.hbm [shape: bf16[3,128,256], index: 1, kind: input, shape index: {}]
  %s2 = inlined_call_operand.vmem [shape: f32[3,1,256], index: 2, kind: input, shape index: {}]
  %s3 = inlined_call_operand.vmem [shape: bf16[64,32], index: 3, kind: input, shape index: {}]
  %s4 = inlined_call_operand.vmem [shape: f32[1,32], index: 4, kind: input, shape index: {}]
  %s5 = inlined_call_operand.vmem [shape: bf16[32,1], index: 5, kind: input, shape index: {}]
  %s6 = inlined_call_operand.<no memory space> [shape: f32[1,1], index: 6, kind: input, shape index: {}]
  %s7 = inlined_call_operand.vmem [shape: f32[4,1], index: 7, kind: output, shape index: {}]
  %s8 = sld [smem:[#allocation0]]
  $region42: #{lstm_model_future_forward.1} parent=0
    _
  %s10 = ssub.s32 1, %s8
  %s11 = scalar_select 0, %s10, %s8
  %v12 = vstv %s6
  %13 = vst [vmem:[#allocation2] sm:$0x1] %v12
  $region1: #{lstm_model_future_forward.1} parent=0
    #allocation3 [shape = 'u8[196608]{0}', space=vmem, size = 0x30000, scoped, tag = 'input window, operand 1, single buffered']
    #allocation4 [shape = 's32[1]{0}', space=sflag, size = 0x4, scoped, tag = 'scoped memory for lstm_model_future_forward.1']
    %14 = vsyncpa [#allocation4], 0
    // Predicated region
    $region2: #{lstm_model_future_forward.1} parent=1 // pred_check
      _
    $region3: #{lstm_model_future_forward.1} parent=1 // pred_check_branch
      %16 = sbr.rel (0) target = $region5
    $region4: #{lstm_model_future_forward.1} parent=1 // pred_region
      _
    $region5: #{lstm_model_future_forward.1} parent=1 // pred_fallthru
      _
    // Predicated region
    $region6: #{lstm_model_future_forward.1} parent=1 // pred_check
      _
    $region7: #{lstm_model_future_forward.1} parent=1 // pred_check_branch
      %18 = sbr.rel (0) target = $region9
    $region8: #{lstm_model_future_forward.1} parent=1 // pred_region
      %s20 = ssub.s32 6144, 6144
      %21 = vsyncadd [#allocation4], %s20
      %s22 = sshll.u32 [#allocation3], 4
      %s23 = int_to_ptr.vmem [resolvable:$true] %s22
      %28 = dma.hbm_to_vmem [thread:$0]  %s1, 6144, %s23, [#allocation4], 128, 128, 8
    $region9: #{lstm_model_future_forward.1} parent=1 // pred_fallthru
      _
    // Predicated region
    $region10: #{lstm_model_future_forward.1} parent=1 // pred_check
      _
    $region11: #{lstm_model_future_forward.1} parent=1 // pred_check_branch
      %30 = sbr.rel (0) target = $region13
    $region12: #{lstm_model_future_forward.1} parent=1 // pred_region
      _
    $region13: #{lstm_model_future_forward.1} parent=1 // pred_fallthru
      _
    // Predicated region
    $region14: #{lstm_model_future_forward.1} parent=1 // pred_check
      _
    $region15: #{lstm_model_future_forward.1} parent=1 // pred_check_branch
      %32 = sbr.rel (0) target = $region17
    $region16: #{lstm_model_future_forward.1} parent=1 // pred_region
      _
    $region17: #{lstm_model_future_forward.1} parent=1 // pred_fallthru
      _
    // Predicated region
    $region18: #{lstm_model_future_forward.1} parent=1 // pred_check
      _
    $region19: #{lstm_model_future_forward.1} parent=1 // pred_check_branch
      %34 = sbr.rel (0) target = $region21
    $region20: #{lstm_model_future_forward.1} parent=1 // pred_region
      _
    $region21: #{lstm_model_future_forward.1} parent=1 // pred_fallthru
      _
    // Predicated region
    $region22: #{lstm_model_future_forward.1} parent=1 // pred_check
      _
    $region23: #{lstm_model_future_forward.1} parent=1 // pred_check_branch
      %36 = sbr.rel (0) target = $region25
    $region24: #{lstm_model_future_forward.1} parent=1 // pred_region
      _
    $region25: #{lstm_model_future_forward.1} parent=1 // pred_fallthru
      _
    // Predicated region
    $region26: #{lstm_model_future_forward.1} parent=1 // pred_check
      _
    $region27: #{lstm_model_future_forward.1} parent=1 // pred_check_branch
      %38 = sbr.rel (0) target = $region29
    $region28: #{lstm_model_future_forward.1} parent=1 // pred_region
      _
    $region29: #{lstm_model_future_forward.1} parent=1 // pred_fallthru
      _
    // Predicated region
    $region30: #{lstm_model_future_forward.1} parent=1 // pred_check
      _
    $region31: #{lstm_model_future_forward.1} parent=1 // pred_check_branch
      %40 = sbr.rel (0) target = $region33
    $region32: #{lstm_model_future_forward.1} parent=1 // pred_region
      %41 = dma.done [#allocation4], 6144
    $region33: #{lstm_model_future_forward.1} parent=1 // pred_fallthru
      _
    %v43 = vlaneseq
    %v44 = vand.u32 %v43, 127
    %vm45 = vcmp.lt.s32.totalorder %v44, 64
    %v46 = vld [vmem:[%s0] sm:$0x3]
    %vm47 = vcmask 523264
    %v50 = vsel %vm47, %v46, 0
    %v52 = vld [vmem:[#allocation3] sm:$0xff]
    %v53 = vld [vmem:[#allocation3 + $0x8] sm:$0xff]
    %v54 = vld [vmem:[#allocation3 + $0x10] sm:$0xff]
    %v55 = vld [vmem:[#allocation3 + $0x18] sm:$0xff]
    %v56 = vld [vmem:[#allocation3 + $0x20] sm:$0xff]
    %v57 = vld [vmem:[#allocation3 + $0x28] sm:$0xff]
    %v58 = vld [vmem:[#allocation3 + $0x30] sm:$0xff]
    %v59 = vld [vmem:[#allocation3 + $0x38] sm:$0xff]
    %v60 = vld [vmem:[#allocation3 + $0x40] sm:$0xff]
    %v61 = vld [vmem:[#allocation3 + $0x48] sm:$0xff]
    %v62 = vld [vmem:[#allocation3 + $0x50] sm:$0xff]
    %v63 = vld [vmem:[#allocation3 + $0x58] sm:$0xff]
    %v64 = vld [vmem:[#allocation3 + $0x60] sm:$0xff]
    %v65 = vld [vmem:[#allocation3 + $0x68] sm:$0xff]
    %v66 = vld [vmem:[#allocation3 + $0x70] sm:$0xff]
    %v67 = vld [vmem:[#allocation3 + $0x78] sm:$0xff]
    %v68 = vld [vmem:[%s2] sm:$0x3]
    %v70 = vlaneseq
    %v71 = vshrl.u32 %v70, 7
    %v72 = vsub.s32 0, %v71
    %v73 = vrot.slane %v68, %v72
    %v74 = vlaneseq
    %v75 = vshrl.u32 %v74, 7
    %v76 = vsub.s32 1, %v75
    %v77 = vrot.slane %v68, %v76
    %v96 = vunpack.c.l.b16 %v52
    %v97 = vunpack.c.h.b16 %v52
    %v98 = vunpack.c.l.b16 %v53
    %v99 = vunpack.c.h.b16 %v53
    %v100 = vunpack.c.l.b16 %v54
    %v101 = vunpack.c.h.b16 %v54
    %v102 = vunpack.c.l.b16 %v55
    %v103 = vunpack.c.h.b16 %v55
    %v104 = vunpack.c.l.b16 %v56
    %v105 = vunpack.c.h.b16 %v56
    %v106 = vunpack.c.l.b16 %v57
    %v107 = vunpack.c.h.b16 %v57
    %v108 = vunpack.c.l.b16 %v58
    %v109 = vunpack.c.h.b16 %v58
    %v110 = vunpack.c.l.b16 %v59
    %v111 = vunpack.c.h.b16 %v59
    %v112 = vunpack.c.l.b16 %v60
    %v113 = vunpack.c.h.b16 %v60
    %v114 = vunpack.c.l.b16 %v61
    %v115 = vunpack.c.h.b16 %v61
    %v116 = vunpack.c.l.b16 %v62
    %v117 = vunpack.c.h.b16 %v62
    %v118 = vunpack.c.l.b16 %v63
    %v119 = vunpack.c.h.b16 %v63
    %v120 = vunpack.c.l.b16 %v64
    %v121 = vunpack.c.h.b16 %v64
    %v122 = vunpack.c.l.b16 %v65
    %v123 = vunpack.c.h.b16 %v65
    %v124 = vunpack.c.l.b16 %v66
    %v125 = vunpack.c.h.b16 %v66
    %v126 = vunpack.c.l.b16 %v67
    %v127 = vunpack.c.h.b16 %v67
    %v128 = vpack.c.b16 %v98, %v96
    %v129 = vpack.c.b16 %v99, %v97
    %v130 = vpack.c.b16 %v102, %v100
    %v131 = vpack.c.b16 %v103, %v101
    %v132 = vpack.c.b16 %v106, %v104
    %v133 = vpack.c.b16 %v107, %v105
    %v134 = vpack.c.b16 %v110, %v108
    %v135 = vpack.c.b16 %v111, %v109
    %v136 = vpack.c.b16 %v114, %v112
    %v137 = vpack.c.b16 %v115, %v113
    %v138 = vpack.c.b16 %v118, %v116
    %v139 = vpack.c.b16 %v119, %v117
    %v140 = vpack.c.b16 %v122, %v120
    %v141 = vpack.c.b16 %v123, %v121
    %v142 = vpack.c.b16 %v126, %v124
    %v143 = vpack.c.b16 %v127, %v125
    %160 = vmatprep.subr.bf16.mxu0 %v143
    %161 = vmatpush1.bf16.msra.mxu0 %v142
    %162 = vmatprep.subr.bf16.mxu0 %v141
    %163 = vmatpush1.bf16.msra.mxu0 %v140
    %164 = vmatprep.subr.bf16.mxu0 %v139
    %165 = vmatpush1.bf16.msra.mxu0 %v138
    %166 = vmatprep.subr.bf16.mxu0 %v137
    %167 = vmatpush1.bf16.msra.mxu0 %v136
    %168 = vmatprep.subr.bf16.mxu0 %v135
    %169 = vmatpush1.bf16.msra.mxu0 %v134
    %170 = vmatprep.subr.bf16.mxu0 %v133
    %171 = vmatpush1.bf16.msra.mxu0 %v132
    %172 = vmatprep.subr.bf16.mxu0 %v131
    %173 = vmatpush1.bf16.msra.mxu0 %v130
    %174 = vmatprep.subr.bf16.mxu0 %v129
    %175 = vmatpush1.bf16.msra.mxu0 %v128
    %176 = vmatprep.subr.bf16.mxu0 0
    %177 = vmatpush2.bf16.msra.mxu0 0
    %178 = vmatprep.subr.bf16.mxu0 0
    %179 = vmatpush2.bf16.msra.mxu0 0
    %180 = vmatprep.subr.bf16.mxu0 0
    %181 = vmatpush2.bf16.msra.mxu0 0
    %182 = vmatprep.subr.bf16.mxu0 0
    %183 = vmatpush2.bf16.msra.mxu0 0
    %184 = vmatprep.subr.bf16.mxu0 0
    %185 = vmatpush2.bf16.msra.mxu0 0
    %186 = vmatprep.subr.bf16.mxu0 0
    %187 = vmatpush2.bf16.msra.mxu0 0
    %188 = vmatprep.subr.bf16.mxu0 0
    %189 = vmatpush2.bf16.msra.mxu0 0
    %190 = vmatprep.subr.bf16.mxu0 0
    %191 = vmatpush2.bf16.msra.mxu0 0
    %192 = vmatprep.mubr.bf16.mxu0 0
    %193 = vmatmul.mubr.bf16.gmra.mxu0 %v50
    %v194 = vpop.f32.mrf.mxu0
    %v195 = vadd.f32 %v73, %v194
    %v196 = vpop.f32.mrf.mxu0
    %v197 = vadd.f32 %v77, %v196
    %v198 = vpop.f32.mrf.mxu0
    %v199 = vpop.f32.mrf.mxu0
    %200 = vdwg.mxu0
    %v201 = vxor.u32 %v195, 2147483648
    %v202 = vmul.f32 %v201, 1.442695
    %v203 = vpow.pop %v202
    %v204 = vadd.f32 %v203, 1.0
    %v205 = vrcp.pop %v204
    %v206 = vmul.f32 1.0, %v205
    %v207 = vtanh.pop %v197
    %v208 = vxor.u32 %v197, 2147483648
    %v209 = vmul.f32 %v208, 1.442695
    %v210 = vpow.pop %v209
    %v211 = vadd.f32 %v210, 1.0
    %v212 = vrcp.pop %v211
    %v213 = vmul.f32 1.0, %v212
    %v214 = vsel %vm45, %v207, %v213
    %v215 = vmul.f32 %v206, 0.0
    %v216 = vmul.f32 %v206, %v214
    %218 = vrot.lane.b32.xlu0 %v216, 64
    %v219 = vpop.permute.xlu0 %218
    %v221 = vadd.f32 %v215, %v219
    %v222 = vtanh.pop %v221
    %v223 = vmul.f32 %v214, %v222
    %s224 = scalar_lea.vmem %s0, 2
    %v225 = vld [vmem:[%s224] sm:$0x3]
    %v226 = vpack.c.bf16 %v223, %v223
    %v229 = vsel %vm47, %v225, %v226
    %231 = vmatprep.subr.bf16.mxu0 %v143
    %232 = vmatpush1.bf16.msra.mxu0 %v142
    %233 = vmatprep.subr.bf16.mxu0 %v141
    %234 = vmatpush1.bf16.msra.mxu0 %v140
    %235 = vmatprep.subr.bf16.mxu0 %v139
    %236 = vmatpush1.bf16.msra.mxu0 %v138
    %237 = vmatprep.subr.bf16.mxu0 %v137
    %238 = vmatpush1.bf16.msra.mxu0 %v136
    %239 = vmatprep.subr.bf16.mxu0 %v135
    %240 = vmatpush1.bf16.msra.mxu0 %v134
    %241 = vmatprep.subr.bf16.mxu0 %v133
    %242 = vmatpush1.bf16.msra.mxu0 %v132
    %243 = vmatprep.subr.bf16.mxu0 %v131
    %244 = vmatpush1.bf16.msra.mxu0 %v130
    %245 = vmatprep.subr.bf16.mxu0 %v129
    %246 = vmatpush1.bf16.msra.mxu0 %v128
    %247 = vmatprep.subr.bf16.mxu0 0
    %248 = vmatpush2.bf16.msra.mxu0 0
    %249 = vmatprep.subr.bf16.mxu0 0
    %250 = vmatpush2.bf16.msra.mxu0 0
    %251 = vmatprep.subr.bf16.mxu0 0
    %252 = vmatpush2.bf16.msra.mxu0 0
    %253 = vmatprep.subr.bf16.mxu0 0
    %254 = vmatpush2.bf16.msra.mxu0 0
    %255 = vmatprep.subr.bf16.mxu0 0
    %256 = vmatpush2.bf16.msra.mxu0 0
    %257 = vmatprep.subr.bf16.mxu0 0
    %258 = vmatpush2.bf16.msra.mxu0 0
    %259 = vmatprep.subr.bf16.mxu0 0
    %260 = vmatpush2.bf16.msra.mxu0 0
    %261 = vmatprep.subr.bf16.mxu0 0
    %262 = vmatpush2.bf16.msra.mxu0 0
    %263 = vmatprep.mubr.bf16.mxu0 0
    %264 = vmatmul.mubr.bf16.gmra.mxu0 %v229
    %v265 = vpop.f32.mrf.mxu0
    %v266 = vadd.f32 %v73, %v265
    %v267 = vpop.f32.mrf.mxu0
    %v268 = vadd.f32 %v77, %v267
    %v269 = vpop.f32.mrf.mxu0
    %v270 = vpop.f32.mrf.mxu0
    %271 = vdwg.mxu0
    %v272 = vxor.u32 %v266, 2147483648
    %v273 = vmul.f32 %v272, 1.442695
    %v274 = vpow.pop %v273
    %v275 = vadd.f32 %v274, 1.0
    %v276 = vrcp.pop %v275
    %v277 = vmul.f32 1.0, %v276
    %v278 = vtanh.pop %v268
    %v279 = vxor.u32 %v268, 2147483648
    %v280 = vmul.f32 %v279, 1.442695
    %v281 = vpow.pop %v280
    %v282 = vadd.f32 %v281, 1.0
    %v283 = vrcp.pop %v282
    %v284 = vmul.f32 1.0, %v283
    %v285 = vsel %vm45, %v278, %v284
    %v286 = vmul.f32 %v277, %v221
    %v287 = vmul.f32 %v277, %v285
    %289 = vrot.lane.b32.xlu0 %v287, 64
    %v290 = vpop.permute.xlu0 %289
    %v292 = vadd.f32 %v286, %v290
    %v293 = vtanh.pop %v292
    %v294 = vmul.f32 %v285, %v293
    %296 = vrot.lane.b32.xlu0 %v226, 64
    %v297 = vpop.permute.xlu0 %296
    %v299 = vsel %vm47, %v297, 0
    %s301 = scalar_lea.vmem [#allocation3], 128
    %v302 = vld [vmem:[%s301] sm:$0xff]
    %v303 = vld [vmem:[%s301 + $0x8] sm:$0xff]
    %v304 = vld [vmem:[%s301 + $0x10] sm:$0xff]
    %v305 = vld [vmem:[%s301 + $0x18] sm:$0xff]
    %v306 = vld [vmem:[%s301 + $0x20] sm:$0xff]
    %v307 = vld [vmem:[%s301 + $0x28] sm:$0xff]
    %v308 = vld [vmem:[%s301 + $0x30] sm:$0xff]
    %v309 = vld [vmem:[%s301 + $0x38] sm:$0xff]
    %v310 = vld [vmem:[%s301 + $0x40] sm:$0xff]
    %v311 = vld [vmem:[%s301 + $0x48] sm:$0xff]
    %v312 = vld [vmem:[%s301 + $0x50] sm:$0xff]
    %v313 = vld [vmem:[%s301 + $0x58] sm:$0xff]
    %v314 = vld [vmem:[%s301 + $0x60] sm:$0xff]
    %v315 = vld [vmem:[%s301 + $0x68] sm:$0xff]
    %v316 = vld [vmem:[%s301 + $0x70] sm:$0xff]
    %v317 = vld [vmem:[%s301 + $0x78] sm:$0xff]
    %s318 = scalar_lea.vmem %s2, 2
    %v319 = vld [vmem:[%s318] sm:$0x3]
    %v321 = vlaneseq
    %v322 = vshrl.u32 %v321, 7
    %v323 = vsub.s32 0, %v322
    %v324 = vrot.slane %v319, %v323
    %v325 = vlaneseq
    %v326 = vshrl.u32 %v325, 7
    %v327 = vsub.s32 1, %v326
    %v328 = vrot.slane %v319, %v327
    %v347 = vunpack.c.l.b16 %v302
    %v348 = vunpack.c.h.b16 %v302
    %v349 = vunpack.c.l.b16 %v303
    %v350 = vunpack.c.h.b16 %v303
    %v351 = vunpack.c.l.b16 %v304
    %v352 = vunpack.c.h.b16 %v304
    %v353 = vunpack.c.l.b16 %v305
    %v354 = vunpack.c.h.b16 %v305
    %v355 = vunpack.c.l.b16 %v306
    %v356 = vunpack.c.h.b16 %v306
    %v357 = vunpack.c.l.b16 %v307
    %v358 = vunpack.c.h.b16 %v307
    %v359 = vunpack.c.l.b16 %v308
    %v360 = vunpack.c.h.b16 %v308
    %v361 = vunpack.c.l.b16 %v309
    %v362 = vunpack.c.h.b16 %v309
    %v363 = vunpack.c.l.b16 %v310
    %v364 = vunpack.c.h.b16 %v310
    %v365 = vunpack.c.l.b16 %v311
    %v366 = vunpack.c.h.b16 %v311
    %v367 = vunpack.c.l.b16 %v312
    %v368 = vunpack.c.h.b16 %v312
    %v369 = vunpack.c.l.b16 %v313
    %v370 = vunpack.c.h.b16 %v313
    %v371 = vunpack.c.l.b16 %v314
    %v372 = vunpack.c.h.b16 %v314
    %v373 = vunpack.c.l.b16 %v315
    %v374 = vunpack.c.h.b16 %v315
    %v375 = vunpack.c.l.b16 %v316
    %v376 = vunpack.c.h.b16 %v316
    %v377 = vunpack.c.l.b16 %v317
    %v378 = vunpack.c.h.b16 %v317
    %v379 = vpack.c.b16 %v349, %v347
    %v380 = vpack.c.b16 %v350, %v348
    %v381 = vpack.c.b16 %v353, %v351
    %v382 = vpack.c.b16 %v354, %v352
    %v383 = vpack.c.b16 %v357, %v355
    %v384 = vpack.c.b16 %v358, %v356
    %v385 = vpack.c.b16 %v361, %v359
    %v386 = vpack.c.b16 %v362, %v360
    %v387 = vpack.c.b16 %v365, %v363
    %v388 = vpack.c.b16 %v366, %v364
    %v389 = vpack.c.b16 %v369, %v367
    %v390 = vpack.c.b16 %v370, %v368
    %v391 = vpack.c.b16 %v373, %v371
    %v392 = vpack.c.b16 %v374, %v372
    %v393 = vpack.c.b16 %v377, %v375
    %v394 = vpack.c.b16 %v378, %v376
    %411 = vmatprep.subr.bf16.mxu0 %v394
    %412 = vmatpush1.bf16.msra.mxu0 %v393
    %413 = vmatprep.subr.bf16.mxu0 %v392
    %414 = vmatpush1.bf16.msra.mxu0 %v391
    %415 = vmatprep.subr.bf16.mxu0 %v390
    %416 = vmatpush1.bf16.msra.mxu0 %v389
    %417 = vmatprep.subr.bf16.mxu0 %v388
    %418 = vmatpush1.bf16.msra.mxu0 %v387
    %419 = vmatprep.subr.bf16.mxu0 %v386
    %420 = vmatpush1.bf16.msra.mxu0 %v385
    %421 = vmatprep.subr.bf16.mxu0 %v384
    %422 = vmatpush1.bf16.msra.mxu0 %v383
    %423 = vmatprep.subr.bf16.mxu0 %v382
    %424 = vmatpush1.bf16.msra.mxu0 %v381
    %425 = vmatprep.subr.bf16.mxu0 %v380
    %426 = vmatpush1.bf16.msra.mxu0 %v379
    %427 = vmatprep.subr.bf16.mxu0 0
    %428 = vmatpush2.bf16.msra.mxu0 0
    %429 = vmatprep.subr.bf16.mxu0 0
    %430 = vmatpush2.bf16.msra.mxu0 0
    %431 = vmatprep.subr.bf16.mxu0 0
    %432 = vmatpush2.bf16.msra.mxu0 0
    %433 = vmatprep.subr.bf16.mxu0 0
    %434 = vmatpush2.bf16.msra.mxu0 0
    %435 = vmatprep.subr.bf16.mxu0 0
    %436 = vmatpush2.bf16.msra.mxu0 0
    %437 = vmatprep.subr.bf16.mxu0 0
    %438 = vmatpush2.bf16.msra.mxu0 0
    %439 = vmatprep.subr.bf16.mxu0 0
    %440 = vmatpush2.bf16.msra.mxu0 0
    %441 = vmatprep.subr.bf16.mxu0 0
    %442 = vmatpush2.bf16.msra.mxu0 0
    %443 = vmatprep.mubr.bf16.mxu0 0
    %444 = vmatmul.mubr.bf16.gmra.mxu0 %v299
    %v445 = vpop.f32.mrf.mxu0
    %v446 = vadd.f32 %v324, %v445
    %v447 = vpop.f32.mrf.mxu0
    %v448 = vadd.f32 %v328, %v447
    %v449 = vpop.f32.mrf.mxu0
    %v450 = vpop.f32.mrf.mxu0
    %451 = vdwg.mxu0
    %v452 = vxor.u32 %v446, 2147483648
    %v453 = vmul.f32 %v452, 1.442695
    %v454 = vpow.pop %v453
    %v455 = vadd.f32 %v454, 1.0
    %v456 = vrcp.pop %v455
    %v457 = vmul.f32 1.0, %v456
    %v458 = vtanh.pop %v448
    %v459 = vxor.u32 %v448, 2147483648
    %v460 = vmul.f32 %v459, 1.442695
    %v461 = vpow.pop %v460
    %v462 = vadd.f32 %v461, 1.0
    %v463 = vrcp.pop %v462
    %v464 = vmul.f32 1.0, %v463
    %v465 = vsel %vm45, %v458, %v464
    %v466 = vmul.f32 %v457, 0.0
    %v467 = vmul.f32 %v457, %v465
    %469 = vrot.lane.b32.xlu0 %v467, 64
    %v470 = vpop.permute.xlu0 %469
    %v472 = vadd.f32 %v466, %v470
    %v473 = vtanh.pop %v472
    %v474 = vmul.f32 %v465, %v473
    %s475 = scalar_lea.vmem %s0, 4
    %v476 = vld [vmem:[%s475] sm:$0x3]
    %v477 = vpack.c.bf16 %v294, %v294
    %v480 = vsel %vm47, %v476, %v477
    %482 = vmatprep.subr.bf16.mxu0 %v143
    %483 = vmatpush1.bf16.msra.mxu0 %v142
    %484 = vmatprep.subr.bf16.mxu0 %v141
    %485 = vmatpush1.bf16.msra.mxu0 %v140
    %486 = vmatprep.subr.bf16.mxu0 %v139
    %487 = vmatpush1.bf16.msra.mxu0 %v138
    %488 = vmatprep.subr.bf16.mxu0 %v137
    %489 = vmatpush1.bf16.msra.mxu0 %v136
    %490 = vmatprep.subr.bf16.mxu0 %v135
    %491 = vmatpush1.bf16.msra.mxu0 %v134
    %492 = vmatprep.subr.bf16.mxu0 %v133
    %493 = vmatpush1.bf16.msra.mxu0 %v132
    %494 = vmatprep.subr.bf16.mxu0 %v131
    %495 = vmatpush1.bf16.msra.mxu0 %v130
    %496 = vmatprep.subr.bf16.mxu0 %v129
    %497 = vmatpush1.bf16.msra.mxu0 %v128
    %498 = vmatprep.subr.bf16.mxu0 0
    %499 = vmatpush2.bf16.msra.mxu0 0
    %500 = vmatprep.subr.bf16.mxu0 0
    %501 = vmatpush2.bf16.msra.mxu0 0
    %502 = vmatprep.subr.bf16.mxu0 0
    %503 = vmatpush2.bf16.msra.mxu0 0
    %504 = vmatprep.subr.bf16.mxu0 0
    %505 = vmatpush2.bf16.msra.mxu0 0
    %506 = vmatprep.subr.bf16.mxu0 0
    %507 = vmatpush2.bf16.msra.mxu0 0
    %508 = vmatprep.subr.bf16.mxu0 0
    %509 = vmatpush2.bf16.msra.mxu0 0
    %510 = vmatprep.subr.bf16.mxu0 0
    %511 = vmatpush2.bf16.msra.mxu0 0
    %512 = vmatprep.subr.bf16.mxu0 0
    %513 = vmatpush2.bf16.msra.mxu0 0
    %514 = vmatprep.mubr.bf16.mxu0 0
    %515 = vmatmul.mubr.bf16.gmra.mxu0 %v480
    %v516 = vpop.f32.mrf.mxu0
    %v517 = vadd.f32 %v73, %v516
    %v518 = vpop.f32.mrf.mxu0
    %v519 = vadd.f32 %v77, %v518
    %v520 = vpop.f32.mrf.mxu0
    %v521 = vpop.f32.mrf.mxu0
    %522 = vdwg.mxu0
    %v523 = vxor.u32 %v517, 2147483648
    %v524 = vmul.f32 %v523, 1.442695
    %v525 = vpow.pop %v524
    %v526 = vadd.f32 %v525, 1.0
    %v527 = vrcp.pop %v526
    %v528 = vmul.f32 1.0, %v527
    %v529 = vtanh.pop %v519
    %v530 = vxor.u32 %v519, 2147483648
    %v531 = vmul.f32 %v530, 1.442695
    %v532 = vpow.pop %v531
    %v533 = vadd.f32 %v532, 1.0
    %v534 = vrcp.pop %v533
    %v535 = vmul.f32 1.0, %v534
    %v536 = vsel %vm45, %v529, %v535
    %v537 = vmul.f32 %v528, %v292
    %v538 = vmul.f32 %v528, %v536
    %540 = vrot.lane.b32.xlu0 %v538, 64
    %v541 = vpop.permute.xlu0 %540
    %v543 = vadd.f32 %v537, %v541
    %v544 = vtanh.pop %v543
    %v545 = vmul.f32 %v536, %v544
    %v546 = vpack.c.bf16 %v474, %v474
    %548 = vrot.lane.b32.xlu0 %v477, 64
    %v549 = vpop.permute.xlu0 %548
    %v552 = vsel %vm47, %v549, %v546
    %554 = vmatprep.subr.bf16.mxu0 %v394
    %555 = vmatpush1.bf16.msra.mxu0 %v393
    %556 = vmatprep.subr.bf16.mxu0 %v392
    %557 = vmatpush1.bf16.msra.mxu0 %v391
    %558 = vmatprep.subr.bf16.mxu0 %v390
    %559 = vmatpush1.bf16.msra.mxu0 %v389
    %560 = vmatprep.subr.bf16.mxu0 %v388
    %561 = vmatpush1.bf16.msra.mxu0 %v387
    %562 = vmatprep.subr.bf16.mxu0 %v386
    %563 = vmatpush1.bf16.msra.mxu0 %v385
    %564 = vmatprep.subr.bf16.mxu0 %v384
    %565 = vmatpush1.bf16.msra.mxu0 %v383
    %566 = vmatprep.subr.bf16.mxu0 %v382
    %567 = vmatpush1.bf16.msra.mxu0 %v381
    %568 = vmatprep.subr.bf16.mxu0 %v380
    %569 = vmatpush1.bf16.msra.mxu0 %v379
    %570 = vmatprep.subr.bf16.mxu0 0
    %571 = vmatpush2.bf16.msra.mxu0 0
    %572 = vmatprep.subr.bf16.mxu0 0
    %573 = vmatpush2.bf16.msra.mxu0 0
    %574 = vmatprep.subr.bf16.mxu0 0
    %575 = vmatpush2.bf16.msra.mxu0 0
    %576 = vmatprep.subr.bf16.mxu0 0
    %577 = vmatpush2.bf16.msra.mxu0 0
    %578 = vmatprep.subr.bf16.mxu0 0
    %579 = vmatpush2.bf16.msra.mxu0 0
    %580 = vmatprep.subr.bf16.mxu0 0
    %581 = vmatpush2.bf16.msra.mxu0 0
    %582 = vmatprep.subr.bf16.mxu0 0
    %583 = vmatpush2.bf16.msra.mxu0 0
    %584 = vmatprep.subr.bf16.mxu0 0
    %585 = vmatpush2.bf16.msra.mxu0 0
    %586 = vmatprep.mubr.bf16.mxu0 0
    %587 = vmatmul.mubr.bf16.gmra.mxu0 %v552
    %v588 = vpop.f32.mrf.mxu0
    %v589 = vadd.f32 %v324, %v588
    %v590 = vpop.f32.mrf.mxu0
    %v591 = vadd.f32 %v328, %v590
    %v592 = vpop.f32.mrf.mxu0
    %v593 = vpop.f32.mrf.mxu0
    %594 = vdwg.mxu0
    %v595 = vxor.u32 %v589, 2147483648
    %v596 = vmul.f32 %v595, 1.442695
    %v597 = vpow.pop %v596
    %v598 = vadd.f32 %v597, 1.0
    %v599 = vrcp.pop %v598
    %v600 = vmul.f32 1.0, %v599
    %v601 = vtanh.pop %v591
    %v602 = vxor.u32 %v591, 2147483648
    %v603 = vmul.f32 %v602, 1.442695
    %v604 = vpow.pop %v603
    %v605 = vadd.f32 %v604, 1.0
    %v606 = vrcp.pop %v605
    %v607 = vmul.f32 1.0, %v606
    %v608 = vsel %vm45, %v601, %v607
    %v609 = vmul.f32 %v600, %v472
    %v610 = vmul.f32 %v600, %v608
    %612 = vrot.lane.b32.xlu0 %v610, 64
    %v613 = vpop.permute.xlu0 %612
    %v615 = vadd.f32 %v609, %v613
    %v616 = vtanh.pop %v615
    %v617 = vmul.f32 %v608, %v616
    %619 = vrot.lane.b32.xlu0 %v546, 64
    %v620 = vpop.permute.xlu0 %619
    %v622 = vsel %vm47, %v620, 0
    %s624 = scalar_lea.vmem [#allocation3], 256
    %v625 = vld [vmem:[%s624] sm:$0xff]
    %v626 = vld [vmem:[%s624 + $0x8] sm:$0xff]
    %v627 = vld [vmem:[%s624 + $0x10] sm:$0xff]
    %v628 = vld [vmem:[%s624 + $0x18] sm:$0xff]
    %v629 = vld [vmem:[%s624 + $0x20] sm:$0xff]
    %v630 = vld [vmem:[%s624 + $0x28] sm:$0xff]
    %v631 = vld [vmem:[%s624 + $0x30] sm:$0xff]
    %v632 = vld [vmem:[%s624 + $0x38] sm:$0xff]
    %v633 = vld [vmem:[%s624 + $0x40] sm:$0xff]
    %v634 = vld [vmem:[%s624 + $0x48] sm:$0xff]
    %v635 = vld [vmem:[%s624 + $0x50] sm:$0xff]
    %v636 = vld [vmem:[%s624 + $0x58] sm:$0xff]
    %v637 = vld [vmem:[%s624 + $0x60] sm:$0xff]
    %v638 = vld [vmem:[%s624 + $0x68] sm:$0xff]
    %v639 = vld [vmem:[%s624 + $0x70] sm:$0xff]
    %v640 = vld [vmem:[%s624 + $0x78] sm:$0xff]
    %s641 = scalar_lea.vmem %s2, 4
    %v642 = vld [vmem:[%s641] sm:$0x3]
    %v644 = vlaneseq
    %v645 = vshrl.u32 %v644, 7
    %v646 = vsub.s32 0, %v645
    %v647 = vrot.slane %v642, %v646
    %v648 = vlaneseq
    %v649 = vshrl.u32 %v648, 7
    %v650 = vsub.s32 1, %v649
    %v651 = vrot.slane %v642, %v650
    %v670 = vunpack.c.l.b16 %v625
    %v671 = vunpack.c.h.b16 %v625
    %v672 = vunpack.c.l.b16 %v626
    %v673 = vunpack.c.h.b16 %v626
    %v674 = vunpack.c.l.b16 %v627
    %v675 = vunpack.c.h.b16 %v627
    %v676 = vunpack.c.l.b16 %v628
    %v677 = vunpack.c.h.b16 %v628
    %v678 = vunpack.c.l.b16 %v629
    %v679 = vunpack.c.h.b16 %v629
    %v680 = vunpack.c.l.b16 %v630
    %v681 = vunpack.c.h.b16 %v630
    %v682 = vunpack.c.l.b16 %v631
    %v683 = vunpack.c.h.b16 %v631
    %v684 = vunpack.c.l.b16 %v632
    %v685 = vunpack.c.h.b16 %v632
    %v686 = vunpack.c.l.b16 %v633
    %v687 = vunpack.c.h.b16 %v633
    %v688 = vunpack.c.l.b16 %v634
    %v689 = vunpack.c.h.b16 %v634
    %v690 = vunpack.c.l.b16 %v635
    %v691 = vunpack.c.h.b16 %v635
    %v692 = vunpack.c.l.b16 %v636
    %v693 = vunpack.c.h.b16 %v636
    %v694 = vunpack.c.l.b16 %v637
    %v695 = vunpack.c.h.b16 %v637
    %v696 = vunpack.c.l.b16 %v638
    %v697 = vunpack.c.h.b16 %v638
    %v698 = vunpack.c.l.b16 %v639
    %v699 = vunpack.c.h.b16 %v639
    %v700 = vunpack.c.l.b16 %v640
    %v701 = vunpack.c.h.b16 %v640
    %v702 = vpack.c.b16 %v672, %v670
    %v703 = vpack.c.b16 %v673, %v671
    %v704 = vpack.c.b16 %v676, %v674
    %v705 = vpack.c.b16 %v677, %v675
    %v706 = vpack.c.b16 %v680, %v678
    %v707 = vpack.c.b16 %v681, %v679
    %v708 = vpack.c.b16 %v684, %v682
    %v709 = vpack.c.b16 %v685, %v683
    %v710 = vpack.c.b16 %v688, %v686
    %v711 = vpack.c.b16 %v689, %v687
    %v712 = vpack.c.b16 %v692, %v690
    %v713 = vpack.c.b16 %v693, %v691
    %v714 = vpack.c.b16 %v696, %v694
    %v715 = vpack.c.b16 %v697, %v695
    %v716 = vpack.c.b16 %v700, %v698
    %v717 = vpack.c.b16 %v701, %v699
    %734 = vmatprep.subr.bf16.mxu0 %v717
    %735 = vmatpush1.bf16.msra.mxu0 %v716
    %736 = vmatprep.subr.bf16.mxu0 %v715
    %737 = vmatpush1.bf16.msra.mxu0 %v714
    %738 = vmatprep.subr.bf16.mxu0 %v713
    %739 = vmatpush1.bf16.msra.mxu0 %v712
    %740 = vmatprep.subr.bf16.mxu0 %v711
    %741 = vmatpush1.bf16.msra.mxu0 %v710
    %742 = vmatprep.subr.bf16.mxu0 %v709
    %743 = vmatpush1.bf16.msra.mxu0 %v708
    %744 = vmatprep.subr.bf16.mxu0 %v707
    %745 = vmatpush1.bf16.msra.mxu0 %v706
    %746 = vmatprep.subr.bf16.mxu0 %v705
    %747 = vmatpush1.bf16.msra.mxu0 %v704
    %748 = vmatprep.subr.bf16.mxu0 %v703
    %749 = vmatpush1.bf16.msra.mxu0 %v702
    %750 = vmatprep.subr.bf16.mxu0 0
    %751 = vmatpush2.bf16.msra.mxu0 0
    %752 = vmatprep.subr.bf16.mxu0 0
    %753 = vmatpush2.bf16.msra.mxu0 0
    %754 = vmatprep.subr.bf16.mxu0 0
    %755 = vmatpush2.bf16.msra.mxu0 0
    %756 = vmatprep.subr.bf16.mxu0 0
    %757 = vmatpush2.bf16.msra.mxu0 0
    %758 = vmatprep.subr.bf16.mxu0 0
    %759 = vmatpush2.bf16.msra.mxu0 0
    %760 = vmatprep.subr.bf16.mxu0 0
    %761 = vmatpush2.bf16.msra.mxu0 0
    %762 = vmatprep.subr.bf16.mxu0 0
    %763 = vmatpush2.bf16.msra.mxu0 0
    %764 = vmatprep.subr.bf16.mxu0 0
    %765 = vmatpush2.bf16.msra.mxu0 0
    %766 = vmatprep.mubr.bf16.mxu0 0
    %767 = vmatmul.mubr.bf16.gmra.mxu0 %v622
    %v768 = vpop.f32.mrf.mxu0
    %v769 = vadd.f32 %v647, %v768
    %v770 = vpop.f32.mrf.mxu0
    %v771 = vadd.f32 %v651, %v770
    %v772 = vpop.f32.mrf.mxu0
    %v773 = vpop.f32.mrf.mxu0
    %774 = vdwg.mxu0
    %v775 = vxor.u32 %v769, 2147483648
    %v776 = vmul.f32 %v775, 1.442695
    %v777 = vpow.pop %v776
    %v778 = vadd.f32 %v777, 1.0
    %v779 = vrcp.pop %v778
    %v780 = vmul.f32 1.0, %v779
    %v781 = vtanh.pop %v771
    %v782 = vxor.u32 %v771, 2147483648
    %v783 = vmul.f32 %v782, 1.442695
    %v784 = vpow.pop %v783
    %v785 = vadd.f32 %v784, 1.0
    %v786 = vrcp.pop %v785
    %v787 = vmul.f32 1.0, %v786
    %v788 = vsel %vm45, %v781, %v787
    %v789 = vmul.f32 %v780, 0.0
    %v790 = vmul.f32 %v780, %v788
    %792 = vrot.lane.b32.xlu0 %v790, 64
    %v793 = vpop.permute.xlu0 %792
    %v795 = vadd.f32 %v789, %v793
    %v796 = vtanh.pop %v795
    %v797 = vmul.f32 %v788, %v796
    %s798 = scalar_lea.vmem %s0, 6
    %v799 = vld [vmem:[%s798] sm:$0x3]
    %v800 = vpack.c.bf16 %v545, %v545
    %v803 = vsel %vm47, %v799, %v800
    %805 = vmatprep.subr.bf16.mxu0 %v143
    %806 = vmatpush1.bf16.msra.mxu0 %v142
    %807 = vmatprep.subr.bf16.mxu0 %v141
    %808 = vmatpush1.bf16.msra.mxu0 %v140
    %809 = vmatprep.subr.bf16.mxu0 %v139
    %810 = vmatpush1.bf16.msra.mxu0 %v138
    %811 = vmatprep.subr.bf16.mxu0 %v137
    %812 = vmatpush1.bf16.msra.mxu0 %v136
    %813 = vmatprep.subr.bf16.mxu0 %v135
    %814 = vmatpush1.bf16.msra.mxu0 %v134
    %815 = vmatprep.subr.bf16.mxu0 %v133
    %816 = vmatpush1.bf16.msra.mxu0 %v132
    %817 = vmatprep.subr.bf16.mxu0 %v131
    %818 = vmatpush1.bf16.msra.mxu0 %v130
    %819 = vmatprep.subr.bf16.mxu0 %v129
    %820 = vmatpush1.bf16.msra.mxu0 %v128
    %821 = vmatprep.subr.bf16.mxu0 0
    %822 = vmatpush2.bf16.msra.mxu0 0
    %823 = vmatprep.subr.bf16.mxu0 0
    %824 = vmatpush2.bf16.msra.mxu0 0
    %825 = vmatprep.subr.bf16.mxu0 0
    %826 = vmatpush2.bf16.msra.mxu0 0
    %827 = vmatprep.subr.bf16.mxu0 0
    %828 = vmatpush2.bf16.msra.mxu0 0
    %829 = vmatprep.subr.bf16.mxu0 0
    %830 = vmatpush2.bf16.msra.mxu0 0
    %831 = vmatprep.subr.bf16.mxu0 0
    %832 = vmatpush2.bf16.msra.mxu0 0
    %833 = vmatprep.subr.bf16.mxu0 0
    %834 = vmatpush2.bf16.msra.mxu0 0
    %835 = vmatprep.subr.bf16.mxu0 0
    %836 = vmatpush2.bf16.msra.mxu0 0
    %837 = vmatprep.mubr.bf16.mxu0 0
    %838 = vmatmul.mubr.bf16.gmra.mxu0 %v803
    %v839 = vpop.f32.mrf.mxu0
    %v840 = vadd.f32 %v73, %v839
    %v841 = vpop.f32.mrf.mxu0
    %v842 = vadd.f32 %v77, %v841
    %v843 = vpop.f32.mrf.mxu0
    %v844 = vpop.f32.mrf.mxu0
    %845 = vdwg.mxu0
    %v846 = vxor.u32 %v840, 2147483648
    %v847 = vmul.f32 %v846, 1.442695
    %v848 = vpow.pop %v847
    %v849 = vadd.f32 %v848, 1.0
    %v850 = vrcp.pop %v849
    %v851 = vmul.f32 1.0, %v850
    %v852 = vtanh.pop %v842
    %v853 = vxor.u32 %v842, 2147483648
    %v854 = vmul.f32 %v853, 1.442695
    %v855 = vpow.pop %v854
    %v856 = vadd.f32 %v855, 1.0
    %v857 = vrcp.pop %v856
    %v858 = vmul.f32 1.0, %v857
    %v859 = vsel %vm45, %v852, %v858
    %v860 = vmul.f32 %v851, %v543
    %v861 = vmul.f32 %v851, %v859
    %863 = vrot.lane.b32.xlu0 %v861, 64
    %v864 = vpop.permute.xlu0 %863
    %v866 = vadd.f32 %v860, %v864
    %v867 = vtanh.pop %v866
    %v868 = vmul.f32 %v859, %v867
    %v869 = vpack.c.bf16 %v617, %v617
    %871 = vrot.lane.b32.xlu0 %v800, 64
    %v872 = vpop.permute.xlu0 %871
    %v875 = vsel %vm47, %v872, %v869
    %877 = vmatprep.subr.bf16.mxu0 %v394
    %878 = vmatpush1.bf16.msra.mxu0 %v393
    %879 = vmatprep.subr.bf16.mxu0 %v392
    %880 = vmatpush1.bf16.msra.mxu0 %v391
    %881 = vmatprep.subr.bf16.mxu0 %v390
    %882 = vmatpush1.bf16.msra.mxu0 %v389
    %883 = vmatprep.subr.bf16.mxu0 %v388
    %884 = vmatpush1.bf16.msra.mxu0 %v387
    %885 = vmatprep.subr.bf16.mxu0 %v386
    %886 = vmatpush1.bf16.msra.mxu0 %v385
    %887 = vmatprep.subr.bf16.mxu0 %v384
    %888 = vmatpush1.bf16.msra.mxu0 %v383
    %889 = vmatprep.subr.bf16.mxu0 %v382
    %890 = vmatpush1.bf16.msra.mxu0 %v381
    %891 = vmatprep.subr.bf16.mxu0 %v380
    %892 = vmatpush1.bf16.msra.mxu0 %v379
    %893 = vmatprep.subr.bf16.mxu0 0
    %894 = vmatpush2.bf16.msra.mxu0 0
    %895 = vmatprep.subr.bf16.mxu0 0
    %896 = vmatpush2.bf16.msra.mxu0 0
    %897 = vmatprep.subr.bf16.mxu0 0
    %898 = vmatpush2.bf16.msra.mxu0 0
    %899 = vmatprep.subr.bf16.mxu0 0
    %900 = vmatpush2.bf16.msra.mxu0 0
    %901 = vmatprep.subr.bf16.mxu0 0
    %902 = vmatpush2.bf16.msra.mxu0 0
    %903 = vmatprep.subr.bf16.mxu0 0
    %904 = vmatpush2.bf16.msra.mxu0 0
    %905 = vmatprep.subr.bf16.mxu0 0
    %906 = vmatpush2.bf16.msra.mxu0 0
    %907 = vmatprep.subr.bf16.mxu0 0
    %908 = vmatpush2.bf16.msra.mxu0 0
    %909 = vmatprep.mubr.bf16.mxu0 0
    %910 = vmatmul.mubr.bf16.gmra.mxu0 %v875
    %v911 = vpop.f32.mrf.mxu0
    %v912 = vadd.f32 %v324, %v911
    %v913 = vpop.f32.mrf.mxu0
    %v914 = vadd.f32 %v328, %v913
    %v915 = vpop.f32.mrf.mxu0
    %v916 = vpop.f32.mrf.mxu0
    %917 = vdwg.mxu0
    %v918 = vxor.u32 %v912, 2147483648
    %v919 = vmul.f32 %v918, 1.442695
    %v920 = vpow.pop %v919
    %v921 = vadd.f32 %v920, 1.0
    %v922 = vrcp.pop %v921
    %v923 = vmul.f32 1.0, %v922
    %v924 = vtanh.pop %v914
    %v925 = vxor.u32 %v914, 2147483648
    %v926 = vmul.f32 %v925, 1.442695
    %v927 = vpow.pop %v926
    %v928 = vadd.f32 %v927, 1.0
    %v929 = vrcp.pop %v928
    %v930 = vmul.f32 1.0, %v929
    %v931 = vsel %vm45, %v924, %v930
    %v932 = vmul.f32 %v923, %v615
    %v933 = vmul.f32 %v923, %v931
    %935 = vrot.lane.b32.xlu0 %v933, 64
    %v936 = vpop.permute.xlu0 %935
    %v938 = vadd.f32 %v932, %v936
    %v939 = vtanh.pop %v938
    %v940 = vmul.f32 %v931, %v939
    %v941 = vpack.c.bf16 %v797, %v797
    %943 = vrot.lane.b32.xlu0 %v869, 64
    %v944 = vpop.permute.xlu0 %943
    %v947 = vsel %vm47, %v944, %v941
    %949 = vmatprep.subr.bf16.mxu0 %v717
    %950 = vmatpush1.bf16.msra.mxu0 %v716
    %951 = vmatprep.subr.bf16.mxu0 %v715
    %952 = vmatpush1.bf16.msra.mxu0 %v714
    %953 = vmatprep.subr.bf16.mxu0 %v713
    %954 = vmatpush1.bf16.msra.mxu0 %v712
    %955 = vmatprep.subr.bf16.mxu0 %v711
    %956 = vmatpush1.bf16.msra.mxu0 %v710
    %957 = vmatprep.subr.bf16.mxu0 %v709
    %958 = vmatpush1.bf16.msra.mxu0 %v708
    %959 = vmatprep.subr.bf16.mxu0 %v707
    %960 = vmatpush1.bf16.msra.mxu0 %v706
    %961 = vmatprep.subr.bf16.mxu0 %v705
    %962 = vmatpush1.bf16.msra.mxu0 %v704
    %963 = vmatprep.subr.bf16.mxu0 %v703
    %964 = vmatpush1.bf16.msra.mxu0 %v702
    %965 = vmatprep.subr.bf16.mxu0 0
    %966 = vmatpush2.bf16.msra.mxu0 0
    %967 = vmatprep.subr.bf16.mxu0 0
    %968 = vmatpush2.bf16.msra.mxu0 0
    %969 = vmatprep.subr.bf16.mxu0 0
    %970 = vmatpush2.bf16.msra.mxu0 0
    %971 = vmatprep.subr.bf16.mxu0 0
    %972 = vmatpush2.bf16.msra.mxu0 0
    %973 = vmatprep.subr.bf16.mxu0 0
    %974 = vmatpush2.bf16.msra.mxu0 0
    %975 = vmatprep.subr.bf16.mxu0 0
    %976 = vmatpush2.bf16.msra.mxu0 0
    %977 = vmatprep.subr.bf16.mxu0 0
    %978 = vmatpush2.bf16.msra.mxu0 0
    %979 = vmatprep.subr.bf16.mxu0 0
    %980 = vmatpush2.bf16.msra.mxu0 0
    %981 = vmatprep.mubr.bf16.mxu0 0
    %982 = vmatmul.mubr.bf16.gmra.mxu0 %v947
    %v983 = vpop.f32.mrf.mxu0
    %v984 = vadd.f32 %v647, %v983
    %v985 = vpop.f32.mrf.mxu0
    %v986 = vadd.f32 %v651, %v985
    %v987 = vpop.f32.mrf.mxu0
    %v988 = vpop.f32.mrf.mxu0
    %989 = vdwg.mxu0
    %v990 = vxor.u32 %v984, 2147483648
    %v991 = vmul.f32 %v990, 1.442695
    %v992 = vpow.pop %v991
    %v993 = vadd.f32 %v992, 1.0
    %v994 = vrcp.pop %v993
    %v995 = vmul.f32 1.0, %v994
    %v996 = vtanh.pop %v986
    %v997 = vxor.u32 %v986, 2147483648
    %v998 = vmul.f32 %v997, 1.442695
    %v999 = vpow.pop %v998
    %v1000 = vadd.f32 %v999, 1.0
    %v1001 = vrcp.pop %v1000
    %v1002 = vmul.f32 1.0, %v1001
    %v1003 = vsel %vm45, %v996, %v1002
    %v1004 = vmul.f32 %v995, %v795
    %v1005 = vmul.f32 %v995, %v1003
    %1007 = vrot.lane.b32.xlu0 %v1005, 64
    %v1008 = vpop.permute.xlu0 %1007
    %v1010 = vadd.f32 %v1004, %v1008
    %v1011 = vtanh.pop %v1010
    %v1012 = vmul.f32 %v1003, %v1011
    %s1013 = scalar_lea.vmem %s0, 8
    %v1014 = vld [vmem:[%s1013] sm:$0x3]
    %v1015 = vpack.c.bf16 %v868, %v868
    %v1018 = vsel %vm47, %v1014, %v1015
    %1020 = vmatprep.subr.bf16.mxu0 %v143
    %1021 = vmatpush1.bf16.msra.mxu0 %v142
    %1022 = vmatprep.subr.bf16.mxu0 %v141
    %1023 = vmatpush1.bf16.msra.mxu0 %v140
    %1024 = vmatprep.subr.bf16.mxu0 %v139
    %1025 = vmatpush1.bf16.msra.mxu0 %v138
    %1026 = vmatprep.subr.bf16.mxu0 %v137
    %1027 = vmatpush1.bf16.msra.mxu0 %v136
    %1028 = vmatprep.subr.bf16.mxu0 %v135
    %1029 = vmatpush1.bf16.msra.mxu0 %v134
    %1030 = vmatprep.subr.bf16.mxu0 %v133
    %1031 = vmatpush1.bf16.msra.mxu0 %v132
    %1032 = vmatprep.subr.bf16.mxu0 %v131
    %1033 = vmatpush1.bf16.msra.mxu0 %v130
    %1034 = vmatprep.subr.bf16.mxu0 %v129
    %1035 = vmatpush1.bf16.msra.mxu0 %v128
    %1036 = vmatprep.subr.bf16.mxu0 0
    %1037 = vmatpush2.bf16.msra.mxu0 0
    %1038 = vmatprep.subr.bf16.mxu0 0
    %1039 = vmatpush2.bf16.msra.mxu0 0
    %1040 = vmatprep.subr.bf16.mxu0 0
    %1041 = vmatpush2.bf16.msra.mxu0 0
    %1042 = vmatprep.subr.bf16.mxu0 0
    %1043 = vmatpush2.bf16.msra.mxu0 0
    %1044 = vmatprep.subr.bf16.mxu0 0
    %1045 = vmatpush2.bf16.msra.mxu0 0
    %1046 = vmatprep.subr.bf16.mxu0 0
    %1047 = vmatpush2.bf16.msra.mxu0 0
    %1048 = vmatprep.subr.bf16.mxu0 0
    %1049 = vmatpush2.bf16.msra.mxu0 0
    %1050 = vmatprep.subr.bf16.mxu0 0
    %1051 = vmatpush2.bf16.msra.mxu0 0
    %1052 = vmatprep.mubr.bf16.mxu0 0
    %1053 = vmatmul.mubr.bf16.gmra.mxu0 %v1018
    %v1054 = vpop.f32.mrf.mxu0
    %v1055 = vadd.f32 %v73, %v1054
    %v1056 = vpop.f32.mrf.mxu0
    %v1057 = vadd.f32 %v77, %v1056
    %v1058 = vpop.f32.mrf.mxu0
    %v1059 = vpop.f32.mrf.mxu0
    %1060 = vdwg.mxu0
    %v1061 = vxor.u32 %v1055, 2147483648
    %v1062 = vmul.f32 %v1061, 1.442695
    %v1063 = vpow.pop %v1062
    %v1064 = vadd.f32 %v1063, 1.0
    %v1065 = vrcp.pop %v1064
    %v1066 = vmul.f32 1.0, %v1065
    %v1067 = vtanh.pop %v1057
    %v1068 = vxor.u32 %v1057, 2147483648
    %v1069 = vmul.f32 %v1068, 1.442695
    %v1070 = vpow.pop %v1069
    %v1071 = vadd.f32 %v1070, 1.0
    %v1072 = vrcp.pop %v1071
    %v1073 = vmul.f32 1.0, %v1072
    %v1074 = vsel %vm45, %v1067, %v1073
    %v1075 = vmul.f32 %v1066, %v866
    %v1076 = vmul.f32 %v1066, %v1074
    %1078 = vrot.lane.b32.xlu0 %v1076, 64
    %v1079 = vpop.permute.xlu0 %1078
    %v1081 = vadd.f32 %v1075, %v1079
    %v1082 = vtanh.pop %v1081
    %v1083 = vmul.f32 %v1074, %v1082
    %v1084 = vpack.c.bf16 %v940, %v940
    %1086 = vrot.lane.b32.xlu0 %v1015, 64
    %v1087 = vpop.permute.xlu0 %1086
    %v1090 = vsel %vm47, %v1087, %v1084
    %1092 = vmatprep.subr.bf16.mxu0 %v394
    %1093 = vmatpush1.bf16.msra.mxu0 %v393
    %1094 = vmatprep.subr.bf16.mxu0 %v392
    %1095 = vmatpush1.bf16.msra.mxu0 %v391
    %1096 = vmatprep.subr.bf16.mxu0 %v390
    %1097 = vmatpush1.bf16.msra.mxu0 %v389
    %1098 = vmatprep.subr.bf16.mxu0 %v388
    %1099 = vmatpush1.bf16.msra.mxu0 %v387
    %1100 = vmatprep.subr.bf16.mxu0 %v386
    %1101 = vmatpush1.bf16.msra.mxu0 %v385
    %1102 = vmatprep.subr.bf16.mxu0 %v384
    %1103 = vmatpush1.bf16.msra.mxu0 %v383
    %1104 = vmatprep.subr.bf16.mxu0 %v382
    %1105 = vmatpush1.bf16.msra.mxu0 %v381
    %1106 = vmatprep.subr.bf16.mxu0 %v380
    %1107 = vmatpush1.bf16.msra.mxu0 %v379
    %1108 = vmatprep.subr.bf16.mxu0 0
    %1109 = vmatpush2.bf16.msra.mxu0 0
    %1110 = vmatprep.subr.bf16.mxu0 0
    %1111 = vmatpush2.bf16.msra.mxu0 0
    %1112 = vmatprep.subr.bf16.mxu0 0
    %1113 = vmatpush2.bf16.msra.mxu0 0
    %1114 = vmatprep.subr.bf16.mxu0 0
    %1115 = vmatpush2.bf16.msra.mxu0 0
    %1116 = vmatprep.subr.bf16.mxu0 0
    %1117 = vmatpush2.bf16.msra.mxu0 0
    %1118 = vmatprep.subr.bf16.mxu0 0
    %1119 = vmatpush2.bf16.msra.mxu0 0
    %1120 = vmatprep.subr.bf16.mxu0 0
    %1121 = vmatpush2.bf16.msra.mxu0 0
    %1122 = vmatprep.subr.bf16.mxu0 0
    %1123 = vmatpush2.bf16.msra.mxu0 0
    %1124 = vmatprep.mubr.bf16.mxu0 0
    %1125 = vmatmul.mubr.bf16.gmra.mxu0 %v1090
    %v1126 = vpop.f32.mrf.mxu0
    %v1127 = vadd.f32 %v324, %v1126
    %v1128 = vpop.f32.mrf.mxu0
    %v1129 = vadd.f32 %v328, %v1128
    %v1130 = vpop.f32.mrf.mxu0
    %v1131 = vpop.f32.mrf.mxu0
    %1132 = vdwg.mxu0
    %v1133 = vxor.u32 %v1127, 2147483648
    %v1134 = vmul.f32 %v1133, 1.442695
    %v1135 = vpow.pop %v1134
    %v1136 = vadd.f32 %v1135, 1.0
    %v1137 = vrcp.pop %v1136
    %v1138 = vmul.f32 1.0, %v1137
    %v1139 = vtanh.pop %v1129
    %v1140 = vxor.u32 %v1129, 2147483648
    %v1141 = vmul.f32 %v1140, 1.442695
    %v1142 = vpow.pop %v1141
    %v1143 = vadd.f32 %v1142, 1.0
    %v1144 = vrcp.pop %v1143
    %v1145 = vmul.f32 1.0, %v1144
    %v1146 = vsel %vm45, %v1139, %v1145
    %v1147 = vmul.f32 %v1138, %v938
    %v1148 = vmul.f32 %v1138, %v1146
    %1150 = vrot.lane.b32.xlu0 %v1148, 64
    %v1151 = vpop.permute.xlu0 %1150
    %v1153 = vadd.f32 %v1147, %v1151
    %v1154 = vtanh.pop %v1153
    %v1155 = vmul.f32 %v1146, %v1154
    %v1156 = vpack.c.bf16 %v1012, %v1012
    %1158 = vrot.lane.b32.xlu0 %v1084, 64
    %v1159 = vpop.permute.xlu0 %1158
    %v1162 = vsel %vm47, %v1159, %v1156
    %1164 = vmatprep.subr.bf16.mxu0 %v717
    %1165 = vmatpush1.bf16.msra.mxu0 %v716
    %1166 = vmatprep.subr.bf16.mxu0 %v715
    %1167 = vmatpush1.bf16.msra.mxu0 %v714
    %1168 = vmatprep.subr.bf16.mxu0 %v713
    %1169 = vmatpush1.bf16.msra.mxu0 %v712
    %1170 = vmatprep.subr.bf16.mxu0 %v711
    %1171 = vmatpush1.bf16.msra.mxu0 %v710
    %1172 = vmatprep.subr.bf16.mxu0 %v709
    %1173 = vmatpush1.bf16.msra.mxu0 %v708
    %1174 = vmatprep.subr.bf16.mxu0 %v707
    %1175 = vmatpush1.bf16.msra.mxu0 %v706
    %1176 = vmatprep.subr.bf16.mxu0 %v705
    %1177 = vmatpush1.bf16.msra.mxu0 %v704
    %1178 = vmatprep.subr.bf16.mxu0 %v703
    %1179 = vmatpush1.bf16.msra.mxu0 %v702
    %1180 = vmatprep.subr.bf16.mxu0 0
    %1181 = vmatpush2.bf16.msra.mxu0 0
    %1182 = vmatprep.subr.bf16.mxu0 0
    %1183 = vmatpush2.bf16.msra.mxu0 0
    %1184 = vmatprep.subr.bf16.mxu0 0
    %1185 = vmatpush2.bf16.msra.mxu0 0
    %1186 = vmatprep.subr.bf16.mxu0 0
    %1187 = vmatpush2.bf16.msra.mxu0 0
    %1188 = vmatprep.subr.bf16.mxu0 0
    %1189 = vmatpush2.bf16.msra.mxu0 0
    %1190 = vmatprep.subr.bf16.mxu0 0
    %1191 = vmatpush2.bf16.msra.mxu0 0
    %1192 = vmatprep.subr.bf16.mxu0 0
    %1193 = vmatpush2.bf16.msra.mxu0 0
    %1194 = vmatprep.subr.bf16.mxu0 0
    %1195 = vmatpush2.bf16.msra.mxu0 0
    %1196 = vmatprep.mubr.bf16.mxu0 0
    %1197 = vmatmul.mubr.bf16.gmra.mxu0 %v1162
    %v1198 = vpop.f32.mrf.mxu0
    %v1199 = vadd.f32 %v647, %v1198
    %v1200 = vpop.f32.mrf.mxu0
    %v1201 = vadd.f32 %v651, %v1200
    %v1202 = vpop.f32.mrf.mxu0
    %v1203 = vpop.f32.mrf.mxu0
    %1204 = vdwg.mxu0
    %v1205 = vxor.u32 %v1199, 2147483648
    %v1206 = vmul.f32 %v1205, 1.442695
    %v1207 = vpow.pop %v1206
    %v1208 = vadd.f32 %v1207, 1.0
    %v1209 = vrcp.pop %v1208
    %v1210 = vmul.f32 1.0, %v1209
    %v1211 = vtanh.pop %v1201
    %v1212 = vxor.u32 %v1201, 2147483648
    %v1213 = vmul.f32 %v1212, 1.442695
    %v1214 = vpow.pop %v1213
    %v1215 = vadd.f32 %v1214, 1.0
    %v1216 = vrcp.pop %v1215
    %v1217 = vmul.f32 1.0, %v1216
    %v1218 = vsel %vm45, %v1211, %v1217
    %v1219 = vmul.f32 %v1210, %v1010
    %v1220 = vmul.f32 %v1210, %v1218
    %1222 = vrot.lane.b32.xlu0 %v1220, 64
    %v1223 = vpop.permute.xlu0 %1222
    %v1225 = vadd.f32 %v1219, %v1223
    %v1226 = vtanh.pop %v1225
    %v1227 = vmul.f32 %v1218, %v1226
    %s1228 = scalar_lea.vmem %s0, 10
    %v1229 = vld [vmem:[%s1228] sm:$0x3]
    %v1230 = vpack.c.bf16 %v1083, %v1083
    %v1233 = vsel %vm47, %v1229, %v1230
    %1235 = vmatprep.subr.bf16.mxu0 %v143
    %1236 = vmatpush1.bf16.msra.mxu0 %v142
    %1237 = vmatprep.subr.bf16.mxu0 %v141
    %1238 = vmatpush1.bf16.msra.mxu0 %v140
    %1239 = vmatprep.subr.bf16.mxu0 %v139
    %1240 = vmatpush1.bf16.msra.mxu0 %v138
    %1241 = vmatprep.subr.bf16.mxu0 %v137
    %1242 = vmatpush1.bf16.msra.mxu0 %v136
    %1243 = vmatprep.subr.bf16.mxu0 %v135
    %1244 = vmatpush1.bf16.msra.mxu0 %v134
    %1245 = vmatprep.subr.bf16.mxu0 %v133
    %1246 = vmatpush1.bf16.msra.mxu0 %v132
    %1247 = vmatprep.subr.bf16.mxu0 %v131
    %1248 = vmatpush1.bf16.msra.mxu0 %v130
    %1249 = vmatprep.subr.bf16.mxu0 %v129
    %1250 = vmatpush1.bf16.msra.mxu0 %v128
    %1251 = vmatprep.subr.bf16.mxu0 0
    %1252 = vmatpush2.bf16.msra.mxu0 0
    %1253 = vmatprep.subr.bf16.mxu0 0
    %1254 = vmatpush2.bf16.msra.mxu0 0
    %1255 = vmatprep.subr.bf16.mxu0 0
    %1256 = vmatpush2.bf16.msra.mxu0 0
    %1257 = vmatprep.subr.bf16.mxu0 0
    %1258 = vmatpush2.bf16.msra.mxu0 0
    %1259 = vmatprep.subr.bf16.mxu0 0
    %1260 = vmatpush2.bf16.msra.mxu0 0
    %1261 = vmatprep.subr.bf16.mxu0 0
    %1262 = vmatpush2.bf16.msra.mxu0 0
    %1263 = vmatprep.subr.bf16.mxu0 0
    %1264 = vmatpush2.bf16.msra.mxu0 0
    %1265 = vmatprep.subr.bf16.mxu0 0
    %1266 = vmatpush2.bf16.msra.mxu0 0
    %1267 = vmatprep.mubr.bf16.mxu0 0
    %1268 = vmatmul.mubr.bf16.gmra.mxu0 %v1233
    %v1269 = vpop.f32.mrf.mxu0
    %v1270 = vadd.f32 %v73, %v1269
    %v1271 = vpop.f32.mrf.mxu0
    %v1272 = vadd.f32 %v77, %v1271
    %v1273 = vpop.f32.mrf.mxu0
    %v1274 = vpop.f32.mrf.mxu0
    %1275 = vdwg.mxu0
    %v1276 = vxor.u32 %v1270, 2147483648
    %v1277 = vmul.f32 %v1276, 1.442695
    %v1278 = vpow.pop %v1277
    %v1279 = vadd.f32 %v1278, 1.0
    %v1280 = vrcp.pop %v1279
    %v1281 = vmul.f32 1.0, %v1280
    %v1282 = vtanh.pop %v1272
    %v1283 = vxor.u32 %v1272, 2147483648
    %v1284 = vmul.f32 %v1283, 1.442695
    %v1285 = vpow.pop %v1284
    %v1286 = vadd.f32 %v1285, 1.0
    %v1287 = vrcp.pop %v1286
    %v1288 = vmul.f32 1.0, %v1287
    %v1289 = vsel %vm45, %v1282, %v1288
    %v1290 = vmul.f32 %v1281, %v1081
    %v1291 = vmul.f32 %v1281, %v1289
    %1293 = vrot.lane.b32.xlu0 %v1291, 64
    %v1294 = vpop.permute.xlu0 %1293
    %v1296 = vadd.f32 %v1290, %v1294
    %v1297 = vtanh.pop %v1296
    %v1298 = vmul.f32 %v1289, %v1297
    %v1299 = vpack.c.bf16 %v1155, %v1155
    %1301 = vrot.lane.b32.xlu0 %v1230, 64
    %v1302 = vpop.permute.xlu0 %1301
    %v1305 = vsel %vm47, %v1302, %v1299
    %1307 = vmatprep.subr.bf16.mxu0 %v394
    %1308 = vmatpush1.bf16.msra.mxu0 %v393
    %1309 = vmatprep.subr.bf16.mxu0 %v392
    %1310 = vmatpush1.bf16.msra.mxu0 %v391
    %1311 = vmatprep.subr.bf16.mxu0 %v390
    %1312 = vmatpush1.bf16.msra.mxu0 %v389
    %1313 = vmatprep.subr.bf16.mxu0 %v388
    %1314 = vmatpush1.bf16.msra.mxu0 %v387
    %1315 = vmatprep.subr.bf16.mxu0 %v386
    %1316 = vmatpush1.bf16.msra.mxu0 %v385
    %1317 = vmatprep.subr.bf16.mxu0 %v384
    %1318 = vmatpush1.bf16.msra.mxu0 %v383
    %1319 = vmatprep.subr.bf16.mxu0 %v382
    %1320 = vmatpush1.bf16.msra.mxu0 %v381
    %1321 = vmatprep.subr.bf16.mxu0 %v380
    %1322 = vmatpush1.bf16.msra.mxu0 %v379
    %1323 = vmatprep.subr.bf16.mxu0 0
    %1324 = vmatpush2.bf16.msra.mxu0 0
    %1325 = vmatprep.subr.bf16.mxu0 0
    %1326 = vmatpush2.bf16.msra.mxu0 0
    %1327 = vmatprep.subr.bf16.mxu0 0
    %1328 = vmatpush2.bf16.msra.mxu0 0
    %1329 = vmatprep.subr.bf16.mxu0 0
    %1330 = vmatpush2.bf16.msra.mxu0 0
    %1331 = vmatprep.subr.bf16.mxu0 0
    %1332 = vmatpush2.bf16.msra.mxu0 0
    %1333 = vmatprep.subr.bf16.mxu0 0
    %1334 = vmatpush2.bf16.msra.mxu0 0
    %1335 = vmatprep.subr.bf16.mxu0 0
    %1336 = vmatpush2.bf16.msra.mxu0 0
    %1337 = vmatprep.subr.bf16.mxu0 0
    %1338 = vmatpush2.bf16.msra.mxu0 0
    %1339 = vmatprep.mubr.bf16.mxu0 0
    %1340 = vmatmul.mubr.bf16.gmra.mxu0 %v1305
    %v1341 = vpop.f32.mrf.mxu0
    %v1342 = vadd.f32 %v324, %v1341
    %v1343 = vpop.f32.mrf.mxu0
    %v1344 = vadd.f32 %v328, %v1343
    %v1345 = vpop.f32.mrf.mxu0
    %v1346 = vpop.f32.mrf.mxu0
    %1347 = vdwg.mxu0
    %v1348 = vxor.u32 %v1342, 2147483648
    %v1349 = vmul.f32 %v1348, 1.442695
    %v1350 = vpow.pop %v1349
    %v1351 = vadd.f32 %v1350, 1.0
    %v1352 = vrcp.pop %v1351
    %v1353 = vmul.f32 1.0, %v1352
    %v1354 = vtanh.pop %v1344
    %v1355 = vxor.u32 %v1344, 2147483648
    %v1356 = vmul.f32 %v1355, 1.442695
    %v1357 = vpow.pop %v1356
    %v1358 = vadd.f32 %v1357, 1.0
    %v1359 = vrcp.pop %v1358
    %v1360 = vmul.f32 1.0, %v1359
    %v1361 = vsel %vm45, %v1354, %v1360
    %v1362 = vmul.f32 %v1353, %v1153
    %v1363 = vmul.f32 %v1353, %v1361
    %1365 = vrot.lane.b32.xlu0 %v1363, 64
    %v1366 = vpop.permute.xlu0 %1365
    %v1368 = vadd.f32 %v1362, %v1366
    %v1369 = vtanh.pop %v1368
    %v1370 = vmul.f32 %v1361, %v1369
    %v1371 = vpack.c.bf16 %v1227, %v1227
    %1373 = vrot.lane.b32.xlu0 %v1299, 64
    %v1374 = vpop.permute.xlu0 %1373
    %v1377 = vsel %vm47, %v1374, %v1371
    %1379 = vmatprep.subr.bf16.mxu0 %v717
    %1380 = vmatpush1.bf16.msra.mxu0 %v716
    %1381 = vmatprep.subr.bf16.mxu0 %v715
    %1382 = vmatpush1.bf16.msra.mxu0 %v714
    %1383 = vmatprep.subr.bf16.mxu0 %v713
    %1384 = vmatpush1.bf16.msra.mxu0 %v712
    %1385 = vmatprep.subr.bf16.mxu0 %v711
    %1386 = vmatpush1.bf16.msra.mxu0 %v710
    %1387 = vmatprep.subr.bf16.mxu0 %v709
    %1388 = vmatpush1.bf16.msra.mxu0 %v708
    %1389 = vmatprep.subr.bf16.mxu0 %v707
    %1390 = vmatpush1.bf16.msra.mxu0 %v706
    %1391 = vmatprep.subr.bf16.mxu0 %v705
    %1392 = vmatpush1.bf16.msra.mxu0 %v704
    %1393 = vmatprep.subr.bf16.mxu0 %v703
    %1394 = vmatpush1.bf16.msra.mxu0 %v702
    %1395 = vmatprep.subr.bf16.mxu0 0
    %1396 = vmatpush2.bf16.msra.mxu0 0
    %1397 = vmatprep.subr.bf16.mxu0 0
    %1398 = vmatpush2.bf16.msra.mxu0 0
    %1399 = vmatprep.subr.bf16.mxu0 0
    %1400 = vmatpush2.bf16.msra.mxu0 0
    %1401 = vmatprep.subr.bf16.mxu0 0
    %1402 = vmatpush2.bf16.msra.mxu0 0
    %1403 = vmatprep.subr.bf16.mxu0 0
    %1404 = vmatpush2.bf16.msra.mxu0 0
    %1405 = vmatprep.subr.bf16.mxu0 0
    %1406 = vmatpush2.bf16.msra.mxu0 0
    %1407 = vmatprep.subr.bf16.mxu0 0
    %1408 = vmatpush2.bf16.msra.mxu0 0
    %1409 = vmatprep.subr.bf16.mxu0 0
    %1410 = vmatpush2.bf16.msra.mxu0 0
    %1411 = vmatprep.mubr.bf16.mxu0 0
    %1412 = vmatmul.mubr.bf16.gmra.mxu0 %v1377
    %v1413 = vpop.f32.mrf.mxu0
    %v1414 = vadd.f32 %v647, %v1413
    %v1415 = vpop.f32.mrf.mxu0
    %v1416 = vadd.f32 %v651, %v1415
    %v1417 = vpop.f32.mrf.mxu0
    %v1418 = vpop.f32.mrf.mxu0
    %1419 = vdwg.mxu0
    %v1420 = vxor.u32 %v1414, 2147483648
    %v1421 = vmul.f32 %v1420, 1.442695
    %v1422 = vpow.pop %v1421
    %v1423 = vadd.f32 %v1422, 1.0
    %v1424 = vrcp.pop %v1423
    %v1425 = vmul.f32 1.0, %v1424
    %v1426 = vtanh.pop %v1416
    %v1427 = vxor.u32 %v1416, 2147483648
    %v1428 = vmul.f32 %v1427, 1.442695
    %v1429 = vpow.pop %v1428
    %v1430 = vadd.f32 %v1429, 1.0
    %v1431 = vrcp.pop %v1430
    %v1432 = vmul.f32 1.0, %v1431
    %v1433 = vsel %vm45, %v1426, %v1432
    %v1434 = vmul.f32 %v1425, %v1225
    %v1435 = vmul.f32 %v1425, %v1433
    %1437 = vrot.lane.b32.xlu0 %v1435, 64
    %v1438 = vpop.permute.xlu0 %1437
    %v1440 = vadd.f32 %v1434, %v1438
    %v1441 = vtanh.pop %v1440
    %v1442 = vmul.f32 %v1433, %v1441
    %s1443 = scalar_lea.vmem %s0, 12
    %v1444 = vld [vmem:[%s1443] sm:$0x3]
    %v1445 = vpack.c.bf16 %v1298, %v1298
    %v1448 = vsel %vm47, %v1444, %v1445
    %1450 = vmatprep.subr.bf16.mxu0 %v143
    %1451 = vmatpush1.bf16.msra.mxu0 %v142
    %1452 = vmatprep.subr.bf16.mxu0 %v141
    %1453 = vmatpush1.bf16.msra.mxu0 %v140
    %1454 = vmatprep.subr.bf16.mxu0 %v139
    %1455 = vmatpush1.bf16.msra.mxu0 %v138
    %1456 = vmatprep.subr.bf16.mxu0 %v137
    %1457 = vmatpush1.bf16.msra.mxu0 %v136
    %1458 = vmatprep.subr.bf16.mxu0 %v135
    %1459 = vmatpush1.bf16.msra.mxu0 %v134
    %1460 = vmatprep.subr.bf16.mxu0 %v133
    %1461 = vmatpush1.bf16.msra.mxu0 %v132
    %1462 = vmatprep.subr.bf16.mxu0 %v131
    %1463 = vmatpush1.bf16.msra.mxu0 %v130
    %1464 = vmatprep.subr.bf16.mxu0 %v129
    %1465 = vmatpush1.bf16.msra.mxu0 %v128
    %1466 = vmatprep.subr.bf16.mxu0 0
    %1467 = vmatpush2.bf16.msra.mxu0 0
    %1468 = vmatprep.subr.bf16.mxu0 0
    %1469 = vmatpush2.bf16.msra.mxu0 0
    %1470 = vmatprep.subr.bf16.mxu0 0
    %1471 = vmatpush2.bf16.msra.mxu0 0
    %1472 = vmatprep.subr.bf16.mxu0 0
    %1473 = vmatpush2.bf16.msra.mxu0 0
    %1474 = vmatprep.subr.bf16.mxu0 0
    %1475 = vmatpush2.bf16.msra.mxu0 0
    %1476 = vmatprep.subr.bf16.mxu0 0
    %1477 = vmatpush2.bf16.msra.mxu0 0
    %1478 = vmatprep.subr.bf16.mxu0 0
    %1479 = vmatpush2.bf16.msra.mxu0 0
    %1480 = vmatprep.subr.bf16.mxu0 0
    %1481 = vmatpush2.bf16.msra.mxu0 0
    %1482 = vmatprep.mubr.bf16.mxu0 0
    %1483 = vmatmul.mubr.bf16.gmra.mxu0 %v1448
    %v1484 = vpop.f32.mrf.mxu0
    %v1485 = vadd.f32 %v73, %v1484
    %v1486 = vpop.f32.mrf.mxu0
    %v1487 = vadd.f32 %v77, %v1486
    %v1488 = vpop.f32.mrf.mxu0
    %v1489 = vpop.f32.mrf.mxu0
    %1490 = vdwg.mxu0
    %v1491 = vxor.u32 %v1485, 2147483648
    %v1492 = vmul.f32 %v1491, 1.442695
    %v1493 = vpow.pop %v1492
    %v1494 = vadd.f32 %v1493, 1.0
    %v1495 = vrcp.pop %v1494
    %v1496 = vmul.f32 1.0, %v1495
    %v1497 = vtanh.pop %v1487
    %v1498 = vxor.u32 %v1487, 2147483648
    %v1499 = vmul.f32 %v1498, 1.442695
    %v1500 = vpow.pop %v1499
    %v1501 = vadd.f32 %v1500, 1.0
    %v1502 = vrcp.pop %v1501
    %v1503 = vmul.f32 1.0, %v1502
    %v1504 = vsel %vm45, %v1497, %v1503
    %v1505 = vmul.f32 %v1496, %v1296
    %v1506 = vmul.f32 %v1496, %v1504
    %1508 = vrot.lane.b32.xlu0 %v1506, 64
    %v1509 = vpop.permute.xlu0 %1508
    %v1511 = vadd.f32 %v1505, %v1509
    %v1512 = vtanh.pop %v1511
    %v1513 = vmul.f32 %v1504, %v1512
    %v1514 = vpack.c.bf16 %v1370, %v1370
    %1516 = vrot.lane.b32.xlu0 %v1445, 64
    %v1517 = vpop.permute.xlu0 %1516
    %v1520 = vsel %vm47, %v1517, %v1514
    %1522 = vmatprep.subr.bf16.mxu0 %v394
    %1523 = vmatpush1.bf16.msra.mxu0 %v393
    %1524 = vmatprep.subr.bf16.mxu0 %v392
    %1525 = vmatpush1.bf16.msra.mxu0 %v391
    %1526 = vmatprep.subr.bf16.mxu0 %v390
    %1527 = vmatpush1.bf16.msra.mxu0 %v389
    %1528 = vmatprep.subr.bf16.mxu0 %v388
    %1529 = vmatpush1.bf16.msra.mxu0 %v387
    %1530 = vmatprep.subr.bf16.mxu0 %v386
    %1531 = vmatpush1.bf16.msra.mxu0 %v385
    %1532 = vmatprep.subr.bf16.mxu0 %v384
    %1533 = vmatpush1.bf16.msra.mxu0 %v383
    %1534 = vmatprep.subr.bf16.mxu0 %v382
    %1535 = vmatpush1.bf16.msra.mxu0 %v381
    %1536 = vmatprep.subr.bf16.mxu0 %v380
    %1537 = vmatpush1.bf16.msra.mxu0 %v379
    %1538 = vmatprep.subr.bf16.mxu0 0
    %1539 = vmatpush2.bf16.msra.mxu0 0
    %1540 = vmatprep.subr.bf16.mxu0 0
    %1541 = vmatpush2.bf16.msra.mxu0 0
    %1542 = vmatprep.subr.bf16.mxu0 0
    %1543 = vmatpush2.bf16.msra.mxu0 0
    %1544 = vmatprep.subr.bf16.mxu0 0
    %1545 = vmatpush2.bf16.msra.mxu0 0
    %1546 = vmatprep.subr.bf16.mxu0 0
    %1547 = vmatpush2.bf16.msra.mxu0 0
    %1548 = vmatprep.subr.bf16.mxu0 0
    %1549 = vmatpush2.bf16.msra.mxu0 0
    %1550 = vmatprep.subr.bf16.mxu0 0
    %1551 = vmatpush2.bf16.msra.mxu0 0
    %1552 = vmatprep.subr.bf16.mxu0 0
    %1553 = vmatpush2.bf16.msra.mxu0 0
    %1554 = vmatprep.mubr.bf16.mxu0 0
    %1555 = vmatmul.mubr.bf16.gmra.mxu0 %v1520
    %v1556 = vpop.f32.mrf.mxu0
    %v1557 = vadd.f32 %v324, %v1556
    %v1558 = vpop.f32.mrf.mxu0
    %v1559 = vadd.f32 %v328, %v1558
    %v1560 = vpop.f32.mrf.mxu0
    %v1561 = vpop.f32.mrf.mxu0
    %1562 = vdwg.mxu0
    %v1563 = vxor.u32 %v1557, 2147483648
    %v1564 = vmul.f32 %v1563, 1.442695
    %v1565 = vpow.pop %v1564
    %v1566 = vadd.f32 %v1565, 1.0
    %v1567 = vrcp.pop %v1566
    %v1568 = vmul.f32 1.0, %v1567
    %v1569 = vtanh.pop %v1559
    %v1570 = vxor.u32 %v1559, 2147483648
    %v1571 = vmul.f32 %v1570, 1.442695
    %v1572 = vpow.pop %v1571
    %v1573 = vadd.f32 %v1572, 1.0
    %v1574 = vrcp.pop %v1573
    %v1575 = vmul.f32 1.0, %v1574
    %v1576 = vsel %vm45, %v1569, %v1575
    %v1577 = vmul.f32 %v1568, %v1368
    %v1578 = vmul.f32 %v1568, %v1576
    %1580 = vrot.lane.b32.xlu0 %v1578, 64
    %v1581 = vpop.permute.xlu0 %1580
    %v1583 = vadd.f32 %v1577, %v1581
    %v1584 = vtanh.pop %v1583
    %v1585 = vmul.f32 %v1576, %v1584
    %v1586 = vpack.c.bf16 %v1442, %v1442
    %1588 = vrot.lane.b32.xlu0 %v1514, 64
    %v1589 = vpop.permute.xlu0 %1588
    %v1592 = vsel %vm47, %v1589, %v1586
    %1594 = vmatprep.subr.bf16.mxu0 %v717
    %1595 = vmatpush1.bf16.msra.mxu0 %v716
    %1596 = vmatprep.subr.bf16.mxu0 %v715
    %1597 = vmatpush1.bf16.msra.mxu0 %v714
    %1598 = vmatprep.subr.bf16.mxu0 %v713
    %1599 = vmatpush1.bf16.msra.mxu0 %v712
    %1600 = vmatprep.subr.bf16.mxu0 %v711
    %1601 = vmatpush1.bf16.msra.mxu0 %v710
    %1602 = vmatprep.subr.bf16.mxu0 %v709
    %1603 = vmatpush1.bf16.msra.mxu0 %v708
    %1604 = vmatprep.subr.bf16.mxu0 %v707
    %1605 = vmatpush1.bf16.msra.mxu0 %v706
    %1606 = vmatprep.subr.bf16.mxu0 %v705
    %1607 = vmatpush1.bf16.msra.mxu0 %v704
    %1608 = vmatprep.subr.bf16.mxu0 %v703
    %1609 = vmatpush1.bf16.msra.mxu0 %v702
    %1610 = vmatprep.subr.bf16.mxu0 0
    %1611 = vmatpush2.bf16.msra.mxu0 0
    %1612 = vmatprep.subr.bf16.mxu0 0
    %1613 = vmatpush2.bf16.msra.mxu0 0
    %1614 = vmatprep.subr.bf16.mxu0 0
    %1615 = vmatpush2.bf16.msra.mxu0 0
    %1616 = vmatprep.subr.bf16.mxu0 0
    %1617 = vmatpush2.bf16.msra.mxu0 0
    %1618 = vmatprep.subr.bf16.mxu0 0
    %1619 = vmatpush2.bf16.msra.mxu0 0
    %1620 = vmatprep.subr.bf16.mxu0 0
    %1621 = vmatpush2.bf16.msra.mxu0 0
    %1622 = vmatprep.subr.bf16.mxu0 0
    %1623 = vmatpush2.bf16.msra.mxu0 0
    %1624 = vmatprep.subr.bf16.mxu0 0
    %1625 = vmatpush2.bf16.msra.mxu0 0
    %1626 = vmatprep.mubr.bf16.mxu0 0
    %1627 = vmatmul.mubr.bf16.gmra.mxu0 %v1592
    %v1628 = vpop.f32.mrf.mxu0
    %v1629 = vadd.f32 %v647, %v1628
    %v1630 = vpop.f32.mrf.mxu0
    %v1631 = vadd.f32 %v651, %v1630
    %v1632 = vpop.f32.mrf.mxu0
    %v1633 = vpop.f32.mrf.mxu0
    %1634 = vdwg.mxu0
    %v1635 = vxor.u32 %v1629, 2147483648
    %v1636 = vmul.f32 %v1635, 1.442695
    %v1637 = vpow.pop %v1636
    %v1638 = vadd.f32 %v1637, 1.0
    %v1639 = vrcp.pop %v1638
    %v1640 = vmul.f32 1.0, %v1639
    %v1641 = vtanh.pop %v1631
    %v1642 = vxor.u32 %v1631, 2147483648
    %v1643 = vmul.f32 %v1642, 1.442695
    %v1644 = vpow.pop %v1643
    %v1645 = vadd.f32 %v1644, 1.0
    %v1646 = vrcp.pop %v1645
    %v1647 = vmul.f32 1.0, %v1646
    %v1648 = vsel %vm45, %v1641, %v1647
    %v1649 = vmul.f32 %v1640, %v1440
    %v1650 = vmul.f32 %v1640, %v1648
    %1652 = vrot.lane.b32.xlu0 %v1650, 64
    %v1653 = vpop.permute.xlu0 %1652
    %v1655 = vadd.f32 %v1649, %v1653
    %v1656 = vtanh.pop %v1655
    %v1657 = vmul.f32 %v1648, %v1656
    %s1658 = scalar_lea.vmem %s0, 14
    %v1659 = vld [vmem:[%s1658] sm:$0x3]
    %v1660 = vpack.c.bf16 %v1513, %v1513
    %v1663 = vsel %vm47, %v1659, %v1660
    %1665 = vmatprep.subr.bf16.mxu0 %v143
    %1666 = vmatpush1.bf16.msra.mxu0 %v142
    %1667 = vmatprep.subr.bf16.mxu0 %v141
    %1668 = vmatpush1.bf16.msra.mxu0 %v140
    %1669 = vmatprep.subr.bf16.mxu0 %v139
    %1670 = vmatpush1.bf16.msra.mxu0 %v138
    %1671 = vmatprep.subr.bf16.mxu0 %v137
    %1672 = vmatpush1.bf16.msra.mxu0 %v136
    %1673 = vmatprep.subr.bf16.mxu0 %v135
    %1674 = vmatpush1.bf16.msra.mxu0 %v134
    %1675 = vmatprep.subr.bf16.mxu0 %v133
    %1676 = vmatpush1.bf16.msra.mxu0 %v132
    %1677 = vmatprep.subr.bf16.mxu0 %v131
    %1678 = vmatpush1.bf16.msra.mxu0 %v130
    %1679 = vmatprep.subr.bf16.mxu0 %v129
    %1680 = vmatpush1.bf16.msra.mxu0 %v128
    %1681 = vmatprep.subr.bf16.mxu0 0
    %1682 = vmatpush2.bf16.msra.mxu0 0
    %1683 = vmatprep.subr.bf16.mxu0 0
    %1684 = vmatpush2.bf16.msra.mxu0 0
    %1685 = vmatprep.subr.bf16.mxu0 0
    %1686 = vmatpush2.bf16.msra.mxu0 0
    %1687 = vmatprep.subr.bf16.mxu0 0
    %1688 = vmatpush2.bf16.msra.mxu0 0
    %1689 = vmatprep.subr.bf16.mxu0 0
    %1690 = vmatpush2.bf16.msra.mxu0 0
    %1691 = vmatprep.subr.bf16.mxu0 0
    %1692 = vmatpush2.bf16.msra.mxu0 0
    %1693 = vmatprep.subr.bf16.mxu0 0
    %1694 = vmatpush2.bf16.msra.mxu0 0
    %1695 = vmatprep.subr.bf16.mxu0 0
    %1696 = vmatpush2.bf16.msra.mxu0 0
    %1697 = vmatprep.mubr.bf16.mxu0 0
    %1698 = vmatmul.mubr.bf16.gmra.mxu0 %v1663
    %v1699 = vpop.f32.mrf.mxu0
    %v1700 = vadd.f32 %v73, %v1699
    %v1701 = vpop.f32.mrf.mxu0
    %v1702 = vadd.f32 %v77, %v1701
    %v1703 = vpop.f32.mrf.mxu0
    %v1704 = vpop.f32.mrf.mxu0
    %1705 = vdwg.mxu0
    %v1706 = vxor.u32 %v1700, 2147483648
    %v1707 = vmul.f32 %v1706, 1.442695
    %v1708 = vpow.pop %v1707
    %v1709 = vadd.f32 %v1708, 1.0
    %v1710 = vrcp.pop %v1709
    %v1711 = vmul.f32 1.0, %v1710
    %v1712 = vtanh.pop %v1702
    %v1713 = vxor.u32 %v1702, 2147483648
    %v1714 = vmul.f32 %v1713, 1.442695
    %v1715 = vpow.pop %v1714
    %v1716 = vadd.f32 %v1715, 1.0
    %v1717 = vrcp.pop %v1716
    %v1718 = vmul.f32 1.0, %v1717
    %v1719 = vsel %vm45, %v1712, %v1718
    %v1720 = vmul.f32 %v1711, %v1511
    %v1721 = vmul.f32 %v1711, %v1719
    %1723 = vrot.lane.b32.xlu0 %v1721, 64
    %v1724 = vpop.permute.xlu0 %1723
    %v1726 = vadd.f32 %v1720, %v1724
    %v1727 = vtanh.pop %v1726
    %v1728 = vmul.f32 %v1719, %v1727
    %v1729 = vpack.c.bf16 %v1585, %v1585
    %1731 = vrot.lane.b32.xlu0 %v1660, 64
    %v1732 = vpop.permute.xlu0 %1731
    %v1735 = vsel %vm47, %v1732, %v1729
    %1737 = vmatprep.subr.bf16.mxu0 %v394
    %1738 = vmatpush1.bf16.msra.mxu0 %v393
    %1739 = vmatprep.subr.bf16.mxu0 %v392
    %1740 = vmatpush1.bf16.msra.mxu0 %v391
    %1741 = vmatprep.subr.bf16.mxu0 %v390
    %1742 = vmatpush1.bf16.msra.mxu0 %v389
    %1743 = vmatprep.subr.bf16.mxu0 %v388
    %1744 = vmatpush1.bf16.msra.mxu0 %v387
    %1745 = vmatprep.subr.bf16.mxu0 %v386
    %1746 = vmatpush1.bf16.msra.mxu0 %v385
    %1747 = vmatprep.subr.bf16.mxu0 %v384
    %1748 = vmatpush1.bf16.msra.mxu0 %v383
    %1749 = vmatprep.subr.bf16.mxu0 %v382
    %1750 = vmatpush1.bf16.msra.mxu0 %v381
    %1751 = vmatprep.subr.bf16.mxu0 %v380
    %1752 = vmatpush1.bf16.msra.mxu0 %v379
    %1753 = vmatprep.subr.bf16.mxu0 0
    %1754 = vmatpush2.bf16.msra.mxu0 0
    %1755 = vmatprep.subr.bf16.mxu0 0
    %1756 = vmatpush2.bf16.msra.mxu0 0
    %1757 = vmatprep.subr.bf16.mxu0 0
    %1758 = vmatpush2.bf16.msra.mxu0 0
    %1759 = vmatprep.subr.bf16.mxu0 0
    %1760 = vmatpush2.bf16.msra.mxu0 0
    %1761 = vmatprep.subr.bf16.mxu0 0
    %1762 = vmatpush2.bf16.msra.mxu0 0
    %1763 = vmatprep.subr.bf16.mxu0 0
    %1764 = vmatpush2.bf16.msra.mxu0 0
    %1765 = vmatprep.subr.bf16.mxu0 0
    %1766 = vmatpush2.bf16.msra.mxu0 0
    %1767 = vmatprep.subr.bf16.mxu0 0
    %1768 = vmatpush2.bf16.msra.mxu0 0
    %1769 = vmatprep.mubr.bf16.mxu0 0
    %1770 = vmatmul.mubr.bf16.gmra.mxu0 %v1735
    %v1771 = vpop.f32.mrf.mxu0
    %v1772 = vadd.f32 %v324, %v1771
    %v1773 = vpop.f32.mrf.mxu0
    %v1774 = vadd.f32 %v328, %v1773
    %v1775 = vpop.f32.mrf.mxu0
    %v1776 = vpop.f32.mrf.mxu0
    %1777 = vdwg.mxu0
    %v1778 = vxor.u32 %v1772, 2147483648
    %v1779 = vmul.f32 %v1778, 1.442695
    %v1780 = vpow.pop %v1779
    %v1781 = vadd.f32 %v1780, 1.0
    %v1782 = vrcp.pop %v1781
    %v1783 = vmul.f32 1.0, %v1782
    %v1784 = vtanh.pop %v1774
    %v1785 = vxor.u32 %v1774, 2147483648
    %v1786 = vmul.f32 %v1785, 1.442695
    %v1787 = vpow.pop %v1786
    %v1788 = vadd.f32 %v1787, 1.0
    %v1789 = vrcp.pop %v1788
    %v1790 = vmul.f32 1.0, %v1789
    %v1791 = vsel %vm45, %v1784, %v1790
    %v1792 = vmul.f32 %v1783, %v1583
    %v1793 = vmul.f32 %v1783, %v1791
    %1795 = vrot.lane.b32.xlu0 %v1793, 64
    %v1796 = vpop.permute.xlu0 %1795
    %v1798 = vadd.f32 %v1792, %v1796
    %v1799 = vtanh.pop %v1798
    %v1800 = vmul.f32 %v1791, %v1799
    %v1801 = vpack.c.bf16 %v1657, %v1657
    %1803 = vrot.lane.b32.xlu0 %v1729, 64
    %v1804 = vpop.permute.xlu0 %1803
    %v1807 = vsel %vm47, %v1804, %v1801
    %1809 = vmatprep.subr.bf16.mxu0 %v717
    %1810 = vmatpush1.bf16.msra.mxu0 %v716
    %1811 = vmatprep.subr.bf16.mxu0 %v715
    %1812 = vmatpush1.bf16.msra.mxu0 %v714
    %1813 = vmatprep.subr.bf16.mxu0 %v713
    %1814 = vmatpush1.bf16.msra.mxu0 %v712
    %1815 = vmatprep.subr.bf16.mxu0 %v711
    %1816 = vmatpush1.bf16.msra.mxu0 %v710
    %1817 = vmatprep.subr.bf16.mxu0 %v709
    %1818 = vmatpush1.bf16.msra.mxu0 %v708
    %1819 = vmatprep.subr.bf16.mxu0 %v707
    %1820 = vmatpush1.bf16.msra.mxu0 %v706
    %1821 = vmatprep.subr.bf16.mxu0 %v705
    %1822 = vmatpush1.bf16.msra.mxu0 %v704
    %1823 = vmatprep.subr.bf16.mxu0 %v703
    %1824 = vmatpush1.bf16.msra.mxu0 %v702
    %1825 = vmatprep.subr.bf16.mxu0 0
    %1826 = vmatpush2.bf16.msra.mxu0 0
    %1827 = vmatprep.subr.bf16.mxu0 0
    %1828 = vmatpush2.bf16.msra.mxu0 0
    %1829 = vmatprep.subr.bf16.mxu0 0
    %1830 = vmatpush2.bf16.msra.mxu0 0
    %1831 = vmatprep.subr.bf16.mxu0 0
    %1832 = vmatpush2.bf16.msra.mxu0 0
    %1833 = vmatprep.subr.bf16.mxu0 0
    %1834 = vmatpush2.bf16.msra.mxu0 0
    %1835 = vmatprep.subr.bf16.mxu0 0
    %1836 = vmatpush2.bf16.msra.mxu0 0
    %1837 = vmatprep.subr.bf16.mxu0 0
    %1838 = vmatpush2.bf16.msra.mxu0 0
    %1839 = vmatprep.subr.bf16.mxu0 0
    %1840 = vmatpush2.bf16.msra.mxu0 0
    %1841 = vmatprep.mubr.bf16.mxu0 0
    %1842 = vmatmul.mubr.bf16.gmra.mxu0 %v1807
    %v1843 = vpop.f32.mrf.mxu0
    %v1844 = vadd.f32 %v647, %v1843
    %v1845 = vpop.f32.mrf.mxu0
    %v1846 = vadd.f32 %v651, %v1845
    %v1847 = vpop.f32.mrf.mxu0
    %v1848 = vpop.f32.mrf.mxu0
    %1849 = vdwg.mxu0
    %v1850 = vxor.u32 %v1844, 2147483648
    %v1851 = vmul.f32 %v1850, 1.442695
    %v1852 = vpow.pop %v1851
    %v1853 = vadd.f32 %v1852, 1.0
    %v1854 = vrcp.pop %v1853
    %v1855 = vmul.f32 1.0, %v1854
    %v1856 = vtanh.pop %v1846
    %v1857 = vxor.u32 %v1846, 2147483648
    %v1858 = vmul.f32 %v1857, 1.442695
    %v1859 = vpow.pop %v1858
    %v1860 = vadd.f32 %v1859, 1.0
    %v1861 = vrcp.pop %v1860
    %v1862 = vmul.f32 1.0, %v1861
    %v1863 = vsel %vm45, %v1856, %v1862
    %v1864 = vmul.f32 %v1855, %v1655
    %v1865 = vmul.f32 %v1855, %v1863
    %1867 = vrot.lane.b32.xlu0 %v1865, 64
    %v1868 = vpop.permute.xlu0 %1867
    %v1870 = vadd.f32 %v1864, %v1868
    %v1871 = vtanh.pop %v1870
    %v1872 = vmul.f32 %v1863, %v1871
    %v1873 = vpack.c.bf16 %v1728, %v1728
    %v1874 = vpack.c.bf16 %v1800, %v1800
    %1876 = vrot.lane.b32.xlu0 %v1873, 64
    %v1877 = vpop.permute.xlu0 %1876
    %v1880 = vsel %vm47, %v1877, %v1874
    %1882 = vmatprep.subr.bf16.mxu0 %v394
    %1883 = vmatpush1.bf16.msra.mxu0 %v393
    %1884 = vmatprep.subr.bf16.mxu0 %v392
    %1885 = vmatpush1.bf16.msra.mxu0 %v391
    %1886 = vmatprep.subr.bf16.mxu0 %v390
    %1887 = vmatpush1.bf16.msra.mxu0 %v389
    %1888 = vmatprep.subr.bf16.mxu0 %v388
    %1889 = vmatpush1.bf16.msra.mxu0 %v387
    %1890 = vmatprep.subr.bf16.mxu0 %v386
    %1891 = vmatpush1.bf16.msra.mxu0 %v385
    %1892 = vmatprep.subr.bf16.mxu0 %v384
    %1893 = vmatpush1.bf16.msra.mxu0 %v383
    %1894 = vmatprep.subr.bf16.mxu0 %v382
    %1895 = vmatpush1.bf16.msra.mxu0 %v381
    %1896 = vmatprep.subr.bf16.mxu0 %v380
    %1897 = vmatpush1.bf16.msra.mxu0 %v379
    %1898 = vmatprep.subr.bf16.mxu0 0
    %1899 = vmatpush2.bf16.msra.mxu0 0
    %1900 = vmatprep.subr.bf16.mxu0 0
    %1901 = vmatpush2.bf16.msra.mxu0 0
    %1902 = vmatprep.subr.bf16.mxu0 0
    %1903 = vmatpush2.bf16.msra.mxu0 0
    %1904 = vmatprep.subr.bf16.mxu0 0
    %1905 = vmatpush2.bf16.msra.mxu0 0
    %1906 = vmatprep.subr.bf16.mxu0 0
    %1907 = vmatpush2.bf16.msra.mxu0 0
    %1908 = vmatprep.subr.bf16.mxu0 0
    %1909 = vmatpush2.bf16.msra.mxu0 0
    %1910 = vmatprep.subr.bf16.mxu0 0
    %1911 = vmatpush2.bf16.msra.mxu0 0
    %1912 = vmatprep.subr.bf16.mxu0 0
    %1913 = vmatpush2.bf16.msra.mxu0 0
    %1914 = vmatprep.mubr.bf16.mxu0 0
    %1915 = vmatmul.mubr.bf16.gmra.mxu0 %v1880
    %v1916 = vpop.f32.mrf.mxu0
    %v1917 = vadd.f32 %v324, %v1916
    %v1918 = vpop.f32.mrf.mxu0
    %v1919 = vadd.f32 %v328, %v1918
    %v1920 = vpop.f32.mrf.mxu0
    %v1921 = vpop.f32.mrf.mxu0
    %1922 = vdwg.mxu0
    %v1923 = vxor.u32 %v1917, 2147483648
    %v1924 = vmul.f32 %v1923, 1.442695
    %v1925 = vpow.pop %v1924
    %v1926 = vadd.f32 %v1925, 1.0
    %v1927 = vrcp.pop %v1926
    %v1928 = vmul.f32 1.0, %v1927
    %v1929 = vtanh.pop %v1919
    %v1930 = vxor.u32 %v1919, 2147483648
    %v1931 = vmul.f32 %v1930, 1.442695
    %v1932 = vpow.pop %v1931
    %v1933 = vadd.f32 %v1932, 1.0
    %v1934 = vrcp.pop %v1933
    %v1935 = vmul.f32 1.0, %v1934
    %v1936 = vsel %vm45, %v1929, %v1935
    %v1937 = vmul.f32 %v1928, %v1798
    %v1938 = vmul.f32 %v1928, %v1936
    %1940 = vrot.lane.b32.xlu0 %v1938, 64
    %v1941 = vpop.permute.xlu0 %1940
    %v1943 = vadd.f32 %v1937, %v1941
    %v1944 = vtanh.pop %v1943
    %v1945 = vmul.f32 %v1936, %v1944
    %v1946 = vpack.c.bf16 %v1872, %v1872
    %1948 = vrot.lane.b32.xlu0 %v1874, 64
    %v1949 = vpop.permute.xlu0 %1948
    %v1952 = vsel %vm47, %v1949, %v1946
    %1954 = vmatprep.subr.bf16.mxu0 %v717
    %1955 = vmatpush1.bf16.msra.mxu0 %v716
    %1956 = vmatprep.subr.bf16.mxu0 %v715
    %1957 = vmatpush1.bf16.msra.mxu0 %v714
    %1958 = vmatprep.subr.bf16.mxu0 %v713
    %1959 = vmatpush1.bf16.msra.mxu0 %v712
    %1960 = vmatprep.subr.bf16.mxu0 %v711
    %1961 = vmatpush1.bf16.msra.mxu0 %v710
    %1962 = vmatprep.subr.bf16.mxu0 %v709
    %1963 = vmatpush1.bf16.msra.mxu0 %v708
    %1964 = vmatprep.subr.bf16.mxu0 %v707
    %1965 = vmatpush1.bf16.msra.mxu0 %v706
    %1966 = vmatprep.subr.bf16.mxu0 %v705
    %1967 = vmatpush1.bf16.msra.mxu0 %v704
    %1968 = vmatprep.subr.bf16.mxu0 %v703
    %1969 = vmatpush1.bf16.msra.mxu0 %v702
    %1970 = vmatprep.subr.bf16.mxu0 0
    %1971 = vmatpush2.bf16.msra.mxu0 0
    %1972 = vmatprep.subr.bf16.mxu0 0
    %1973 = vmatpush2.bf16.msra.mxu0 0
    %1974 = vmatprep.subr.bf16.mxu0 0
    %1975 = vmatpush2.bf16.msra.mxu0 0
    %1976 = vmatprep.subr.bf16.mxu0 0
    %1977 = vmatpush2.bf16.msra.mxu0 0
    %1978 = vmatprep.subr.bf16.mxu0 0
    %1979 = vmatpush2.bf16.msra.mxu0 0
    %1980 = vmatprep.subr.bf16.mxu0 0
    %1981 = vmatpush2.bf16.msra.mxu0 0
    %1982 = vmatprep.subr.bf16.mxu0 0
    %1983 = vmatpush2.bf16.msra.mxu0 0
    %1984 = vmatprep.subr.bf16.mxu0 0
    %1985 = vmatpush2.bf16.msra.mxu0 0
    %1986 = vmatprep.mubr.bf16.mxu0 0
    %1987 = vmatmul.mubr.bf16.gmra.mxu0 %v1952
    %v1988 = vpop.f32.mrf.mxu0
    %v1989 = vadd.f32 %v647, %v1988
    %v1990 = vpop.f32.mrf.mxu0
    %v1991 = vadd.f32 %v651, %v1990
    %v1992 = vpop.f32.mrf.mxu0
    %v1993 = vpop.f32.mrf.mxu0
    %1994 = vdwg.mxu0
    %v1995 = vxor.u32 %v1989, 2147483648
    %v1996 = vmul.f32 %v1995, 1.442695
    %v1997 = vpow.pop %v1996
    %v1998 = vadd.f32 %v1997, 1.0
    %v1999 = vrcp.pop %v1998
    %v2000 = vmul.f32 1.0, %v1999
    %v2001 = vtanh.pop %v1991
    %v2002 = vxor.u32 %v1991, 2147483648
    %v2003 = vmul.f32 %v2002, 1.442695
    %v2004 = vpow.pop %v2003
    %v2005 = vadd.f32 %v2004, 1.0
    %v2006 = vrcp.pop %v2005
    %v2007 = vmul.f32 1.0, %v2006
    %v2008 = vsel %vm45, %v2001, %v2007
    %v2009 = vmul.f32 %v2000, %v1870
    %v2010 = vmul.f32 %v2000, %v2008
    %2012 = vrot.lane.b32.xlu0 %v2010, 64
    %v2013 = vpop.permute.xlu0 %2012
    %v2015 = vadd.f32 %v2009, %v2013
    %v2016 = vtanh.pop %v2015
    %v2017 = vmul.f32 %v2008, %v2016
    %v2018 = vpack.c.bf16 %v1945, %v1945
    %v2019 = vpack.c.bf16 %v2017, %v2017
    %2021 = vrot.lane.b32.xlu0 %v2018, 64
    %v2022 = vpop.permute.xlu0 %2021
    %v2025 = vsel %vm47, %v2022, %v2019
    %2027 = vmatprep.subr.bf16.mxu0 %v717
    %2028 = vmatpush1.bf16.msra.mxu0 %v716
    %2029 = vmatprep.subr.bf16.mxu0 %v715
    %2030 = vmatpush1.bf16.msra.mxu0 %v714
    %2031 = vmatprep.subr.bf16.mxu0 %v713
    %2032 = vmatpush1.bf16.msra.mxu0 %v712
    %2033 = vmatprep.subr.bf16.mxu0 %v711
    %2034 = vmatpush1.bf16.msra.mxu0 %v710
    %2035 = vmatprep.subr.bf16.mxu0 %v709
    %2036 = vmatpush1.bf16.msra.mxu0 %v708
    %2037 = vmatprep.subr.bf16.mxu0 %v707
    %2038 = vmatpush1.bf16.msra.mxu0 %v706
    %2039 = vmatprep.subr.bf16.mxu0 %v705
    %2040 = vmatpush1.bf16.msra.mxu0 %v704
    %2041 = vmatprep.subr.bf16.mxu0 %v703
    %2042 = vmatpush1.bf16.msra.mxu0 %v702
    %2043 = vmatprep.subr.bf16.mxu0 0
    %2044 = vmatpush2.bf16.msra.mxu0 0
    %2045 = vmatprep.subr.bf16.mxu0 0
    %2046 = vmatpush2.bf16.msra.mxu0 0
    %2047 = vmatprep.subr.bf16.mxu0 0
    %2048 = vmatpush2.bf16.msra.mxu0 0
    %2049 = vmatprep.subr.bf16.mxu0 0
    %2050 = vmatpush2.bf16.msra.mxu0 0
    %2051 = vmatprep.subr.bf16.mxu0 0
    %2052 = vmatpush2.bf16.msra.mxu0 0
    %2053 = vmatprep.subr.bf16.mxu0 0
    %2054 = vmatpush2.bf16.msra.mxu0 0
    %2055 = vmatprep.subr.bf16.mxu0 0
    %2056 = vmatpush2.bf16.msra.mxu0 0
    %2057 = vmatprep.subr.bf16.mxu0 0
    %2058 = vmatpush2.bf16.msra.mxu0 0
    %2059 = vmatprep.mubr.bf16.mxu0 0
    %2060 = vmatmul.mubr.bf16.gmra.mxu0 %v2025
    %v2061 = vpop.f32.mrf.mxu0
    %v2062 = vadd.f32 %v647, %v2061
    %v2063 = vpop.f32.mrf.mxu0
    %v2064 = vadd.f32 %v651, %v2063
    %v2065 = vpop.f32.mrf.mxu0
    %v2066 = vpop.f32.mrf.mxu0
    %2067 = vdwg.mxu0
    %v2068 = vxor.u32 %v2062, 2147483648
    %v2069 = vmul.f32 %v2068, 1.442695
    %v2070 = vpow.pop %v2069
    %v2071 = vadd.f32 %v2070, 1.0
    %v2072 = vrcp.pop %v2071
    %v2073 = vmul.f32 1.0, %v2072
    %v2074 = vtanh.pop %v2064
    %v2075 = vxor.u32 %v2064, 2147483648
    %v2076 = vmul.f32 %v2075, 1.442695
    %v2077 = vpow.pop %v2076
    %v2078 = vadd.f32 %v2077, 1.0
    %v2079 = vrcp.pop %v2078
    %v2080 = vmul.f32 1.0, %v2079
    %v2081 = vsel %vm45, %v2074, %v2080
    %v2082 = vmul.f32 %v2073, %v2015
    %v2083 = vmul.f32 %v2073, %v2081
    %2085 = vrot.lane.b32.xlu0 %v2083, 64
    %v2086 = vpop.permute.xlu0 %2085
    %v2088 = vadd.f32 %v2082, %v2086
    %v2089 = vtanh.pop %v2088
    %v2090 = vmul.f32 %v2081, %v2089
    %v2091 = vpack.c.bf16 %v2090, %v2090
    %v2092 = vld [vmem:[%s3] sm:$0xf]
    %v2093 = vld [vmem:[%s3 + $0x4] sm:$0xf]
    %v2094 = vld [vmem:[%s3 + $0x8] sm:$0xf]
    %v2095 = vld [vmem:[%s3 + $0xc] sm:$0xf]
    %v2096 = vld [vmem:[%s3 + $0x10] sm:$0xf]
    %v2097 = vld [vmem:[%s3 + $0x14] sm:$0xf]
    %v2098 = vld [vmem:[%s3 + $0x18] sm:$0xf]
    %v2099 = vld [vmem:[%s3 + $0x1c] sm:$0xf]
    %v2100 = vld [vmem:[%s4] sm:$0x1]
    %v2102 = vlaneseq
    %v2103 = vshrl.u32 %v2102, 7
    %v2104 = vsub.s32 0, %v2103
    %v2105 = vrot.slane %v2100, %v2104
    %2108 = vrot.lane.b32.xlu0 %v2091, 64
    %v2109 = vpop.permute.xlu0 %2108
    %v2118 = vunpack.c.l.b16 %v2092
    %v2119 = vunpack.c.l.b16 %v2093
    %v2120 = vunpack.c.l.b16 %v2094
    %v2121 = vunpack.c.l.b16 %v2095
    %v2122 = vunpack.c.l.b16 %v2096
    %v2123 = vunpack.c.l.b16 %v2097
    %v2124 = vunpack.c.l.b16 %v2098
    %v2125 = vunpack.c.l.b16 %v2099
    %v2126 = vpack.c.b16 %v2119, %v2118
    %v2127 = vpack.c.b16 %v2121, %v2120
    %v2128 = vpack.c.b16 %v2123, %v2122
    %v2129 = vpack.c.b16 %v2125, %v2124
    %v2135 = vsel %vm47, %v2109, 0
    %2137 = vmatprep.subr.bf16.mxu0 0
    %2138 = vmatpush1.bf16.msra.mxu0 0
    %2139 = vmatprep.subr.bf16.mxu0 0
    %2140 = vmatpush1.bf16.msra.mxu0 0
    %2141 = vmatprep.subr.bf16.mxu0 0
    %2142 = vmatpush1.bf16.msra.mxu0 0
    %2143 = vmatprep.subr.bf16.mxu0 0
    %2144 = vmatpush1.bf16.msra.mxu0 0
    %2145 = vmatprep.subr.bf16.mxu0 0
    %2146 = vmatpush1.bf16.msra.mxu0 %v2129
    %2147 = vmatprep.subr.bf16.mxu0 0
    %2148 = vmatpush1.bf16.msra.mxu0 %v2128
    %2149 = vmatprep.subr.bf16.mxu0 0
    %2150 = vmatpush1.bf16.msra.mxu0 %v2127
    %2151 = vmatprep.subr.bf16.mxu0 0
    %2152 = vmatpush1.bf16.msra.mxu0 %v2126
    %2153 = vmatprep.subr.bf16.mxu0 0
    %2154 = vmatpush2.bf16.msra.mxu0 0
    %2155 = vmatprep.subr.bf16.mxu0 0
    %2156 = vmatpush2.bf16.msra.mxu0 0
    %2157 = vmatprep.subr.bf16.mxu0 0
    %2158 = vmatpush2.bf16.msra.mxu0 0
    %2159 = vmatprep.subr.bf16.mxu0 0
    %2160 = vmatpush2.bf16.msra.mxu0 0
    %2161 = vmatprep.subr.bf16.mxu0 0
    %2162 = vmatpush2.bf16.msra.mxu0 0
    %2163 = vmatprep.subr.bf16.mxu0 0
    %2164 = vmatpush2.bf16.msra.mxu0 0
    %2165 = vmatprep.subr.bf16.mxu0 0
    %2166 = vmatpush2.bf16.msra.mxu0 0
    %2167 = vmatprep.subr.bf16.mxu0 0
    %2168 = vmatpush2.bf16.msra.mxu0 0
    %2169 = vmatprep.mubr.bf16.mxu0 0
    %2170 = vmatmul.mubr.bf16.gmra.mxu0 %v2135
    %v2171 = vpop.f32.mrf.mxu0
    %v2172 = vadd.f32 %v2105, %v2171
    %v2173 = vpop.f32.mrf.mxu0
    %v2174 = vpop.f32.mrf.mxu0
    %v2175 = vpop.f32.mrf.mxu0
    %2176 = vdwg.mxu0
    %v2177 = vtanh.pop %v2172
    %v2178 = vpack.c.bf16 %v2177, %v2177
    %v2179 = vld [vmem:[%s5] sm:$0xf]
    %v2180 = vld [vmem:[%s5 + $0x4] sm:$0xf]
    %v2181 = vld [vmem:[%s5 + $0x8] sm:$0xf]
    %v2182 = vld [vmem:[%s5 + $0xc] sm:$0xf]
    %v2183 = vld [vmem:[#allocation2] sm:$0x1]
    %v2185 = vlaneseq
    %v2186 = vshrl.u32 %v2185, 7
    %v2187 = vsub.s32 0, %v2186
    %v2188 = vrot.slane %v2183, %v2187
    %v2194 = vunpack.c.l.b16 %v2179
    %v2195 = vunpack.c.l.b16 %v2180
    %v2196 = vunpack.c.l.b16 %v2181
    %v2197 = vunpack.c.l.b16 %v2182
    %v2198 = vpack.c.b16 %v2195, %v2194
    %v2199 = vpack.c.b16 %v2197, %v2196
    %vm2202 = vcmask 261120
    %v2204 = vsel %vm2202, %v2178, 0
    %2206 = vmatprep.subr.bf16.mxu0 0
    %2207 = vmatpush1.bf16.msra.mxu0 0
    %2208 = vmatprep.subr.bf16.mxu0 0
    %2209 = vmatpush1.bf16.msra.mxu0 0
    %2210 = vmatprep.subr.bf16.mxu0 0
    %2211 = vmatpush1.bf16.msra.mxu0 0
    %2212 = vmatprep.subr.bf16.mxu0 0
    %2213 = vmatpush1.bf16.msra.mxu0 0
    %2214 = vmatprep.subr.bf16.mxu0 0
    %2215 = vmatpush1.bf16.msra.mxu0 0
    %2216 = vmatprep.subr.bf16.mxu0 0
    %2217 = vmatpush1.bf16.msra.mxu0 0
    %2218 = vmatprep.subr.bf16.mxu0 0
    %2219 = vmatpush1.bf16.msra.mxu0 %v2199
    %2220 = vmatprep.subr.bf16.mxu0 0
    %2221 = vmatpush1.bf16.msra.mxu0 %v2198
    %2222 = vmatprep.subr.bf16.mxu0 0
    %2223 = vmatpush2.bf16.msra.mxu0 0
    %2224 = vmatprep.subr.bf16.mxu0 0
    %2225 = vmatpush2.bf16.msra.mxu0 0
    %2226 = vmatprep.subr.bf16.mxu0 0
    %2227 = vmatpush2.bf16.msra.mxu0 0
    %2228 = vmatprep.subr.bf16.mxu0 0
    %2229 = vmatpush2.bf16.msra.mxu0 0
    %2230 = vmatprep.subr.bf16.mxu0 0
    %2231 = vmatpush2.bf16.msra.mxu0 0
    %2232 = vmatprep.subr.bf16.mxu0 0
    %2233 = vmatpush2.bf16.msra.mxu0 0
    %2234 = vmatprep.subr.bf16.mxu0 0
    %2235 = vmatpush2.bf16.msra.mxu0 0
    %2236 = vmatprep.subr.bf16.mxu0 0
    %2237 = vmatpush2.bf16.msra.mxu0 0
    %2238 = vmatprep.mubr.bf16.mxu0 0
    %2239 = vmatmul.mubr.bf16.gmra.mxu0 %v2204
    %v2240 = vpop.f32.mrf.mxu0
    %v2241 = vadd.f32 %v2188, %v2240
    %v2242 = vpop.f32.mrf.mxu0
    %v2243 = vpop.f32.mrf.mxu0
    %v2244 = vpop.f32.mrf.mxu0
    %2245 = vdwg.mxu0
    %vm2246 = vcmask 3072
    %2247 = vst.msk [vmem:[%s7] sm:$0xf] %vm2246, %v2241
    // Predicated region
    $region34: #{lstm_model_future_forward.1} parent=1 // pred_check
      _
    $region35: #{lstm_model_future_forward.1} parent=1 // pred_check_branch
      %2249 = sbr.rel (0) target = $region37
    $region36: #{lstm_model_future_forward.1} parent=1 // pred_region
      _
    $region37: #{lstm_model_future_forward.1} parent=1 // pred_fallthru
      _
    // Predicated region
    $region38: #{lstm_model_future_forward.1} parent=1 // pred_check
      _
    $region39: #{lstm_model_future_forward.1} parent=1 // pred_check_branch
      %2251 = sbr.rel (0) target = $region41
    $region40: #{lstm_model_future_forward.1} parent=1 // pred_region
      _
    $region41: #{lstm_model_future_forward.1} parent=1 // pred_fallthru
      _
    %2252 = vsyncpa [#allocation4], 1

</llo_original>
